<compile_context>
chip_gen: v5e
topology: v5e:2x2
jax: 0.10.0
libtpu: 0.0.40
codegen_flags: <defaults>
</compile_context>

<pallas_src>
import functools
import math

import jax
import jax.numpy as jnp
from jax import lax
from jax.experimental import pallas as pl
from jax.experimental.pallas import tpu as pltpu


SAMPLE_RATE = 16000   # stands in for DataProperties.get('sample_rate')

_SUB = 128            # frames per MXU scan step (lane width / MXU tile)


def _get_norm_alpha(sr: int, hop_size: int, decay: float) -> float:
    """Identical to ExponentialUnitNorm._get_norm_alpha."""
    dt = hop_size / sr
    a_ = math.exp(-dt / decay)
    precision = 3
    a = 1.0
    while a >= 1.0:
        a = round(a_, precision)
        precision += 1
    return a


def make_init_state(n_freq: int) -> jnp.ndarray:
    """torch.linspace(0.001, 0.0001, n_freq).view(1, n_freq)"""
    return jnp.linspace(0.001, 0.0001, n_freq, dtype=jnp.float32).reshape(1, n_freq)


# ------------------------------------------------------------------ kernel ---

def _expnorm_kernel(init_ref, w_ref, p_ref, x_ref, o_ref, carry_ref, *, n_sub):
    # init_ref : (F, 1)     per-frequency initial EMA state
    # w_ref    : (SUB, SUB) causal decay matrix (see module docstring)
    # p_ref    : (1, SUB)   p[m] = alpha**(m + 1)  (applied to the carried state)
    # x_ref    : (F, L)     current frame block for one batch element
    # o_ref    : (F, L)     normalized output block
    # carry_ref: (F, 1)     f32 VMEM scratch: EMA state after the previous sub-chunk
    c = pl.program_id(1)

    @pl.when(c == 0)
    def _():
        carry_ref[...] = init_ref[...]

    def body(s, _):
        idx = pl.multiple_of(s * _SUB, _SUB)
        x = x_ref[:, pl.ds(idx, _SUB)].astype(jnp.float32)        # (F, SUB)
        x_abs = jnp.sqrt(jnp.maximum(x, 1e-10))

        # Blocked linear scan on the MXU:
        #   states[f, m] = sum_{l<=m} x_abs[f, l] * W[l, m] + carry[f] * alpha**(m+1)
        states = jnp.dot(x_abs, w_ref[...],
                         precision=lax.Precision.HIGHEST,
                         preferred_element_type=jnp.float32)      # (F, SUB)
        states = states + carry_ref[...] * p_ref[...]             # (F,1)*(1,SUB)

        carry_ref[...] = states[:, _SUB - 1:_SUB]                 # carry last frame
        o_ref[:, pl.ds(idx, _SUB)] = (x * lax.rsqrt(states)).astype(o_ref.dtype)
        return 0

    lax.fori_loop(0, n_sub, body, 0, unroll=True)


# ----------------------------------------------------------------- wrapper ---

def exponential_unit_norm(x: jnp.ndarray, init_state: jnp.ndarray,
                          alpha: float, *, block_frames: int = 512) -> jnp.ndarray:
    """x: (n_batch, n_freq, n_frames) -> (n_batch, n_freq, n_frames)."""
    B, F, T = x.shape
    assert init_state.shape == (1, F)
    assert block_frames % _SUB == 0

    # Frames are padded up to a multiple of the per-grid-step block L, which is
    # itself a multiple of the 128-frame scan sub-chunk.
    T_sub = pl.cdiv(T, _SUB) * _SUB
    L = min(block_frames, T_sub)
    n_chunks = pl.cdiv(T_sub, L)
    T_pad = n_chunks * L
    x_in = x if T_pad == T else jnp.pad(x, ((0, 0), (0, 0), (0, T_pad - T)))

    # Static scan matrix / carry-decay vector (depend only on alpha).
    af = jnp.float32(alpha)
    idx = jnp.arange(_SUB, dtype=jnp.int32)
    diff = (idx[None, :] - idx[:, None]).astype(jnp.float32)          # m - l
    w = jnp.where(diff >= 0.0, (1.0 - af) * jnp.power(af, diff),
                  0.0).astype(jnp.float32)                            # (SUB, SUB)
    pvec = jnp.power(af, jnp.arange(1, _SUB + 1,
                                    dtype=jnp.float32)).reshape(1, _SUB)
    init = init_state.astype(jnp.float32).reshape(F, 1)               # (F, 1)

    kernel = functools.partial(_expnorm_kernel, n_sub=L // _SUB)

    out = pl.pallas_call(
        kernel,
        out_shape=jax.ShapeDtypeStruct((B, F, T_pad), x.dtype),
        grid_spec=pltpu.PrefetchScalarGridSpec(
            num_scalar_prefetch=0,
            grid=(B, n_chunks),
            in_specs=[
                pl.BlockSpec((F, 1), lambda b, c: (0, 0)),             # init (resident)
                pl.BlockSpec((_SUB, _SUB), lambda b, c: (0, 0)),       # W    (resident)
                pl.BlockSpec((1, _SUB), lambda b, c: (0, 0)),          # pvec (resident)
                pl.BlockSpec((None, F, L), lambda b, c: (b, 0, c)),    # x block
            ],
            out_specs=pl.BlockSpec((None, F, L), lambda b, c: (b, 0, c)),
            scratch_shapes=[pltpu.VMEM((F, 1), jnp.float32)],
        ),
        compiler_params=pltpu.CompilerParams(
            # batch axis is independent (2nd TensorCore on v7x); the frame-block
            # axis carries the EMA recurrence and must stay sequential.
            dimension_semantics=("parallel", "arbitrary"),
        ),
    )(init, w, pvec, x_in)

    return out if T_pad == T else out[:, :, :T]


# --------------------------------------------------------------- reference ---

def exponential_unit_norm_ref(x, init_state, alpha):
    """Pure-JAX reference (lax.scan) mirroring the PyTorch frame loop."""
    B, F, T = x.shape
    x_abs = jnp.sqrt(jnp.maximum(x, 1e-10))
    state0 = jnp.broadcast_to(init_state, (B, F)).astype(jnp.float32)

    def step(state, xa_t):
        state = xa_t * (1.0 - alpha) + state * alpha
        return state, state

    _, states = lax.scan(step, state0, jnp.transpose(x_abs, (2, 0, 1)))
    states = jnp.transpose(states, (1, 2, 0))              # (B, F, T)
    return x / jnp.sqrt(states)


# -------------------------------------------------------------------- main ---

if __name__ == "__main__":
    # Module config
    decay = 3.0
    hop_size = 256
    n_freq = 128
    alpha = _get_norm_alpha(SAMPLE_RATE, hop_size, decay)

    # Small deterministic input: (n_batch, n_freq, n_frames), nonnegative
    # (magnitude-spectrogram-like).  T is deliberately NOT a multiple of the
    # block size to exercise the padded tail, multiple in-kernel sub-chunks,
    # and the carried state across grid steps.
    B, T = 2, 700
    key = jax.random.PRNGKey(0)
    x = jax.random.uniform(key, (B, n_freq, T), dtype=jnp.float32,
                           minval=0.0, maxval=2.0)

    init_state = make_init_state(n_freq)

    out = exponential_unit_norm(x, init_state, alpha)
    out = jax.block_until_ready(out)

    ref = exponential_unit_norm_ref(x, init_state, alpha)
    assert out.shape == x.shape and out.dtype == x.dtype
    assert jnp.allclose(out, ref, rtol=2e-4, atol=1e-5), (
        "mismatch vs reference: max abs err = "
        f"{jnp.max(jnp.abs(out - ref))}")

    print("KERNEL_OK")
</pallas_src>

<mosaic_0001>
module attributes {stable_mosaic.version = 11 : i64} {
  func.func @_expnorm_kernel(%arg0: i32, %arg1: i32, %arg2: memref<128x1xf32, #tpu.memory_space<vmem>>, %arg3: memref<128x128xf32, #tpu.memory_space<vmem>>, %arg4: memref<1x128xf32, #tpu.memory_space<vmem>>, %arg5: memref<1x128x512xf32, #tpu.memory_space<vmem>>, %arg6: memref<1x128x512xf32, #tpu.memory_space<vmem>>, %arg7: memref<128x1xf32, #tpu.memory_space<vmem>>) attributes {dimension_semantics = [#tpu.dimension_semantics<parallel>, #tpu.dimension_semantics<arbitrary>], iteration_bounds = array<i64: 2, 2>, scalar_prefetch = 0 : i64, scratch_operands = 1 : i64, tpu.core_type = #tpu.core_type<tc>, window_params = [{pipeline_mode = #tpu.pipeline_mode<synchronous>, transform_indices = @transform_0, window_bounds = array<i64: 128, 1>}, {pipeline_mode = #tpu.pipeline_mode<synchronous>, transform_indices = @transform_1, window_bounds = array<i64: 128, 128>}, {pipeline_mode = #tpu.pipeline_mode<synchronous>, transform_indices = @transform_2, window_bounds = array<i64: 1, 128>}, {transform_indices = @transform_3, window_bounds = array<i64: 1, 128, 512>}, {transform_indices = @transform_4, window_bounds = array<i64: 1, 128, 512>}]} {
    %c0_i32 = arith.constant 0 : i32
    %0 = arith.cmpi eq, %arg1, %c0_i32 : i32
    %1 = arith.extui %0 : i1 to i32
    %c0_i32_0 = arith.constant 0 : i32
    %2 = arith.cmpi ne, %1, %c0_i32_0 : i32
    scf.if %2 {
      %c0_59 = arith.constant 0 : index
      %c0_60 = arith.constant 0 : index
      %99 = vector.load %arg2[%c0_59, %c0_60] : memref<128x1xf32, #tpu.memory_space<vmem>>, vector<128x1xf32>
      %c0_61 = arith.constant 0 : index
      %c0_62 = arith.constant 0 : index
      %100 = vector.load %arg7[%c0_61, %c0_62] : memref<128x1xf32, #tpu.memory_space<vmem>>, vector<128x1xf32>
      tpu.vector_store %arg7[%c0_61, %c0_62], %99 {strides = array<i32>} : memref<128x1xf32, #tpu.memory_space<vmem>>, vector<128x1xf32>,
    } else {
    }
    %c0_i32_1 = arith.constant 0 : i32
    %c128_i32 = arith.constant 128 : i32
    %3 = arith.muli %c0_i32_1, %c128_i32 : i32
    %4 = tpu.assume_multiple %3, 128 : i32
    %c0 = arith.constant 0 : index
    %c0_2 = arith.constant 0 : index
    %5 = arith.index_cast %4 : i32 to index
    %6 = vector.load %arg5[%c0, %c0_2, %5] : memref<1x128x512xf32, #tpu.memory_space<vmem>>, vector<1x128x128xf32>
    %7 = vector.shape_cast %6 : vector<1x128x128xf32> to vector<128x128xf32>
    %cst = arith.constant 1.000000e-10 : f32
    %8 = vector.broadcast %cst : f32 to vector<128x128xf32>
    %9 = arith.maximumf %7, %8 : vector<128x128xf32>
    %10 = math.sqrt %9 : vector<128x128xf32>
    %c0_3 = arith.constant 0 : index
    %c0_4 = arith.constant 0 : index
    %11 = vector.load %arg3[%c0_3, %c0_4] : memref<128x128xf32, #tpu.memory_space<vmem>>, vector<128x128xf32>
    %cst_5 = arith.constant dense<0.000000e+00> : vector<128x128xf32>
    %12 = tpu.matmul %10, %11, %cst_5 {dimension_numbers = #tpu.dot_dimension_numbers<[1], [0], [0], [1], [0, 0, 1, 1], [], []>, precision = #tpu.contract_precision<fp32>} : vector<128x128xf32>, vector<128x128xf32>, vector<128x128xf32> -> vector<128x128xf32>
    %c0_6 = arith.constant 0 : index
    %c0_7 = arith.constant 0 : index
    %13 = vector.load %arg7[%c0_6, %c0_7] : memref<128x1xf32, #tpu.memory_space<vmem>>, vector<128x1xf32>
    %c0_8 = arith.constant 0 : index
    %c0_9 = arith.constant 0 : index
    %14 = vector.load %arg4[%c0_8, %c0_9] : memref<1x128xf32, #tpu.memory_space<vmem>>, vector<1x128xf32>
    %15 = vector.broadcast %13 : vector<128x1xf32> to vector<128x128xf32>
    %16 = vector.broadcast %14 : vector<1x128xf32> to vector<128x128xf32>
    %17 = arith.mulf %15, %16 : vector<128x128xf32>
    %18 = arith.addf %12, %17 : vector<128x128xf32>
    %19 = vector.extract_strided_slice %18 {offsets = [0, 127], sizes = [128, 1], strides = [1, 1]} : vector<128x128xf32> to vector<128x1xf32>
    %c0_10 = arith.constant 0 : index
    %c0_11 = arith.constant 0 : index
    %20 = vector.load %arg7[%c0_10, %c0_11] : memref<128x1xf32, #tpu.memory_space<vmem>>, vector<128x1xf32>
    tpu.vector_store %arg7[%c0_10, %c0_11], %19 {strides = array<i32>} : memref<128x1xf32, #tpu.memory_space<vmem>>, vector<128x1xf32>,
    %21 = math.rsqrt %18 : vector<128x128xf32>
    %22 = arith.mulf %7, %21 : vector<128x128xf32>
    %c0_12 = arith.constant 0 : index
    %c0_13 = arith.constant 0 : index
    %23 = arith.index_cast %4 : i32 to index
    %24 = vector.load %arg6[%c0_12, %c0_13, %23] : memref<1x128x512xf32, #tpu.memory_space<vmem>>, vector<1x128x128xf32>
    %25 = vector.shape_cast %24 : vector<1x128x128xf32> to vector<128x128xf32>
    %26 = vector.shape_cast %22 : vector<128x128xf32> to vector<1x128x128xf32>
    tpu.vector_store %arg6[%c0_12, %c0_13, %23], %26 {strides = array<i32>} : memref<1x128x512xf32, #tpu.memory_space<vmem>>, vector<1x128x128xf32>,
    %c1_i32 = arith.constant 1 : i32
    %c128_i32_14 = arith.constant 128 : i32
    %27 = arith.muli %c1_i32, %c128_i32_14 : i32
    %28 = tpu.assume_multiple %27, 128 : i32
    %c0_15 = arith.constant 0 : index
    %c0_16 = arith.constant 0 : index
    %29 = arith.index_cast %28 : i32 to index
    %30 = vector.load %arg5[%c0_15, %c0_16, %29] : memref<1x128x512xf32, #tpu.memory_space<vmem>>, vector<1x128x128xf32>
    %31 = vector.shape_cast %30 : vector<1x128x128xf32> to vector<128x128xf32>
    %cst_17 = arith.constant 1.000000e-10 : f32
    %32 = vector.broadcast %cst_17 : f32 to vector<128x128xf32>
    %33 = arith.maximumf %31, %32 : vector<128x128xf32>
    %34 = math.sqrt %33 : vector<128x128xf32>
    %c0_18 = arith.constant 0 : index
    %c0_19 = arith.constant 0 : index
    %35 = vector.load %arg3[%c0_18, %c0_19] : memref<128x128xf32, #tpu.memory_space<vmem>>, vector<128x128xf32>
    %cst_20 = arith.constant dense<0.000000e+00> : vector<128x128xf32>
    %36 = tpu.matmul %34, %35, %cst_20 {dimension_numbers = #tpu.dot_dimension_numbers<[1], [0], [0], [1], [0, 0, 1, 1], [], []>, precision = #tpu.contract_precision<fp32>} : vector<128x128xf32>, vector<128x128xf32>, vector<128x128xf32> -> vector<128x128xf32>
    %c0_21 = arith.constant 0 : index
    %c0_22 = arith.constant 0 : index
    %37 = vector.load %arg7[%c0_21, %c0_22] : memref<128x1xf32, #tpu.memory_space<vmem>>, vector<128x1xf32>
    %c0_23 = arith.constant 0 : index
    %c0_24 = arith.constant 0 : index
    %38 = vector.load %arg4[%c0_23, %c0_24] : memref<1x128xf32, #tpu.memory_space<vmem>>, vector<1x128xf32>
    %39 = vector.broadcast %37 : vector<128x1xf32> to vector<128x128xf32>
    %40 = vector.broadcast %38 : vector<1x128xf32> to vector<128x128xf32>
    %41 = arith.mulf %39, %40 : vector<128x128xf32>
    %42 = arith.addf %36, %41 : vector<128x128xf32>
    %43 = vector.extract_strided_slice %42 {offsets = [0, 127], sizes = [128, 1], strides = [1, 1]} : vector<128x128xf32> to vector<128x1xf32>
    %c0_25 = arith.constant 0 : index
    %c0_26 = arith.constant 0 : index
    %44 = vector.load %arg7[%c0_25, %c0_26] : memref<128x1xf32, #tpu.memory_space<vmem>>, vector<128x1xf32>
    tpu.vector_store %arg7[%c0_25, %c0_26], %43 {strides = array<i32>} : memref<128x1xf32, #tpu.memory_space<vmem>>, vector<128x1xf32>,
    %45 = math.rsqrt %42 : vector<128x128xf32>
    %46 = arith.mulf %31, %45 : vector<128x128xf32>
    %c0_27 = arith.constant 0 : index
    %c0_28 = arith.constant 0 : index
    %47 = arith.index_cast %28 : i32 to index
    %48 = vector.load %arg6[%c0_27, %c0_28, %47] : memref<1x128x512xf32, #tpu.memory_space<vmem>>, vector<1x128x128xf32>
    %49 = vector.shape_cast %48 : vector<1x128x128xf32> to vector<128x128xf32>
    %50 = vector.shape_cast %46 : vector<128x128xf32> to vector<1x128x128xf32>
    tpu.vector_store %arg6[%c0_27, %c0_28, %47], %50 {strides = array<i32>} : memref<1x128x512xf32, #tpu.memory_space<vmem>>, vector<1x128x128xf32>,
    %c2_i32 = arith.constant 2 : i32
    %c128_i32_29 = arith.constant 128 : i32
    %51 = arith.muli %c2_i32, %c128_i32_29 : i32
    %52 = tpu.assume_multiple %51, 128 : i32
    %c0_30 = arith.constant 0 : index
    %c0_31 = arith.constant 0 : index
    %53 = arith.index_cast %52 : i32 to index
    %54 = vector.load %arg5[%c0_30, %c0_31, %53] : memref<1x128x512xf32, #tpu.memory_space<vmem>>, vector<1x128x128xf32>
    %55 = vector.shape_cast %54 : vector<1x128x128xf32> to vector<128x128xf32>
    %cst_32 = arith.constant 1.000000e-10 : f32
    %56 = vector.broadcast %cst_32 : f32 to vector<128x128xf32>
    %57 = arith.maximumf %55, %56 : vector<128x128xf32>
    %58 = math.sqrt %57 : vector<128x128xf32>
    %c0_33 = arith.constant 0 : index
    %c0_34 = arith.constant 0 : index
    %59 = vector.load %arg3[%c0_33, %c0_34] : memref<128x128xf32, #tpu.memory_space<vmem>>, vector<128x128xf32>
    %cst_35 = arith.constant dense<0.000000e+00> : vector<128x128xf32>
    %60 = tpu.matmul %58, %59, %cst_35 {dimension_numbers = #tpu.dot_dimension_numbers<[1], [0], [0], [1], [0, 0, 1, 1], [], []>, precision = #tpu.contract_precision<fp32>} : vector<128x128xf32>, vector<128x128xf32>, vector<128x128xf32> -> vector<128x128xf32>
    %c0_36 = arith.constant 0 : index
    %c0_37 = arith.constant 0 : index
    %61 = vector.load %arg7[%c0_36, %c0_37] : memref<128x1xf32, #tpu.memory_space<vmem>>, vector<128x1xf32>
    %c0_38 = arith.constant 0 : index
    %c0_39 = arith.constant 0 : index
    %62 = vector.load %arg4[%c0_38, %c0_39] : memref<1x128xf32, #tpu.memory_space<vmem>>, vector<1x128xf32>
    %63 = vector.broadcast %61 : vector<128x1xf32> to vector<128x128xf32>
    %64 = vector.broadcast %62 : vector<1x128xf32> to vector<128x128xf32>
    %65 = arith.mulf %63, %64 : vector<128x128xf32>
    %66 = arith.addf %60, %65 : vector<128x128xf32>
    %67 = vector.extract_strided_slice %66 {offsets = [0, 127], sizes = [128, 1], strides = [1, 1]} : vector<128x128xf32> to vector<128x1xf32>
    %c0_40 = arith.constant 0 : index
    %c0_41 = arith.constant 0 : index
    %68 = vector.load %arg7[%c0_40, %c0_41] : memref<128x1xf32, #tpu.memory_space<vmem>>, vector<128x1xf32>
    tpu.vector_store %arg7[%c0_40, %c0_41], %67 {strides = array<i32>} : memref<128x1xf32, #tpu.memory_space<vmem>>, vector<128x1xf32>,
    %69 = math.rsqrt %66 : vector<128x128xf32>
    %70 = arith.mulf %55, %69 : vector<128x128xf32>
    %c0_42 = arith.constant 0 : index
    %c0_43 = arith.constant 0 : index
    %71 = arith.index_cast %52 : i32 to index
    %72 = vector.load %arg6[%c0_42, %c0_43, %71] : memref<1x128x512xf32, #tpu.memory_space<vmem>>, vector<1x128x128xf32>
    %73 = vector.shape_cast %72 : vector<1x128x128xf32> to vector<128x128xf32>
    %74 = vector.shape_cast %70 : vector<128x128xf32> to vector<1x128x128xf32>
    tpu.vector_store %arg6[%c0_42, %c0_43, %71], %74 {strides = array<i32>} : memref<1x128x512xf32, #tpu.memory_space<vmem>>, vector<1x128x128xf32>,
    %c3_i32 = arith.constant 3 : i32
    %c128_i32_44 = arith.constant 128 : i32
    %75 = arith.muli %c3_i32, %c128_i32_44 : i32
    %76 = tpu.assume_multiple %75, 128 : i32
    %c0_45 = arith.constant 0 : index
    %c0_46 = arith.constant 0 : index
    %77 = arith.index_cast %76 : i32 to index
    %78 = vector.load %arg5[%c0_45, %c0_46, %77] : memref<1x128x512xf32, #tpu.memory_space<vmem>>, vector<1x128x128xf32>
    %79 = vector.shape_cast %78 : vector<1x128x128xf32> to vector<128x128xf32>
    %cst_47 = arith.constant 1.000000e-10 : f32
    %80 = vector.broadcast %cst_47 : f32 to vector<128x128xf32>
    %81 = arith.maximumf %79, %80 : vector<128x128xf32>
    %82 = math.sqrt %81 : vector<128x128xf32>
    %c0_48 = arith.constant 0 : index
    %c0_49 = arith.constant 0 : index
    %83 = vector.load %arg3[%c0_48, %c0_49] : memref<128x128xf32, #tpu.memory_space<vmem>>, vector<128x128xf32>
    %cst_50 = arith.constant dense<0.000000e+00> : vector<128x128xf32>
    %84 = tpu.matmul %82, %83, %cst_50 {dimension_numbers = #tpu.dot_dimension_numbers<[1], [0], [0], [1], [0, 0, 1, 1], [], []>, precision = #tpu.contract_precision<fp32>} : vector<128x128xf32>, vector<128x128xf32>, vector<128x128xf32> -> vector<128x128xf32>
    %c0_51 = arith.constant 0 : index
    %c0_52 = arith.constant 0 : index
    %85 = vector.load %arg7[%c0_51, %c0_52] : memref<128x1xf32, #tpu.memory_space<vmem>>, vector<128x1xf32>
    %c0_53 = arith.constant 0 : index
    %c0_54 = arith.constant 0 : index
    %86 = vector.load %arg4[%c0_53, %c0_54] : memref<1x128xf32, #tpu.memory_space<vmem>>, vector<1x128xf32>
    %87 = vector.broadcast %85 : vector<128x1xf32> to vector<128x128xf32>
    %88 = vector.broadcast %86 : vector<1x128xf32> to vector<128x128xf32>
    %89 = arith.mulf %87, %88 : vector<128x128xf32>
    %90 = arith.addf %84, %89 : vector<128x128xf32>
    %91 = vector.extract_strided_slice %90 {offsets = [0, 127], sizes = [128, 1], strides = [1, 1]} : vector<128x128xf32> to vector<128x1xf32>
    %c0_55 = arith.constant 0 : index
    %c0_56 = arith.constant 0 : index
    %92 = vector.load %arg7[%c0_55, %c0_56] : memref<128x1xf32, #tpu.memory_space<vmem>>, vector<128x1xf32>
    tpu.vector_store %arg7[%c0_55, %c0_56], %91 {strides = array<i32>} : memref<128x1xf32, #tpu.memory_space<vmem>>, vector<128x1xf32>,
    %93 = math.rsqrt %90 : vector<128x128xf32>
    %94 = arith.mulf %79, %93 : vector<128x128xf32>
    %c0_57 = arith.constant 0 : index
    %c0_58 = arith.constant 0 : index
    %95 = arith.index_cast %76 : i32 to index
    %96 = vector.load %arg6[%c0_57, %c0_58, %95] : memref<1x128x512xf32, #tpu.memory_space<vmem>>, vector<1x128x128xf32>
    %97 = vector.shape_cast %96 : vector<1x128x128xf32> to vector<128x128xf32>
    %98 = vector.shape_cast %94 : vector<128x128xf32> to vector<1x128x128xf32>
    tpu.vector_store %arg6[%c0_57, %c0_58, %95], %98 {strides = array<i32>} : memref<1x128x512xf32, #tpu.memory_space<vmem>>, vector<1x128x128xf32>,
    %c4_i32 = arith.constant 4 : i32
    return
  }
  func.func @transform_0(%arg0: i32, %arg1: i32) -> (i32, i32) {
    %c0_i32 = arith.constant 0 : i32
    %c0_i32_0 = arith.constant 0 : i32
    %c0_i32_1 = arith.constant 0 : i32
    return %c0_i32, %c0_i32_0 : i32, i32
  }
  func.func @transform_1(%arg0: i32, %arg1: i32) -> (i32, i32) {
    %c0_i32 = arith.constant 0 : i32
    %c0_i32_0 = arith.constant 0 : i32
    %c0_i32_1 = arith.constant 0 : i32
    return %c0_i32, %c0_i32_0 : i32, i32
  }
  func.func @transform_2(%arg0: i32, %arg1: i32) -> (i32, i32) {
    %c0_i32 = arith.constant 0 : i32
    %c0_i32_0 = arith.constant 0 : i32
    %c0_i32_1 = arith.constant 0 : i32
    return %c0_i32, %c0_i32_0 : i32, i32
  }
  func.func @transform_3(%arg0: i32, %arg1: i32) -> (i32, i32, i32) {
    %c0_i32 = arith.constant 0 : i32
    %c0_i32_0 = arith.constant 0 : i32
    return %arg0, %c0_i32, %arg1 : i32, i32, i32
  }
  func.func @transform_4(%arg0: i32, %arg1: i32) -> (i32, i32, i32) {
    %c0_i32 = arith.constant 0 : i32
    %c0_i32_0 = arith.constant 0 : i32
    return %arg0, %c0_i32, %arg1 : i32, i32, i32
  }
}

</mosaic_0001>

<llo_original>
// kernel: tpu_custom_call.1
$region0: #{tpu_custom_call.1}
  #allocation0 [shape = 'u32[]', space=smem, size = 0x4, offset = 0x4, fixed_abs, tag = 'smem constant byte address 0x4 - core index']
  #allocation1 [shape = 'u32[72,128]{1,0:T(1,128)}', space=vmem, size = 0x9000, scoped, tag = 'internal scratch']
  #allocation2 [shape = 'f32[128,1]{1,0:T(8,128)}', space=vmem, size = 0x10000, scoped, tag = 'scratch operand']
  %s0 = inlined_call_operand.vmem [shape: f32[128,1], index: 0, kind: input, shape index: {}]
  %s1 = inlined_call_operand.vmem [shape: f32[128,128], index: 1, kind: input, shape index: {}]
  %s2 = inlined_call_operand.vmem [shape: f32[1,128], index: 2, kind: input, shape index: {}]
  %s3 = inlined_call_operand.hbm [shape: f32[2,128,1024], index: 3, kind: input, shape index: {}]
  %s4 = inlined_call_operand.hbm [shape: f32[2,128,1024], index: 4, kind: output, shape index: {}]
  %s5 = sld [smem:[#allocation0]]
  $region57: #{tpu_custom_call.1} parent=0
    _
  %s7 = ssub.s32 1, %s5
  %s8 = scalar_select 0, %s7, %s5
  $region1: #{tpu_custom_call.1} parent=0
    #allocation3 [shape = 'u8[524288]{0}', space=vmem, size = 0x80000, scoped, tag = 'input window, operand 3']
    #allocation4 [shape = 's32[2]{0}', space=sflag, size = 0x8, scoped, tag = 'scoped memory for tpu_custom_call.1']
    #allocation5 [shape = 's32[2]{0}', space=sflag, size = 0x8, scoped, tag = 'scoped memory for tpu_custom_call.1']
    #allocation6 [shape = 'u8[524288]{0}', space=vmem, size = 0x80000, scoped, tag = 'output window, operand 0']
    %9 = vsyncpa [#allocation4], 0
    %s10 = scalar_lea.sflag [#allocation4], 1
    %11 = vsyncpa %s10, 0
    %12 = vsyncpa [#allocation5], 0
    %s13 = scalar_lea.sflag [#allocation5], 1
    %14 = vsyncpa %s13, 0
    loop: start=0, step=1, limit=6
    $region2: #{tpu_custom_call.1} parent=1 // loop_pre_header
      _
    $region3: #{tpu_custom_call.1} parent=1 // loop_header
      %s16 = sphi 0, %s20
      %p17 = scmp.ge.s32.totalorder %s16, 6
      %s23 = sphi 0, %s35
      %s24 = sphi 0, %s31
      %s25 = sphi 0, %s23
      %s26 = sphi 0, %s24
      %s27 = sphi 0, %s25
      %s28 = sphi 0, %s26
      %s36 = sphi 0, %s36
      %s38 = sphi 0, %s36
      %s39 = sphi 0, %s38
      %s53 = sphi 0, %s39
      %s57 = sphi 0, %s57
      %s59 = sphi 0, %s57
      %s60 = sphi 0, %s59
      %s74 = sphi 0, %s60
      %s78 = sphi 0, %s78
      %s80 = sphi 0, %s78
      %s81 = sphi 0, %s80
      %s95 = sphi 0, %s81
      %s103 = sphi 0, %s105
      %s106 = sphi 0, %s103
      %s107 = sphi 0, %s106
      %s123 = sphi 0, %s107
      %s131 = sphi 0, %s133
      %s134 = sphi 0, %s131
      %s135 = sphi 0, %s134
      %s151 = sphi 0, %s135
    $region4: #{tpu_custom_call.1} parent=1 // loop_header_branch
      %19 = sbr.rel (%p17) target = $region8
    $region5: #{tpu_custom_call.1} parent=1 // loop_body
      %s21 = ssub.s32 %s16, 1
      %s22 = ssub.s32 %s16, 2
      %s29 = sadd.s32 1, %s24
      %p30 = scmp.ge.s32.totalorder %s29, 2
      %s31 = scalar_select %p30, 0, %s29
      %s32 = sadd.s32 1, %s23
      %s33 = scalar_select %p30, %s32, %s23
      %p34 = scmp.ge.s32.totalorder %s33, 2
      %s35 = scalar_select %p34, 0, %s33
      %s37 = sadd.s32 %s36, 1
      %p40 = scmp.eq.s32.totalorder %s16, 3
      %p41 = scmp.ne.s32.totalorder %s36, %s38
      %p42 = scmp.eq.s32.totalorder %s16, 0
      %p43 = por %p41, %p42
      %p44 = scmp.ne.s32.totalorder %s36, %s38
      %p45 = scmp.eq.s32.totalorder %s21, 3
      %p46 = por %p44, %p45
      %p47 = scmp.ne.s32.totalorder %s38, %s39
      %p48 = scmp.eq.s32.totalorder %s21, 0
      %p49 = por %p47, %p48
      %p50 = scmp.ne.s32.totalorder %s38, %s39
      %p51 = scmp.eq.s32.totalorder %s22, 3
      %p52 = por %p50, %p51
      %p54 = scmp.ne.s32.totalorder %s39, %s53
      %p55 = scmp.eq.s32.totalorder %s22, 0
      %p56 = por %p54, %p55
      %s58 = sadd.s32 %s57, 1
      %p61 = scmp.eq.s32.totalorder %s16, 3
      %p62 = scmp.ne.s32.totalorder %s57, %s59
      %p63 = scmp.eq.s32.totalorder %s16, 0
      %p64 = por %p62, %p63
      %p65 = scmp.ne.s32.totalorder %s57, %s59
      %p66 = scmp.eq.s32.totalorder %s21, 3
      %p67 = por %p65, %p66
      %p68 = scmp.ne.s32.totalorder %s59, %s60
      %p69 = scmp.eq.s32.totalorder %s21, 0
      %p70 = por %p68, %p69
      %p71 = scmp.ne.s32.totalorder %s59, %s60
      %p72 = scmp.eq.s32.totalorder %s22, 3
      %p73 = por %p71, %p72
      %p75 = scmp.ne.s32.totalorder %s60, %s74
      %p76 = scmp.eq.s32.totalorder %s22, 0
      %p77 = por %p75, %p76
      %s79 = sadd.s32 %s78, 1
      %p82 = scmp.eq.s32.totalorder %s16, 3
      %p83 = scmp.ne.s32.totalorder %s78, %s80
      %p84 = scmp.eq.s32.totalorder %s16, 0
      %p85 = por %p83, %p84
      %p86 = scmp.ne.s32.totalorder %s78, %s80
      %p87 = scmp.eq.s32.totalorder %s21, 3
      %p88 = por %p86, %p87
      %p89 = scmp.ne.s32.totalorder %s80, %s81
      %p90 = scmp.eq.s32.totalorder %s21, 0
      %p91 = por %p89, %p90
      %p92 = scmp.ne.s32.totalorder %s80, %s81
      %p93 = scmp.eq.s32.totalorder %s22, 3
      %p94 = por %p92, %p93
      %p96 = scmp.ne.s32.totalorder %s81, %s95
      %p97 = scmp.eq.s32.totalorder %s22, 0
      %p98 = por %p96, %p97
      %s99 = ssub.s32 %s23, %s35
      %s100 = ssub.s32 %s24, %s31
      %s101 = sor.u32 %s99, %s100
      %p102 = scmp.eq.s32.totalorder %s101, 0
      %s104 = sadd.s32 %s103, 1
      %s105 = scalar_select %p102, %s103, %s104
      %p108 = pneg %p102
      %p109 = scmp.eq.s32.totalorder %s16, 3
      %p110 = por %p108, %p109
      %p111 = scmp.ne.s32.totalorder %s103, %s106
      %p112 = scmp.eq.s32.totalorder %s16, 0
      %p113 = por %p111, %p112
      %p114 = scmp.ne.s32.totalorder %s103, %s106
      %p115 = scmp.eq.s32.totalorder %s21, 3
      %p116 = por %p114, %p115
      %p117 = scmp.ne.s32.totalorder %s106, %s107
      %p118 = scmp.eq.s32.totalorder %s21, 0
      %p119 = por %p117, %p118
      %p120 = scmp.ne.s32.totalorder %s106, %s107
      %p121 = scmp.eq.s32.totalorder %s22, 3
      %p122 = por %p120, %p121
      %p124 = scmp.ne.s32.totalorder %s107, %s123
      %p125 = scmp.eq.s32.totalorder %s22, 0
      %p126 = por %p124, %p125
      %s127 = ssub.s32 %s23, %s35
      %s128 = ssub.s32 %s24, %s31
      %s129 = sor.u32 %s127, %s128
      %p130 = scmp.eq.s32.totalorder %s129, 0
      %s132 = sadd.s32 %s131, 1
      %s133 = scalar_select %p130, %s131, %s132
      %p136 = pneg %p130
      %p137 = scmp.eq.s32.totalorder %s16, 3
      %p138 = por %p136, %p137
      %p139 = scmp.ne.s32.totalorder %s131, %s134
      %p140 = scmp.eq.s32.totalorder %s16, 0
      %p141 = por %p139, %p140
      %p142 = scmp.ne.s32.totalorder %s131, %s134
      %p143 = scmp.eq.s32.totalorder %s21, 3
      %p144 = por %p142, %p143
      %p145 = scmp.ne.s32.totalorder %s134, %s135
      %p146 = scmp.eq.s32.totalorder %s21, 0
      %p147 = por %p145, %p146
      %p148 = scmp.ne.s32.totalorder %s134, %s135
      %p149 = scmp.eq.s32.totalorder %s22, 3
      %p150 = por %p148, %p149
      %p152 = scmp.ne.s32.totalorder %s135, %s151
      %p153 = scmp.eq.s32.totalorder %s22, 0
      %p154 = por %p152, %p153
      %p155 = scmp.le.s32.totalorder 1, %s16
      %p156 = scmp.lt.s32.totalorder %s16, 5
      %p157 = pnand %p155, %p156
      %p158 = pneg %p157
      // Predicated region
      $region9: #{tpu_custom_call.1} parent=5 // pred_check
        _
      $region10: #{tpu_custom_call.1} parent=5 // pred_check_branch
        %160 = sbr.rel (%p157) target = $region12
      $region11: #{tpu_custom_call.1} parent=5 // pred_region
        %s161 = ssub.s32 %s16, 1
        // Predicated region
        $region13: #{tpu_custom_call.1} parent=11 // pred_check
          %p162 = pneg %p49
        $region14: #{tpu_custom_call.1} parent=11 // pred_check_branch
          %164 = sbr.rel (%p162) target = $region16
        $region15: #{tpu_custom_call.1} parent=11 // pred_region
          _
        $region16: #{tpu_custom_call.1} parent=11 // pred_fallthru
          _
        // Predicated region
        $region17: #{tpu_custom_call.1} parent=11 // pred_check
          %p165 = pneg %p70
        $region18: #{tpu_custom_call.1} parent=11 // pred_check_branch
          %167 = sbr.rel (%p165) target = $region20
        $region19: #{tpu_custom_call.1} parent=11 // pred_region
          _
        $region20: #{tpu_custom_call.1} parent=11 // pred_fallthru
          _
        // Predicated region
        $region21: #{tpu_custom_call.1} parent=11 // pred_check
          %p168 = pneg %p91
        $region22: #{tpu_custom_call.1} parent=11 // pred_check_branch
          %170 = sbr.rel (%p168) target = $region24
        $region23: #{tpu_custom_call.1} parent=11 // pred_region
          _
        $region24: #{tpu_custom_call.1} parent=11 // pred_fallthru
          _
      $region12: #{tpu_custom_call.1} parent=5 // pred_fallthru
        _
      %p171 = scmp.lt.s32.totalorder %s16, 4
      // Predicated region
      $region25: #{tpu_custom_call.1} parent=5 // pred_check
        %p172 = pneg %p171
      $region26: #{tpu_custom_call.1} parent=5 // pred_check_branch
        %174 = sbr.rel (%p172) target = $region28
      $region27: #{tpu_custom_call.1} parent=5 // pred_region
        // Predicated region
        $region29: #{tpu_custom_call.1} parent=27 // pred_check
          %p175 = pneg %p113
        $region30: #{tpu_custom_call.1} parent=27 // pred_check_branch
          %177 = sbr.rel (%p175) target = $region32
        $region31: #{tpu_custom_call.1} parent=27 // pred_region
          %s178 = sand.u32 %s103, 1
          %s179 = scalar_lea.sflag [#allocation4], %s178
          %s180 = sand.u32 %s103, 1
          %s181 = smul.addr %s180, 512
          %s182 = scalar_lea.vmem [#allocation3], %s181
          %s183 = smul.u32 4, %s24
          %185 = vsyncadd %s179, 0
          %s186 = smul.addr %s23, 128
          %s187 = sadd.s32 %s183, %s186
          %s188 = smul.addr %s187, 8
          %s189 = scalar_lea.hbm %s3, %s188
          %s190 = sshll.u32 %s189, 4
          %s191 = int_to_ptr.hbm [resolvable:$true] %s190
          %s192 = sshll.u32 %s182, 4
          %s193 = int_to_ptr.vmem [resolvable:$true] %s192
          %198 = dma.hbm_to_vmem [thread:$0]  %s191, 8192, %s193, %s179, 1024, 512, 32
        $region32: #{tpu_custom_call.1} parent=27 // pred_fallthru
          _
      $region28: #{tpu_custom_call.1} parent=5 // pred_fallthru
        _
      %p199 = scmp.le.s32.totalorder 1, %s16
      %p200 = scmp.lt.s32.totalorder %s16, 5
      %p201 = pnand %p199, %p200
      %p202 = pneg %p201
      // Predicated region
      $region33: #{tpu_custom_call.1} parent=5 // pred_check
        _
      $region34: #{tpu_custom_call.1} parent=5 // pred_check_branch
        %204 = sbr.rel (%p201) target = $region36
      $region35: #{tpu_custom_call.1} parent=5 // pred_region
        %s205 = ssub.s32 %s16, 1
        %s206 = sand.u32 %s106, 1
        %s207 = scalar_lea.sflag [#allocation4], %s206
        %s208 = sand.u32 %s106, 1
        %s209 = smul.addr %s208, 512
        %s210 = scalar_lea.vmem [#allocation3], %s209
        // Predicated region
        $region37: #{tpu_custom_call.1} parent=35 // pred_check
          %p211 = pneg %p119
        $region38: #{tpu_custom_call.1} parent=35 // pred_check_branch
          %213 = sbr.rel (%p211) target = $region40
        $region39: #{tpu_custom_call.1} parent=35 // pred_region
          %215 = dma.done %s207, 8192
        $region40: #{tpu_custom_call.1} parent=35 // pred_fallthru
          _
        %p216 = pneg %p49
        %p217 = pneg %p46
        %p218 = pneg %p70
        %p219 = pneg %p67
        %p220 = pneg %p91
        %p221 = pneg %p88
        %s222 = sand.u32 %s106, 1
        %s223 = scalar_lea.sflag [#allocation4], %s222
        %s224 = sand.u32 %s106, 1
        %s225 = smul.addr %s224, 512
        %s226 = scalar_lea.vmem [#allocation3], %s225
        %p227 = pneg %p119
        %p228 = pneg %p116
        %p229 = pneg %p147
        %p230 = pneg %p144
        %s231 = sand.u32 %s134, 1
        %s232 = scalar_lea.sflag [#allocation5], %s231
        %s233 = sand.u32 %s134, 1
        %s234 = smul.addr %s233, 512
        %s235 = scalar_lea.vmem [#allocation6], %s234
        %s236 = smul.u32 4, %s26
        %s237 = smul.u32 4, %s26
        %p238 = scmp.eq.s32.totalorder %s26, 0
        // Predicated region
        $region41: #{tpu_custom_call.1} parent=35 // pred_check
          %p239 = pneg %p238
        $region42: #{tpu_custom_call.1} parent=35 // pred_check_branch
          %241 = sbr.rel (%p239) target = $region44
        $region43: #{tpu_custom_call.1} parent=35 // pred_region
          %v242 = vld [vmem:[%s0] sm:$0xff]
          %v243 = vld [vmem:[%s0 + $0x8] sm:$0xff]
          %v244 = vld [vmem:[%s0 + $0x10] sm:$0xff]
          %v245 = vld [vmem:[%s0 + $0x18] sm:$0xff]
          %v246 = vld [vmem:[%s0 + $0x20] sm:$0xff]
          %v247 = vld [vmem:[%s0 + $0x28] sm:$0xff]
          %v248 = vld [vmem:[%s0 + $0x30] sm:$0xff]
          %v249 = vld [vmem:[%s0 + $0x38] sm:$0xff]
          %v250 = vld [vmem:[%s0 + $0x40] sm:$0xff]
          %v251 = vld [vmem:[%s0 + $0x48] sm:$0xff]
          %v252 = vld [vmem:[%s0 + $0x50] sm:$0xff]
          %v253 = vld [vmem:[%s0 + $0x58] sm:$0xff]
          %v254 = vld [vmem:[%s0 + $0x60] sm:$0xff]
          %v255 = vld [vmem:[%s0 + $0x68] sm:$0xff]
          %v256 = vld [vmem:[%s0 + $0x70] sm:$0xff]
          %v257 = vld [vmem:[%s0 + $0x78] sm:$0xff]
          %vm258 = vcmask 7168
          %259 = vst.msk [vmem:[#allocation2] sm:$0xff] %vm258, %v242
          %260 = vst.msk [vmem:[#allocation2 + $0x8] sm:$0xff] %vm258, %v243
          %261 = vst.msk [vmem:[#allocation2 + $0x10] sm:$0xff] %vm258, %v244
          %262 = vst.msk [vmem:[#allocation2 + $0x18] sm:$0xff] %vm258, %v245
          %263 = vst.msk [vmem:[#allocation2 + $0x20] sm:$0xff] %vm258, %v246
          %264 = vst.msk [vmem:[#allocation2 + $0x28] sm:$0xff] %vm258, %v247
          %265 = vst.msk [vmem:[#allocation2 + $0x30] sm:$0xff] %vm258, %v248
          %266 = vst.msk [vmem:[#allocation2 + $0x38] sm:$0xff] %vm258, %v249
          %267 = vst.msk [vmem:[#allocation2 + $0x40] sm:$0xff] %vm258, %v250
          %268 = vst.msk [vmem:[#allocation2 + $0x48] sm:$0xff] %vm258, %v251
          %269 = vst.msk [vmem:[#allocation2 + $0x50] sm:$0xff] %vm258, %v252
          %270 = vst.msk [vmem:[#allocation2 + $0x58] sm:$0xff] %vm258, %v253
          %271 = vst.msk [vmem:[#allocation2 + $0x60] sm:$0xff] %vm258, %v254
          %272 = vst.msk [vmem:[#allocation2 + $0x68] sm:$0xff] %vm258, %v255
          %273 = vst.msk [vmem:[#allocation2 + $0x70] sm:$0xff] %vm258, %v256
          %274 = vst.msk [vmem:[#allocation2 + $0x78] sm:$0xff] %vm258, %v257
        $region44: #{tpu_custom_call.1} parent=35 // pred_fallthru
          _
        %v275 = vld [vmem:[%s210] sm:$0xff]
        %v276 = vld [vmem:[%s210 + $0x20] sm:$0xff]
        %v277 = vld [vmem:[%s210 + $0x40] sm:$0xff]
        %v278 = vld [vmem:[%s210 + $0x60] sm:$0xff]
        %v279 = vld [vmem:[%s210 + $0x80] sm:$0xff]
        %v280 = vld [vmem:[%s210 + $0xa0] sm:$0xff]
        %v281 = vld [vmem:[%s210 + $0xc0] sm:$0xff]
        %v282 = vld [vmem:[%s210 + $0xe0] sm:$0xff]
        %v283 = vld [vmem:[%s210 + $0x100] sm:$0xff]
        %v284 = vld [vmem:[%s210 + $0x120] sm:$0xff]
        %v285 = vld [vmem:[%s210 + $0x140] sm:$0xff]
        %v286 = vld [vmem:[%s210 + $0x160] sm:$0xff]
        %v287 = vld [vmem:[%s210 + $0x180] sm:$0xff]
        %v288 = vld [vmem:[%s210 + $0x1a0] sm:$0xff]
        %v289 = vld [vmem:[%s210 + $0x1c0] sm:$0xff]
        %v290 = vld [vmem:[%s210 + $0x1e0] sm:$0xff]
        %v291 = vmax.f32 %v275, 1e-10
        %v292 = vmax.f32 %v276, 1e-10
        %v293 = vmax.f32 %v277, 1e-10
        %v294 = vmax.f32 %v278, 1e-10
        %v295 = vmax.f32 %v279, 1e-10
        %v296 = vmax.f32 %v280, 1e-10
        %v297 = vmax.f32 %v281, 1e-10
        %v298 = vmax.f32 %v282, 1e-10
        %v299 = vmax.f32 %v283, 1e-10
        %v300 = vmax.f32 %v284, 1e-10
        %v301 = vmax.f32 %v285, 1e-10
        %v302 = vmax.f32 %v286, 1e-10
        %v303 = vmax.f32 %v287, 1e-10
        %v304 = vmax.f32 %v288, 1e-10
        %v305 = vmax.f32 %v289, 1e-10
        %v306 = vmax.f32 %v290, 1e-10
        %v307 = vrsqrt.pop %v291
        %v308 = vmul.f32 %v307, %v291
        %v309 = vmul.f32 %v308, %v307
        %v310 = vmul.f32 0.5, %v309
        %v311 = vsub.f32 1.5, %v310
        %v312 = vmul.f32 %v307, %v311
        %v313 = vmul.f32 %v291, %v312
        %vm314 = vcmp.eq.f32.partialorder %v291, inf
        %v315 = vsel %vm314, %v291, %v313
        %vm316 = vcmp.eq.f32.partialorder %v291, 0.0
        %v317 = vand.u32 %v291, 2147483648
        %v318 = vsel %vm316, %v317, %v315
        %v319 = vrsqrt.pop %v292
        %v320 = vmul.f32 %v319, %v292
        %v321 = vmul.f32 %v320, %v319
        %v322 = vmul.f32 0.5, %v321
        %v323 = vsub.f32 1.5, %v322
        %v324 = vmul.f32 %v319, %v323
        %v325 = vmul.f32 %v292, %v324
        %vm326 = vcmp.eq.f32.partialorder %v292, inf
        %v327 = vsel %vm326, %v292, %v325
        %vm328 = vcmp.eq.f32.partialorder %v292, 0.0
        %v329 = vand.u32 %v292, 2147483648
        %v330 = vsel %vm328, %v329, %v327
        %v331 = vrsqrt.pop %v293
        %v332 = vmul.f32 %v331, %v293
        %v333 = vmul.f32 %v332, %v331
        %v334 = vmul.f32 0.5, %v333
        %v335 = vsub.f32 1.5, %v334
        %v336 = vmul.f32 %v331, %v335
        %v337 = vmul.f32 %v293, %v336
        %vm338 = vcmp.eq.f32.partialorder %v293, inf
        %v339 = vsel %vm338, %v293, %v337
        %vm340 = vcmp.eq.f32.partialorder %v293, 0.0
        %v341 = vand.u32 %v293, 2147483648
        %v342 = vsel %vm340, %v341, %v339
        %v343 = vrsqrt.pop %v294
        %v344 = vmul.f32 %v343, %v294
        %v345 = vmul.f32 %v344, %v343
        %v346 = vmul.f32 0.5, %v345
        %v347 = vsub.f32 1.5, %v346
        %v348 = vmul.f32 %v343, %v347
        %v349 = vmul.f32 %v294, %v348
        %vm350 = vcmp.eq.f32.partialorder %v294, inf
        %v351 = vsel %vm350, %v294, %v349
        %vm352 = vcmp.eq.f32.partialorder %v294, 0.0
        %v353 = vand.u32 %v294, 2147483648
        %v354 = vsel %vm352, %v353, %v351
        %v355 = vrsqrt.pop %v295
        %v356 = vmul.f32 %v355, %v295
        %v357 = vmul.f32 %v356, %v355
        %v358 = vmul.f32 0.5, %v357
        %v359 = vsub.f32 1.5, %v358
        %v360 = vmul.f32 %v355, %v359
        %v361 = vmul.f32 %v295, %v360
        %vm362 = vcmp.eq.f32.partialorder %v295, inf
        %v363 = vsel %vm362, %v295, %v361
        %vm364 = vcmp.eq.f32.partialorder %v295, 0.0
        %v365 = vand.u32 %v295, 2147483648
        %v366 = vsel %vm364, %v365, %v363
        %v367 = vrsqrt.pop %v296
        %v368 = vmul.f32 %v367, %v296
        %v369 = vmul.f32 %v368, %v367
        %v370 = vmul.f32 0.5, %v369
        %v371 = vsub.f32 1.5, %v370
        %v372 = vmul.f32 %v367, %v371
        %v373 = vmul.f32 %v296, %v372
        %vm374 = vcmp.eq.f32.partialorder %v296, inf
        %v375 = vsel %vm374, %v296, %v373
        %vm376 = vcmp.eq.f32.partialorder %v296, 0.0
        %v377 = vand.u32 %v296, 2147483648
        %v378 = vsel %vm376, %v377, %v375
        %v379 = vrsqrt.pop %v297
        %v380 = vmul.f32 %v379, %v297
        %v381 = vmul.f32 %v380, %v379
        %v382 = vmul.f32 0.5, %v381
        %v383 = vsub.f32 1.5, %v382
        %v384 = vmul.f32 %v379, %v383
        %v385 = vmul.f32 %v297, %v384
        %vm386 = vcmp.eq.f32.partialorder %v297, inf
        %v387 = vsel %vm386, %v297, %v385
        %vm388 = vcmp.eq.f32.partialorder %v297, 0.0
        %v389 = vand.u32 %v297, 2147483648
        %v390 = vsel %vm388, %v389, %v387
        %v391 = vrsqrt.pop %v298
        %v392 = vmul.f32 %v391, %v298
        %v393 = vmul.f32 %v392, %v391
        %v394 = vmul.f32 0.5, %v393
        %v395 = vsub.f32 1.5, %v394
        %v396 = vmul.f32 %v391, %v395
        %v397 = vmul.f32 %v298, %v396
        %vm398 = vcmp.eq.f32.partialorder %v298, inf
        %v399 = vsel %vm398, %v298, %v397
        %vm400 = vcmp.eq.f32.partialorder %v298, 0.0
        %v401 = vand.u32 %v298, 2147483648
        %v402 = vsel %vm400, %v401, %v399
        %v403 = vrsqrt.pop %v299
        %v404 = vmul.f32 %v403, %v299
        %v405 = vmul.f32 %v404, %v403
        %v406 = vmul.f32 0.5, %v405
        %v407 = vsub.f32 1.5, %v406
        %v408 = vmul.f32 %v403, %v407
        %v409 = vmul.f32 %v299, %v408
        %vm410 = vcmp.eq.f32.partialorder %v299, inf
        %v411 = vsel %vm410, %v299, %v409
        %vm412 = vcmp.eq.f32.partialorder %v299, 0.0
        %v413 = vand.u32 %v299, 2147483648
        %v414 = vsel %vm412, %v413, %v411
        %v415 = vrsqrt.pop %v300
        %v416 = vmul.f32 %v415, %v300
        %v417 = vmul.f32 %v416, %v415
        %v418 = vmul.f32 0.5, %v417
        %v419 = vsub.f32 1.5, %v418
        %v420 = vmul.f32 %v415, %v419
        %v421 = vmul.f32 %v300, %v420
        %vm422 = vcmp.eq.f32.partialorder %v300, inf
        %v423 = vsel %vm422, %v300, %v421
        %vm424 = vcmp.eq.f32.partialorder %v300, 0.0
        %v425 = vand.u32 %v300, 2147483648
        %v426 = vsel %vm424, %v425, %v423
        %v427 = vrsqrt.pop %v301
        %v428 = vmul.f32 %v427, %v301
        %v429 = vmul.f32 %v428, %v427
        %v430 = vmul.f32 0.5, %v429
        %v431 = vsub.f32 1.5, %v430
        %v432 = vmul.f32 %v427, %v431
        %v433 = vmul.f32 %v301, %v432
        %vm434 = vcmp.eq.f32.partialorder %v301, inf
        %v435 = vsel %vm434, %v301, %v433
        %vm436 = vcmp.eq.f32.partialorder %v301, 0.0
        %v437 = vand.u32 %v301, 2147483648
        %v438 = vsel %vm436, %v437, %v435
        %v439 = vrsqrt.pop %v302
        %v440 = vmul.f32 %v439, %v302
        %v441 = vmul.f32 %v440, %v439
        %v442 = vmul.f32 0.5, %v441
        %v443 = vsub.f32 1.5, %v442
        %v444 = vmul.f32 %v439, %v443
        %v445 = vmul.f32 %v302, %v444
        %vm446 = vcmp.eq.f32.partialorder %v302, inf
        %v447 = vsel %vm446, %v302, %v445
        %vm448 = vcmp.eq.f32.partialorder %v302, 0.0
        %v449 = vand.u32 %v302, 2147483648
        %v450 = vsel %vm448, %v449, %v447
        %v451 = vrsqrt.pop %v303
        %v452 = vmul.f32 %v451, %v303
        %v453 = vmul.f32 %v452, %v451
        %v454 = vmul.f32 0.5, %v453
        %v455 = vsub.f32 1.5, %v454
        %v456 = vmul.f32 %v451, %v455
        %v457 = vmul.f32 %v303, %v456
        %vm458 = vcmp.eq.f32.partialorder %v303, inf
        %v459 = vsel %vm458, %v303, %v457
        %vm460 = vcmp.eq.f32.partialorder %v303, 0.0
        %v461 = vand.u32 %v303, 2147483648
        %v462 = vsel %vm460, %v461, %v459
        %v463 = vrsqrt.pop %v304
        %v464 = vmul.f32 %v463, %v304
        %v465 = vmul.f32 %v464, %v463
        %v466 = vmul.f32 0.5, %v465
        %v467 = vsub.f32 1.5, %v466
        %v468 = vmul.f32 %v463, %v467
        %v469 = vmul.f32 %v304, %v468
        %vm470 = vcmp.eq.f32.partialorder %v304, inf
        %v471 = vsel %vm470, %v304, %v469
        %vm472 = vcmp.eq.f32.partialorder %v304, 0.0
        %v473 = vand.u32 %v304, 2147483648
        %v474 = vsel %vm472, %v473, %v471
        %v475 = vrsqrt.pop %v305
        %v476 = vmul.f32 %v475, %v305
        %v477 = vmul.f32 %v476, %v475
        %v478 = vmul.f32 0.5, %v477
        %v479 = vsub.f32 1.5, %v478
        %v480 = vmul.f32 %v475, %v479
        %v481 = vmul.f32 %v305, %v480
        %vm482 = vcmp.eq.f32.partialorder %v305, inf
        %v483 = vsel %vm482, %v305, %v481
        %vm484 = vcmp.eq.f32.partialorder %v305, 0.0
        %v485 = vand.u32 %v305, 2147483648
        %v486 = vsel %vm484, %v485, %v483
        %v487 = vrsqrt.pop %v306
        %v488 = vmul.f32 %v487, %v306
        %v489 = vmul.f32 %v488, %v487
        %v490 = vmul.f32 0.5, %v489
        %v491 = vsub.f32 1.5, %v490
        %v492 = vmul.f32 %v487, %v491
        %v493 = vmul.f32 %v306, %v492
        %vm494 = vcmp.eq.f32.partialorder %v306, inf
        %v495 = vsel %vm494, %v306, %v493
        %vm496 = vcmp.eq.f32.partialorder %v306, 0.0
        %v497 = vand.u32 %v306, 2147483648
        %v498 = vsel %vm496, %v497, %v495
        %v499 = vld [vmem:[%s1] sm:$0xff]
        %v500 = vld [vmem:[%s1 + $0x8] sm:$0xff]
        %v501 = vld [vmem:[%s1 + $0x10] sm:$0xff]
        %v502 = vld [vmem:[%s1 + $0x18] sm:$0xff]
        %v503 = vld [vmem:[%s1 + $0x20] sm:$0xff]
        %v504 = vld [vmem:[%s1 + $0x28] sm:$0xff]
        %v505 = vld [vmem:[%s1 + $0x30] sm:$0xff]
        %v506 = vld [vmem:[%s1 + $0x38] sm:$0xff]
        %v507 = vld [vmem:[%s1 + $0x40] sm:$0xff]
        %v508 = vld [vmem:[%s1 + $0x48] sm:$0xff]
        %v509 = vld [vmem:[%s1 + $0x50] sm:$0xff]
        %v510 = vld [vmem:[%s1 + $0x58] sm:$0xff]
        %v511 = vld [vmem:[%s1 + $0x60] sm:$0xff]
        %v512 = vld [vmem:[%s1 + $0x68] sm:$0xff]
        %v513 = vld [vmem:[%s1 + $0x70] sm:$0xff]
        %v514 = vld [vmem:[%s1 + $0x78] sm:$0xff]
        %v515 = vld [vmem:[#allocation2] sm:$0xff]
        %v516 = vld [vmem:[#allocation2 + $0x8] sm:$0xff]
        %v517 = vld [vmem:[#allocation2 + $0x10] sm:$0xff]
        %v518 = vld [vmem:[#allocation2 + $0x18] sm:$0xff]
        %v519 = vld [vmem:[#allocation2 + $0x20] sm:$0xff]
        %v520 = vld [vmem:[#allocation2 + $0x28] sm:$0xff]
        %v521 = vld [vmem:[#allocation2 + $0x30] sm:$0xff]
        %v522 = vld [vmem:[#allocation2 + $0x38] sm:$0xff]
        %v523 = vld [vmem:[#allocation2 + $0x40] sm:$0xff]
        %v524 = vld [vmem:[#allocation2 + $0x48] sm:$0xff]
        %v525 = vld [vmem:[#allocation2 + $0x50] sm:$0xff]
        %v526 = vld [vmem:[#allocation2 + $0x58] sm:$0xff]
        %v527 = vld [vmem:[#allocation2 + $0x60] sm:$0xff]
        %v528 = vld [vmem:[#allocation2 + $0x68] sm:$0xff]
        %v529 = vld [vmem:[#allocation2 + $0x70] sm:$0xff]
        %v530 = vld [vmem:[#allocation2 + $0x78] sm:$0xff]
        %v531 = vld [vmem:[%s2] sm:$0x1]
        %533 = vset.pattern.permute.xlu0 0
        %534 = vperm.xlu0 %533, %v515
        %v535 = vpop.permute.xlu0 %534
        %538 = vset.pattern.permute.xlu0 0
        %539 = vperm.xlu0 %538, %v516
        %v540 = vpop.permute.xlu0 %539
        %543 = vset.pattern.permute.xlu0 0
        %544 = vperm.xlu0 %543, %v517
        %v545 = vpop.permute.xlu0 %544
        %548 = vset.pattern.permute.xlu0 0
        %549 = vperm.xlu0 %548, %v518
        %v550 = vpop.permute.xlu0 %549
        %553 = vset.pattern.permute.xlu0 0
        %554 = vperm.xlu0 %553, %v519
        %v555 = vpop.permute.xlu0 %554
        %558 = vset.pattern.permute.xlu0 0
        %559 = vperm.xlu0 %558, %v520
        %v560 = vpop.permute.xlu0 %559
        %563 = vset.pattern.permute.xlu0 0
        %564 = vperm.xlu0 %563, %v521
        %v565 = vpop.permute.xlu0 %564
        %568 = vset.pattern.permute.xlu0 0
        %569 = vperm.xlu0 %568, %v522
        %v570 = vpop.permute.xlu0 %569
        %573 = vset.pattern.permute.xlu0 0
        %574 = vperm.xlu0 %573, %v523
        %v575 = vpop.permute.xlu0 %574
        %578 = vset.pattern.permute.xlu0 0
        %579 = vperm.xlu0 %578, %v524
        %v580 = vpop.permute.xlu0 %579
        %583 = vset.pattern.permute.xlu0 0
        %584 = vperm.xlu0 %583, %v525
        %v585 = vpop.permute.xlu0 %584
        %588 = vset.pattern.permute.xlu0 0
        %589 = vperm.xlu0 %588, %v526
        %v590 = vpop.permute.xlu0 %589
        %593 = vset.pattern.permute.xlu0 0
        %594 = vperm.xlu0 %593, %v527
        %v595 = vpop.permute.xlu0 %594
        %598 = vset.pattern.permute.xlu0 0
        %599 = vperm.xlu0 %598, %v528
        %v600 = vpop.permute.xlu0 %599
        %603 = vset.pattern.permute.xlu0 0
        %604 = vperm.xlu0 %603, %v529
        %v605 = vpop.permute.xlu0 %604
        %608 = vset.pattern.permute.xlu0 0
        %609 = vperm.xlu0 %608, %v530
        %v610 = vpop.permute.xlu0 %609
        %v613 = vperm.slane %v531, 0
        %v615 = vmul.f32 %v535, %v613
        %v616 = vmul.f32 %v540, %v613
        %v617 = vmul.f32 %v545, %v613
        %v618 = vmul.f32 %v550, %v613
        %v619 = vmul.f32 %v555, %v613
        %v620 = vmul.f32 %v560, %v613
        %v621 = vmul.f32 %v565, %v613
        %v622 = vmul.f32 %v570, %v613
        %v623 = vmul.f32 %v575, %v613
        %v624 = vmul.f32 %v580, %v613
        %v625 = vmul.f32 %v585, %v613
        %v626 = vmul.f32 %v590, %v613
        %v627 = vmul.f32 %v595, %v613
        %v628 = vmul.f32 %v600, %v613
        %v629 = vmul.f32 %v605, %v613
        %v630 = vmul.f32 %v610, %v613
        %v631 = vand.u32 %v514, 4294901760
        %632 = vmatpush.msra.mxu0 %v631
        %v633 = vand.u32 %v513, 4294901760
        %634 = vmatpush.msra.mxu0 %v633
        %v635 = vand.u32 %v512, 4294901760
        %636 = vmatpush.msra.mxu0 %v635
        %v637 = vand.u32 %v511, 4294901760
        %638 = vmatpush.msra.mxu0 %v637
        %v639 = vand.u32 %v510, 4294901760
        %640 = vmatpush.msra.mxu0 %v639
        %v641 = vand.u32 %v509, 4294901760
        %642 = vmatpush.msra.mxu0 %v641
        %v643 = vand.u32 %v508, 4294901760
        %644 = vmatpush.msra.mxu0 %v643
        %v645 = vand.u32 %v507, 4294901760
        %646 = vmatpush.msra.mxu0 %v645
        %v647 = vand.u32 %v506, 4294901760
        %648 = vmatpush.msra.mxu0 %v647
        %v649 = vand.u32 %v505, 4294901760
        %650 = vmatpush.msra.mxu0 %v649
        %v651 = vand.u32 %v504, 4294901760
        %652 = vmatpush.msra.mxu0 %v651
        %v653 = vand.u32 %v503, 4294901760
        %654 = vmatpush.msra.mxu0 %v653
        %v655 = vand.u32 %v502, 4294901760
        %656 = vmatpush.msra.mxu0 %v655
        %v657 = vand.u32 %v501, 4294901760
        %658 = vmatpush.msra.mxu0 %v657
        %v659 = vand.u32 %v500, 4294901760
        %660 = vmatpush.msra.mxu0 %v659
        %v661 = vand.u32 %v499, 4294901760
        %662 = vmatpush.msra.mxu0 %v661
        %v663 = vand.u32 %v318, 4294901760
        %v664 = vsub.f32 %v318, %v663
        %v665 = vand.u32 %v664, 4294901760
        %v666 = vsub.f32 %v664, %v665
        %v667 = vand.u32 %v666, 4294901760
        %668 = vmatmul.f32.gmra.mxu0 %v667
        %v669 = vpop.f32.mrf.mxu0
        %v670 = vadd.f32 %v615, %v669
        %v671 = vand.u32 %v330, 4294901760
        %v672 = vsub.f32 %v330, %v671
        %v673 = vand.u32 %v672, 4294901760
        %v674 = vsub.f32 %v672, %v673
        %v675 = vand.u32 %v674, 4294901760
        %676 = vmatmul.f32.gmra.mxu0 %v675
        %v677 = vpop.f32.mrf.mxu0
        %v678 = vadd.f32 %v616, %v677
        %v679 = vand.u32 %v342, 4294901760
        %v680 = vsub.f32 %v342, %v679
        %v681 = vand.u32 %v680, 4294901760
        %v682 = vsub.f32 %v680, %v681
        %v683 = vand.u32 %v682, 4294901760
        %684 = vmatmul.f32.gmra.mxu0 %v683
        %v685 = vpop.f32.mrf.mxu0
        %v686 = vadd.f32 %v617, %v685
        %v687 = vand.u32 %v354, 4294901760
        %v688 = vsub.f32 %v354, %v687
        %v689 = vand.u32 %v688, 4294901760
        %v690 = vsub.f32 %v688, %v689
        %v691 = vand.u32 %v690, 4294901760
        %692 = vmatmul.f32.gmra.mxu0 %v691
        %v693 = vpop.f32.mrf.mxu0
        %v694 = vadd.f32 %v618, %v693
        %v695 = vand.u32 %v366, 4294901760
        %v696 = vsub.f32 %v366, %v695
        %v697 = vand.u32 %v696, 4294901760
        %v698 = vsub.f32 %v696, %v697
        %v699 = vand.u32 %v698, 4294901760
        %700 = vmatmul.f32.gmra.mxu0 %v699
        %v701 = vpop.f32.mrf.mxu0
        %v702 = vadd.f32 %v619, %v701
        %v703 = vand.u32 %v378, 4294901760
        %v704 = vsub.f32 %v378, %v703
        %v705 = vand.u32 %v704, 4294901760
        %v706 = vsub.f32 %v704, %v705
        %v707 = vand.u32 %v706, 4294901760
        %708 = vmatmul.f32.gmra.mxu0 %v707
        %v709 = vpop.f32.mrf.mxu0
        %v710 = vadd.f32 %v620, %v709
        %v711 = vand.u32 %v390, 4294901760
        %v712 = vsub.f32 %v390, %v711
        %v713 = vand.u32 %v712, 4294901760
        %v714 = vsub.f32 %v712, %v713
        %v715 = vand.u32 %v714, 4294901760
        %716 = vmatmul.f32.gmra.mxu0 %v715
        %v717 = vpop.f32.mrf.mxu0
        %v718 = vadd.f32 %v621, %v717
        %v719 = vand.u32 %v402, 4294901760
        %v720 = vsub.f32 %v402, %v719
        %v721 = vand.u32 %v720, 4294901760
        %v722 = vsub.f32 %v720, %v721
        %v723 = vand.u32 %v722, 4294901760
        %724 = vmatmul.f32.gmra.mxu0 %v723
        %v725 = vpop.f32.mrf.mxu0
        %v726 = vadd.f32 %v622, %v725
        %v727 = vand.u32 %v414, 4294901760
        %v728 = vsub.f32 %v414, %v727
        %v729 = vand.u32 %v728, 4294901760
        %v730 = vsub.f32 %v728, %v729
        %v731 = vand.u32 %v730, 4294901760
        %732 = vmatmul.f32.gmra.mxu0 %v731
        %v733 = vpop.f32.mrf.mxu0
        %v734 = vadd.f32 %v623, %v733
        %v735 = vand.u32 %v426, 4294901760
        %v736 = vsub.f32 %v426, %v735
        %v737 = vand.u32 %v736, 4294901760
        %v738 = vsub.f32 %v736, %v737
        %v739 = vand.u32 %v738, 4294901760
        %740 = vmatmul.f32.gmra.mxu0 %v739
        %v741 = vpop.f32.mrf.mxu0
        %v742 = vadd.f32 %v624, %v741
        %v743 = vand.u32 %v438, 4294901760
        %v744 = vsub.f32 %v438, %v743
        %v745 = vand.u32 %v744, 4294901760
        %v746 = vsub.f32 %v744, %v745
        %v747 = vand.u32 %v746, 4294901760
        %748 = vmatmul.f32.gmra.mxu0 %v747
        %v749 = vpop.f32.mrf.mxu0
        %v750 = vadd.f32 %v625, %v749
        %v751 = vand.u32 %v450, 4294901760
        %v752 = vsub.f32 %v450, %v751
        %v753 = vand.u32 %v752, 4294901760
        %v754 = vsub.f32 %v752, %v753
        %v755 = vand.u32 %v754, 4294901760
        %756 = vmatmul.f32.gmra.mxu0 %v755
        %v757 = vpop.f32.mrf.mxu0
        %v758 = vadd.f32 %v626, %v757
        %v759 = vand.u32 %v462, 4294901760
        %v760 = vsub.f32 %v462, %v759
        %v761 = vand.u32 %v760, 4294901760
        %v762 = vsub.f32 %v760, %v761
        %v763 = vand.u32 %v762, 4294901760
        %764 = vmatmul.f32.gmra.mxu0 %v763
        %v765 = vpop.f32.mrf.mxu0
        %v766 = vadd.f32 %v627, %v765
        %v767 = vand.u32 %v474, 4294901760
        %v768 = vsub.f32 %v474, %v767
        %v769 = vand.u32 %v768, 4294901760
        %v770 = vsub.f32 %v768, %v769
        %v771 = vand.u32 %v770, 4294901760
        %772 = vmatmul.f32.gmra.mxu0 %v771
        %v773 = vpop.f32.mrf.mxu0
        %v774 = vadd.f32 %v628, %v773
        %v775 = vand.u32 %v486, 4294901760
        %v776 = vsub.f32 %v486, %v775
        %v777 = vand.u32 %v776, 4294901760
        %v778 = vsub.f32 %v776, %v777
        %v779 = vand.u32 %v778, 4294901760
        %780 = vmatmul.f32.gmra.mxu0 %v779
        %v781 = vpop.f32.mrf.mxu0
        %v782 = vadd.f32 %v629, %v781
        %v783 = vand.u32 %v498, 4294901760
        %v784 = vsub.f32 %v498, %v783
        %v785 = vand.u32 %v784, 4294901760
        %v786 = vsub.f32 %v784, %v785
        %v787 = vand.u32 %v786, 4294901760
        %788 = vmatmul.f32.gmra.mxu0 %v787
        %v789 = vpop.f32.mrf.mxu0
        %v790 = vadd.f32 %v630, %v789
        %791 = vdwg.mxu0
        %v792 = vand.u32 %v514, 4294901760
        %v793 = vsub.f32 %v514, %v792
        %v794 = vand.u32 %v793, 4294901760
        %v795 = vsub.f32 %v793, %v794
        %v796 = vand.u32 %v795, 4294901760
        %797 = vmatpush.msra.mxu0 %v796
        %v798 = vand.u32 %v513, 4294901760
        %v799 = vsub.f32 %v513, %v798
        %v800 = vand.u32 %v799, 4294901760
        %v801 = vsub.f32 %v799, %v800
        %v802 = vand.u32 %v801, 4294901760
        %803 = vmatpush.msra.mxu0 %v802
        %v804 = vand.u32 %v512, 4294901760
        %v805 = vsub.f32 %v512, %v804
        %v806 = vand.u32 %v805, 4294901760
        %v807 = vsub.f32 %v805, %v806
        %v808 = vand.u32 %v807, 4294901760
        %809 = vmatpush.msra.mxu0 %v808
        %v810 = vand.u32 %v511, 4294901760
        %v811 = vsub.f32 %v511, %v810
        %v812 = vand.u32 %v811, 4294901760
        %v813 = vsub.f32 %v811, %v812
        %v814 = vand.u32 %v813, 4294901760
        %815 = vmatpush.msra.mxu0 %v814
        %v816 = vand.u32 %v510, 4294901760
        %v817 = vsub.f32 %v510, %v816
        %v818 = vand.u32 %v817, 4294901760
        %v819 = vsub.f32 %v817, %v818
        %v820 = vand.u32 %v819, 4294901760
        %821 = vmatpush.msra.mxu0 %v820
        %v822 = vand.u32 %v509, 4294901760
        %v823 = vsub.f32 %v509, %v822
        %v824 = vand.u32 %v823, 4294901760
        %v825 = vsub.f32 %v823, %v824
        %v826 = vand.u32 %v825, 4294901760
        %827 = vmatpush.msra.mxu0 %v826
        %v828 = vand.u32 %v508, 4294901760
        %v829 = vsub.f32 %v508, %v828
        %v830 = vand.u32 %v829, 4294901760
        %v831 = vsub.f32 %v829, %v830
        %v832 = vand.u32 %v831, 4294901760
        %833 = vmatpush.msra.mxu0 %v832
        %v834 = vand.u32 %v507, 4294901760
        %v835 = vsub.f32 %v507, %v834
        %v836 = vand.u32 %v835, 4294901760
        %v837 = vsub.f32 %v835, %v836
        %v838 = vand.u32 %v837, 4294901760
        %839 = vmatpush.msra.mxu0 %v838
        %v840 = vand.u32 %v506, 4294901760
        %v841 = vsub.f32 %v506, %v840
        %v842 = vand.u32 %v841, 4294901760
        %v843 = vsub.f32 %v841, %v842
        %v844 = vand.u32 %v843, 4294901760
        %845 = vmatpush.msra.mxu0 %v844
        %v846 = vand.u32 %v505, 4294901760
        %v847 = vsub.f32 %v505, %v846
        %v848 = vand.u32 %v847, 4294901760
        %v849 = vsub.f32 %v847, %v848
        %v850 = vand.u32 %v849, 4294901760
        %851 = vmatpush.msra.mxu0 %v850
        %v852 = vand.u32 %v504, 4294901760
        %v853 = vsub.f32 %v504, %v852
        %v854 = vand.u32 %v853, 4294901760
        %v855 = vsub.f32 %v853, %v854
        %v856 = vand.u32 %v855, 4294901760
        %857 = vmatpush.msra.mxu0 %v856
        %v858 = vand.u32 %v503, 4294901760
        %v859 = vsub.f32 %v503, %v858
        %v860 = vand.u32 %v859, 4294901760
        %v861 = vsub.f32 %v859, %v860
        %v862 = vand.u32 %v861, 4294901760
        %863 = vmatpush.msra.mxu0 %v862
        %v864 = vand.u32 %v502, 4294901760
        %v865 = vsub.f32 %v502, %v864
        %v866 = vand.u32 %v865, 4294901760
        %v867 = vsub.f32 %v865, %v866
        %v868 = vand.u32 %v867, 4294901760
        %869 = vmatpush.msra.mxu0 %v868
        %v870 = vand.u32 %v501, 4294901760
        %v871 = vsub.f32 %v501, %v870
        %v872 = vand.u32 %v871, 4294901760
        %v873 = vsub.f32 %v871, %v872
        %v874 = vand.u32 %v873, 4294901760
        %875 = vmatpush.msra.mxu0 %v874
        %v876 = vand.u32 %v500, 4294901760
        %v877 = vsub.f32 %v500, %v876
        %v878 = vand.u32 %v877, 4294901760
        %v879 = vsub.f32 %v877, %v878
        %v880 = vand.u32 %v879, 4294901760
        %881 = vmatpush.msra.mxu0 %v880
        %v882 = vand.u32 %v499, 4294901760
        %v883 = vsub.f32 %v499, %v882
        %v884 = vand.u32 %v883, 4294901760
        %v885 = vsub.f32 %v883, %v884
        %v886 = vand.u32 %v885, 4294901760
        %887 = vmatpush.msra.mxu0 %v886
        %v888 = vand.u32 %v318, 4294901760
        %889 = vmatmul.f32.gmra.mxu0 %v888
        %v890 = vpop.f32.mrf.mxu0
        %v891 = vadd.f32 %v670, %v890
        %v892 = vand.u32 %v330, 4294901760
        %893 = vmatmul.f32.gmra.mxu0 %v892
        %v894 = vpop.f32.mrf.mxu0
        %v895 = vadd.f32 %v678, %v894
        %v896 = vand.u32 %v342, 4294901760
        %897 = vmatmul.f32.gmra.mxu0 %v896
        %v898 = vpop.f32.mrf.mxu0
        %v899 = vadd.f32 %v686, %v898
        %v900 = vand.u32 %v354, 4294901760
        %901 = vmatmul.f32.gmra.mxu0 %v900
        %v902 = vpop.f32.mrf.mxu0
        %v903 = vadd.f32 %v694, %v902
        %v904 = vand.u32 %v366, 4294901760
        %905 = vmatmul.f32.gmra.mxu0 %v904
        %v906 = vpop.f32.mrf.mxu0
        %v907 = vadd.f32 %v702, %v906
        %v908 = vand.u32 %v378, 4294901760
        %909 = vmatmul.f32.gmra.mxu0 %v908
        %v910 = vpop.f32.mrf.mxu0
        %v911 = vadd.f32 %v710, %v910
        %v912 = vand.u32 %v390, 4294901760
        %913 = vmatmul.f32.gmra.mxu0 %v912
        %v914 = vpop.f32.mrf.mxu0
        %v915 = vadd.f32 %v718, %v914
        %v916 = vand.u32 %v402, 4294901760
        %917 = vmatmul.f32.gmra.mxu0 %v916
        %v918 = vpop.f32.mrf.mxu0
        %v919 = vadd.f32 %v726, %v918
        %v920 = vand.u32 %v414, 4294901760
        %921 = vmatmul.f32.gmra.mxu0 %v920
        %v922 = vpop.f32.mrf.mxu0
        %v923 = vadd.f32 %v734, %v922
        %v924 = vand.u32 %v426, 4294901760
        %925 = vmatmul.f32.gmra.mxu0 %v924
        %v926 = vpop.f32.mrf.mxu0
        %v927 = vadd.f32 %v742, %v926
        %v928 = vand.u32 %v438, 4294901760
        %929 = vmatmul.f32.gmra.mxu0 %v928
        %v930 = vpop.f32.mrf.mxu0
        %v931 = vadd.f32 %v750, %v930
        %v932 = vand.u32 %v450, 4294901760
        %933 = vmatmul.f32.gmra.mxu0 %v932
        %v934 = vpop.f32.mrf.mxu0
        %v935 = vadd.f32 %v758, %v934
        %v936 = vand.u32 %v462, 4294901760
        %937 = vmatmul.f32.gmra.mxu0 %v936
        %v938 = vpop.f32.mrf.mxu0
        %v939 = vadd.f32 %v766, %v938
        %v940 = vand.u32 %v474, 4294901760
        %941 = vmatmul.f32.gmra.mxu0 %v940
        %v942 = vpop.f32.mrf.mxu0
        %v943 = vadd.f32 %v774, %v942
        %v944 = vand.u32 %v486, 4294901760
        %945 = vmatmul.f32.gmra.mxu0 %v944
        %v946 = vpop.f32.mrf.mxu0
        %v947 = vadd.f32 %v782, %v946
        %v948 = vand.u32 %v498, 4294901760
        %949 = vmatmul.f32.gmra.mxu0 %v948
        %v950 = vpop.f32.mrf.mxu0
        %v951 = vadd.f32 %v790, %v950
        %952 = vdwg.mxu0
        %v953 = vand.u32 %v514, 4294901760
        %v954 = vsub.f32 %v514, %v953
        %955 = vmatpush.msra.mxu0 %v954
        %v956 = vand.u32 %v513, 4294901760
        %v957 = vsub.f32 %v513, %v956
        %958 = vmatpush.msra.mxu0 %v957
        %v959 = vand.u32 %v512, 4294901760
        %v960 = vsub.f32 %v512, %v959
        %961 = vmatpush.msra.mxu0 %v960
        %v962 = vand.u32 %v511, 4294901760
        %v963 = vsub.f32 %v511, %v962
        %964 = vmatpush.msra.mxu0 %v963
        %v965 = vand.u32 %v510, 4294901760
        %v966 = vsub.f32 %v510, %v965
        %967 = vmatpush.msra.mxu0 %v966
        %v968 = vand.u32 %v509, 4294901760
        %v969 = vsub.f32 %v509, %v968
        %970 = vmatpush.msra.mxu0 %v969
        %v971 = vand.u32 %v508, 4294901760
        %v972 = vsub.f32 %v508, %v971
        %973 = vmatpush.msra.mxu0 %v972
        %v974 = vand.u32 %v507, 4294901760
        %v975 = vsub.f32 %v507, %v974
        %976 = vmatpush.msra.mxu0 %v975
        %v977 = vand.u32 %v506, 4294901760
        %v978 = vsub.f32 %v506, %v977
        %979 = vmatpush.msra.mxu0 %v978
        %v980 = vand.u32 %v505, 4294901760
        %v981 = vsub.f32 %v505, %v980
        %982 = vmatpush.msra.mxu0 %v981
        %v983 = vand.u32 %v504, 4294901760
        %v984 = vsub.f32 %v504, %v983
        %985 = vmatpush.msra.mxu0 %v984
        %v986 = vand.u32 %v503, 4294901760
        %v987 = vsub.f32 %v503, %v986
        %988 = vmatpush.msra.mxu0 %v987
        %v989 = vand.u32 %v502, 4294901760
        %v990 = vsub.f32 %v502, %v989
        %991 = vmatpush.msra.mxu0 %v990
        %v992 = vand.u32 %v501, 4294901760
        %v993 = vsub.f32 %v501, %v992
        %994 = vmatpush.msra.mxu0 %v993
        %v995 = vand.u32 %v500, 4294901760
        %v996 = vsub.f32 %v500, %v995
        %997 = vmatpush.msra.mxu0 %v996
        %v998 = vand.u32 %v499, 4294901760
        %v999 = vsub.f32 %v499, %v998
        %1000 = vmatpush.msra.mxu0 %v999
        %v1001 = vand.u32 %v318, 4294901760
        %v1002 = vsub.f32 %v318, %v1001
        %1003 = vmatmul.f32.gmra.mxu0 %v1002
        %v1004 = vpop.f32.mrf.mxu0
        %v1005 = vadd.f32 %v891, %v1004
        %v1006 = vand.u32 %v330, 4294901760
        %v1007 = vsub.f32 %v330, %v1006
        %1008 = vmatmul.f32.gmra.mxu0 %v1007
        %v1009 = vpop.f32.mrf.mxu0
        %v1010 = vadd.f32 %v895, %v1009
        %v1011 = vand.u32 %v342, 4294901760
        %v1012 = vsub.f32 %v342, %v1011
        %1013 = vmatmul.f32.gmra.mxu0 %v1012
        %v1014 = vpop.f32.mrf.mxu0
        %v1015 = vadd.f32 %v899, %v1014
        %v1016 = vand.u32 %v354, 4294901760
        %v1017 = vsub.f32 %v354, %v1016
        %1018 = vmatmul.f32.gmra.mxu0 %v1017
        %v1019 = vpop.f32.mrf.mxu0
        %v1020 = vadd.f32 %v903, %v1019
        %v1021 = vand.u32 %v366, 4294901760
        %v1022 = vsub.f32 %v366, %v1021
        %1023 = vmatmul.f32.gmra.mxu0 %v1022
        %v1024 = vpop.f32.mrf.mxu0
        %v1025 = vadd.f32 %v907, %v1024
        %v1026 = vand.u32 %v378, 4294901760
        %v1027 = vsub.f32 %v378, %v1026
        %1028 = vmatmul.f32.gmra.mxu0 %v1027
        %v1029 = vpop.f32.mrf.mxu0
        %v1030 = vadd.f32 %v911, %v1029
        %v1031 = vand.u32 %v390, 4294901760
        %v1032 = vsub.f32 %v390, %v1031
        %1033 = vmatmul.f32.gmra.mxu0 %v1032
        %v1034 = vpop.f32.mrf.mxu0
        %v1035 = vadd.f32 %v915, %v1034
        %v1036 = vand.u32 %v402, 4294901760
        %v1037 = vsub.f32 %v402, %v1036
        %1038 = vmatmul.f32.gmra.mxu0 %v1037
        %v1039 = vpop.f32.mrf.mxu0
        %v1040 = vadd.f32 %v919, %v1039
        %v1041 = vand.u32 %v414, 4294901760
        %v1042 = vsub.f32 %v414, %v1041
        %1043 = vmatmul.f32.gmra.mxu0 %v1042
        %v1044 = vpop.f32.mrf.mxu0
        %v1045 = vadd.f32 %v923, %v1044
        %v1046 = vand.u32 %v426, 4294901760
        %v1047 = vsub.f32 %v426, %v1046
        %1048 = vmatmul.f32.gmra.mxu0 %v1047
        %v1049 = vpop.f32.mrf.mxu0
        %v1050 = vadd.f32 %v927, %v1049
        %v1051 = vand.u32 %v438, 4294901760
        %v1052 = vsub.f32 %v438, %v1051
        %1053 = vmatmul.f32.gmra.mxu0 %v1052
        %v1054 = vpop.f32.mrf.mxu0
        %v1055 = vadd.f32 %v931, %v1054
        %v1056 = vand.u32 %v450, 4294901760
        %v1057 = vsub.f32 %v450, %v1056
        %1058 = vmatmul.f32.gmra.mxu0 %v1057
        %v1059 = vpop.f32.mrf.mxu0
        %v1060 = vadd.f32 %v935, %v1059
        %v1061 = vand.u32 %v462, 4294901760
        %v1062 = vsub.f32 %v462, %v1061
        %1063 = vmatmul.f32.gmra.mxu0 %v1062
        %v1064 = vpop.f32.mrf.mxu0
        %v1065 = vadd.f32 %v939, %v1064
        %v1066 = vand.u32 %v474, 4294901760
        %v1067 = vsub.f32 %v474, %v1066
        %1068 = vmatmul.f32.gmra.mxu0 %v1067
        %v1069 = vpop.f32.mrf.mxu0
        %v1070 = vadd.f32 %v943, %v1069
        %v1071 = vand.u32 %v486, 4294901760
        %v1072 = vsub.f32 %v486, %v1071
        %1073 = vmatmul.f32.gmra.mxu0 %v1072
        %v1074 = vpop.f32.mrf.mxu0
        %v1075 = vadd.f32 %v947, %v1074
        %v1076 = vand.u32 %v498, 4294901760
        %v1077 = vsub.f32 %v498, %v1076
        %1078 = vmatmul.f32.gmra.mxu0 %v1077
        %v1079 = vpop.f32.mrf.mxu0
        %v1080 = vadd.f32 %v951, %v1079
        %1081 = vdwg.mxu0
        %v1082 = vand.u32 %v514, 4294901760
        %1083 = vmatpush.msra.mxu0 %v1082
        %v1084 = vand.u32 %v513, 4294901760
        %1085 = vmatpush.msra.mxu0 %v1084
        %v1086 = vand.u32 %v512, 4294901760
        %1087 = vmatpush.msra.mxu0 %v1086
        %v1088 = vand.u32 %v511, 4294901760
        %1089 = vmatpush.msra.mxu0 %v1088
        %v1090 = vand.u32 %v510, 4294901760
        %1091 = vmatpush.msra.mxu0 %v1090
        %v1092 = vand.u32 %v509, 4294901760
        %1093 = vmatpush.msra.mxu0 %v1092
        %v1094 = vand.u32 %v508, 4294901760
        %1095 = vmatpush.msra.mxu0 %v1094
        %v1096 = vand.u32 %v507, 4294901760
        %1097 = vmatpush.msra.mxu0 %v1096
        %v1098 = vand.u32 %v506, 4294901760
        %1099 = vmatpush.msra.mxu0 %v1098
        %v1100 = vand.u32 %v505, 4294901760
        %1101 = vmatpush.msra.mxu0 %v1100
        %v1102 = vand.u32 %v504, 4294901760
        %1103 = vmatpush.msra.mxu0 %v1102
        %v1104 = vand.u32 %v503, 4294901760
        %1105 = vmatpush.msra.mxu0 %v1104
        %v1106 = vand.u32 %v502, 4294901760
        %1107 = vmatpush.msra.mxu0 %v1106
        %v1108 = vand.u32 %v501, 4294901760
        %1109 = vmatpush.msra.mxu0 %v1108
        %v1110 = vand.u32 %v500, 4294901760
        %1111 = vmatpush.msra.mxu0 %v1110
        %v1112 = vand.u32 %v499, 4294901760
        %1113 = vmatpush.msra.mxu0 %v1112
        %v1114 = vand.u32 %v318, 4294901760
        %v1115 = vsub.f32 %v318, %v1114
        %v1116 = vand.u32 %v1115, 4294901760
        %1117 = vmatmul.f32.gmra.mxu0 %v1116
        %v1118 = vpop.f32.mrf.mxu0
        %v1119 = vadd.f32 %v1005, %v1118
        %v1120 = vand.u32 %v330, 4294901760
        %v1121 = vsub.f32 %v330, %v1120
        %v1122 = vand.u32 %v1121, 4294901760
        %1123 = vmatmul.f32.gmra.mxu0 %v1122
        %v1124 = vpop.f32.mrf.mxu0
        %v1125 = vadd.f32 %v1010, %v1124
        %v1126 = vand.u32 %v342, 4294901760
        %v1127 = vsub.f32 %v342, %v1126
        %v1128 = vand.u32 %v1127, 4294901760
        %1129 = vmatmul.f32.gmra.mxu0 %v1128
        %v1130 = vpop.f32.mrf.mxu0
        %v1131 = vadd.f32 %v1015, %v1130
        %v1132 = vand.u32 %v354, 4294901760
        %v1133 = vsub.f32 %v354, %v1132
        %v1134 = vand.u32 %v1133, 4294901760
        %1135 = vmatmul.f32.gmra.mxu0 %v1134
        %v1136 = vpop.f32.mrf.mxu0
        %v1137 = vadd.f32 %v1020, %v1136
        %v1138 = vand.u32 %v366, 4294901760
        %v1139 = vsub.f32 %v366, %v1138
        %v1140 = vand.u32 %v1139, 4294901760
        %1141 = vmatmul.f32.gmra.mxu0 %v1140
        %v1142 = vpop.f32.mrf.mxu0
        %v1143 = vadd.f32 %v1025, %v1142
        %v1144 = vand.u32 %v378, 4294901760
        %v1145 = vsub.f32 %v378, %v1144
        %v1146 = vand.u32 %v1145, 4294901760
        %1147 = vmatmul.f32.gmra.mxu0 %v1146
        %v1148 = vpop.f32.mrf.mxu0
        %v1149 = vadd.f32 %v1030, %v1148
        %v1150 = vand.u32 %v390, 4294901760
        %v1151 = vsub.f32 %v390, %v1150
        %v1152 = vand.u32 %v1151, 4294901760
        %1153 = vmatmul.f32.gmra.mxu0 %v1152
        %v1154 = vpop.f32.mrf.mxu0
        %v1155 = vadd.f32 %v1035, %v1154
        %v1156 = vand.u32 %v402, 4294901760
        %v1157 = vsub.f32 %v402, %v1156
        %v1158 = vand.u32 %v1157, 4294901760
        %1159 = vmatmul.f32.gmra.mxu0 %v1158
        %v1160 = vpop.f32.mrf.mxu0
        %v1161 = vadd.f32 %v1040, %v1160
        %v1162 = vand.u32 %v414, 4294901760
        %v1163 = vsub.f32 %v414, %v1162
        %v1164 = vand.u32 %v1163, 4294901760
        %1165 = vmatmul.f32.gmra.mxu0 %v1164
        %v1166 = vpop.f32.mrf.mxu0
        %v1167 = vadd.f32 %v1045, %v1166
        %v1168 = vand.u32 %v426, 4294901760
        %v1169 = vsub.f32 %v426, %v1168
        %v1170 = vand.u32 %v1169, 4294901760
        %1171 = vmatmul.f32.gmra.mxu0 %v1170
        %v1172 = vpop.f32.mrf.mxu0
        %v1173 = vadd.f32 %v1050, %v1172
        %v1174 = vand.u32 %v438, 4294901760
        %v1175 = vsub.f32 %v438, %v1174
        %v1176 = vand.u32 %v1175, 4294901760
        %1177 = vmatmul.f32.gmra.mxu0 %v1176
        %v1178 = vpop.f32.mrf.mxu0
        %v1179 = vadd.f32 %v1055, %v1178
        %v1180 = vand.u32 %v450, 4294901760
        %v1181 = vsub.f32 %v450, %v1180
        %v1182 = vand.u32 %v1181, 4294901760
        %1183 = vmatmul.f32.gmra.mxu0 %v1182
        %v1184 = vpop.f32.mrf.mxu0
        %v1185 = vadd.f32 %v1060, %v1184
        %v1186 = vand.u32 %v462, 4294901760
        %v1187 = vsub.f32 %v462, %v1186
        %v1188 = vand.u32 %v1187, 4294901760
        %1189 = vmatmul.f32.gmra.mxu0 %v1188
        %v1190 = vpop.f32.mrf.mxu0
        %v1191 = vadd.f32 %v1065, %v1190
        %v1192 = vand.u32 %v474, 4294901760
        %v1193 = vsub.f32 %v474, %v1192
        %v1194 = vand.u32 %v1193, 4294901760
        %1195 = vmatmul.f32.gmra.mxu0 %v1194
        %v1196 = vpop.f32.mrf.mxu0
        %v1197 = vadd.f32 %v1070, %v1196
        %v1198 = vand.u32 %v486, 4294901760
        %v1199 = vsub.f32 %v486, %v1198
        %v1200 = vand.u32 %v1199, 4294901760
        %1201 = vmatmul.f32.gmra.mxu0 %v1200
        %v1202 = vpop.f32.mrf.mxu0
        %v1203 = vadd.f32 %v1075, %v1202
        %v1204 = vand.u32 %v498, 4294901760
        %v1205 = vsub.f32 %v498, %v1204
        %v1206 = vand.u32 %v1205, 4294901760
        %1207 = vmatmul.f32.gmra.mxu0 %v1206
        %v1208 = vpop.f32.mrf.mxu0
        %v1209 = vadd.f32 %v1080, %v1208
        %1210 = vdwg.mxu0
        %v1211 = vand.u32 %v514, 4294901760
        %v1212 = vsub.f32 %v514, %v1211
        %v1213 = vand.u32 %v1212, 4294901760
        %1214 = vmatpush.msra.mxu0 %v1213
        %v1215 = vand.u32 %v513, 4294901760
        %v1216 = vsub.f32 %v513, %v1215
        %v1217 = vand.u32 %v1216, 4294901760
        %1218 = vmatpush.msra.mxu0 %v1217
        %v1219 = vand.u32 %v512, 4294901760
        %v1220 = vsub.f32 %v512, %v1219
        %v1221 = vand.u32 %v1220, 4294901760
        %1222 = vmatpush.msra.mxu0 %v1221
        %v1223 = vand.u32 %v511, 4294901760
        %v1224 = vsub.f32 %v511, %v1223
        %v1225 = vand.u32 %v1224, 4294901760
        %1226 = vmatpush.msra.mxu0 %v1225
        %v1227 = vand.u32 %v510, 4294901760
        %v1228 = vsub.f32 %v510, %v1227
        %v1229 = vand.u32 %v1228, 4294901760
        %1230 = vmatpush.msra.mxu0 %v1229
        %v1231 = vand.u32 %v509, 4294901760
        %v1232 = vsub.f32 %v509, %v1231
        %v1233 = vand.u32 %v1232, 4294901760
        %1234 = vmatpush.msra.mxu0 %v1233
        %v1235 = vand.u32 %v508, 4294901760
        %v1236 = vsub.f32 %v508, %v1235
        %v1237 = vand.u32 %v1236, 4294901760
        %1238 = vmatpush.msra.mxu0 %v1237
        %v1239 = vand.u32 %v507, 4294901760
        %v1240 = vsub.f32 %v507, %v1239
        %v1241 = vand.u32 %v1240, 4294901760
        %1242 = vmatpush.msra.mxu0 %v1241
        %v1243 = vand.u32 %v506, 4294901760
        %v1244 = vsub.f32 %v506, %v1243
        %v1245 = vand.u32 %v1244, 4294901760
        %1246 = vmatpush.msra.mxu0 %v1245
        %v1247 = vand.u32 %v505, 4294901760
        %v1248 = vsub.f32 %v505, %v1247
        %v1249 = vand.u32 %v1248, 4294901760
        %1250 = vmatpush.msra.mxu0 %v1249
        %v1251 = vand.u32 %v504, 4294901760
        %v1252 = vsub.f32 %v504, %v1251
        %v1253 = vand.u32 %v1252, 4294901760
        %1254 = vmatpush.msra.mxu0 %v1253
        %v1255 = vand.u32 %v503, 4294901760
        %v1256 = vsub.f32 %v503, %v1255
        %v1257 = vand.u32 %v1256, 4294901760
        %1258 = vmatpush.msra.mxu0 %v1257
        %v1259 = vand.u32 %v502, 4294901760
        %v1260 = vsub.f32 %v502, %v1259
        %v1261 = vand.u32 %v1260, 4294901760
        %1262 = vmatpush.msra.mxu0 %v1261
        %v1263 = vand.u32 %v501, 4294901760
        %v1264 = vsub.f32 %v501, %v1263
        %v1265 = vand.u32 %v1264, 4294901760
        %1266 = vmatpush.msra.mxu0 %v1265
        %v1267 = vand.u32 %v500, 4294901760
        %v1268 = vsub.f32 %v500, %v1267
        %v1269 = vand.u32 %v1268, 4294901760
        %1270 = vmatpush.msra.mxu0 %v1269
        %v1271 = vand.u32 %v499, 4294901760
        %v1272 = vsub.f32 %v499, %v1271
        %v1273 = vand.u32 %v1272, 4294901760
        %1274 = vmatpush.msra.mxu0 %v1273
        %v1275 = vand.u32 %v318, 4294901760
        %1276 = vmatmul.f32.gmra.mxu0 %v1275
        %v1277 = vpop.f32.mrf.mxu0
        %v1278 = vadd.f32 %v1119, %v1277
        %v1279 = vand.u32 %v330, 4294901760
        %1280 = vmatmul.f32.gmra.mxu0 %v1279
        %v1281 = vpop.f32.mrf.mxu0
        %v1282 = vadd.f32 %v1125, %v1281
        %v1283 = vand.u32 %v342, 4294901760
        %1284 = vmatmul.f32.gmra.mxu0 %v1283
        %v1285 = vpop.f32.mrf.mxu0
        %v1286 = vadd.f32 %v1131, %v1285
        %v1287 = vand.u32 %v354, 4294901760
        %1288 = vmatmul.f32.gmra.mxu0 %v1287
        %v1289 = vpop.f32.mrf.mxu0
        %v1290 = vadd.f32 %v1137, %v1289
        %v1291 = vand.u32 %v366, 4294901760
        %1292 = vmatmul.f32.gmra.mxu0 %v1291
        %v1293 = vpop.f32.mrf.mxu0
        %v1294 = vadd.f32 %v1143, %v1293
        %v1295 = vand.u32 %v378, 4294901760
        %1296 = vmatmul.f32.gmra.mxu0 %v1295
        %v1297 = vpop.f32.mrf.mxu0
        %v1298 = vadd.f32 %v1149, %v1297
        %v1299 = vand.u32 %v390, 4294901760
        %1300 = vmatmul.f32.gmra.mxu0 %v1299
        %v1301 = vpop.f32.mrf.mxu0
        %v1302 = vadd.f32 %v1155, %v1301
        %v1303 = vand.u32 %v402, 4294901760
        %1304 = vmatmul.f32.gmra.mxu0 %v1303
        %v1305 = vpop.f32.mrf.mxu0
        %v1306 = vadd.f32 %v1161, %v1305
        %v1307 = vand.u32 %v414, 4294901760
        %1308 = vmatmul.f32.gmra.mxu0 %v1307
        %v1309 = vpop.f32.mrf.mxu0
        %v1310 = vadd.f32 %v1167, %v1309
        %v1311 = vand.u32 %v426, 4294901760
        %1312 = vmatmul.f32.gmra.mxu0 %v1311
        %v1313 = vpop.f32.mrf.mxu0
        %v1314 = vadd.f32 %v1173, %v1313
        %v1315 = vand.u32 %v438, 4294901760
        %1316 = vmatmul.f32.gmra.mxu0 %v1315
        %v1317 = vpop.f32.mrf.mxu0
        %v1318 = vadd.f32 %v1179, %v1317
        %v1319 = vand.u32 %v450, 4294901760
        %1320 = vmatmul.f32.gmra.mxu0 %v1319
        %v1321 = vpop.f32.mrf.mxu0
        %v1322 = vadd.f32 %v1185, %v1321
        %v1323 = vand.u32 %v462, 4294901760
        %1324 = vmatmul.f32.gmra.mxu0 %v1323
        %v1325 = vpop.f32.mrf.mxu0
        %v1326 = vadd.f32 %v1191, %v1325
        %v1327 = vand.u32 %v474, 4294901760
        %1328 = vmatmul.f32.gmra.mxu0 %v1327
        %v1329 = vpop.f32.mrf.mxu0
        %v1330 = vadd.f32 %v1197, %v1329
        %v1331 = vand.u32 %v486, 4294901760
        %1332 = vmatmul.f32.gmra.mxu0 %v1331
        %v1333 = vpop.f32.mrf.mxu0
        %v1334 = vadd.f32 %v1203, %v1333
        %v1335 = vand.u32 %v498, 4294901760
        %1336 = vmatmul.f32.gmra.mxu0 %v1335
        %v1337 = vpop.f32.mrf.mxu0
        %v1338 = vadd.f32 %v1209, %v1337
        %1339 = vdwg.mxu0
        %v1340 = vand.u32 %v514, 4294901760
        %1341 = vmatpush.msra.mxu0 %v1340
        %v1342 = vand.u32 %v513, 4294901760
        %1343 = vmatpush.msra.mxu0 %v1342
        %v1344 = vand.u32 %v512, 4294901760
        %1345 = vmatpush.msra.mxu0 %v1344
        %v1346 = vand.u32 %v511, 4294901760
        %1347 = vmatpush.msra.mxu0 %v1346
        %v1348 = vand.u32 %v510, 4294901760
        %1349 = vmatpush.msra.mxu0 %v1348
        %v1350 = vand.u32 %v509, 4294901760
        %1351 = vmatpush.msra.mxu0 %v1350
        %v1352 = vand.u32 %v508, 4294901760
        %1353 = vmatpush.msra.mxu0 %v1352
        %v1354 = vand.u32 %v507, 4294901760
        %1355 = vmatpush.msra.mxu0 %v1354
        %v1356 = vand.u32 %v506, 4294901760
        %1357 = vmatpush.msra.mxu0 %v1356
        %v1358 = vand.u32 %v505, 4294901760
        %1359 = vmatpush.msra.mxu0 %v1358
        %v1360 = vand.u32 %v504, 4294901760
        %1361 = vmatpush.msra.mxu0 %v1360
        %v1362 = vand.u32 %v503, 4294901760
        %1363 = vmatpush.msra.mxu0 %v1362
        %v1364 = vand.u32 %v502, 4294901760
        %1365 = vmatpush.msra.mxu0 %v1364
        %v1366 = vand.u32 %v501, 4294901760
        %1367 = vmatpush.msra.mxu0 %v1366
        %v1368 = vand.u32 %v500, 4294901760
        %1369 = vmatpush.msra.mxu0 %v1368
        %v1370 = vand.u32 %v499, 4294901760
        %1371 = vmatpush.msra.mxu0 %v1370
        %v1372 = vand.u32 %v318, 4294901760
        %1373 = vmatmul.f32.gmra.mxu0 %v1372
        %v1374 = vpop.f32.mrf.mxu0
        %v1375 = vadd.f32 %v1278, %v1374
        %v1376 = vand.u32 %v330, 4294901760
        %1377 = vmatmul.f32.gmra.mxu0 %v1376
        %v1378 = vpop.f32.mrf.mxu0
        %v1379 = vadd.f32 %v1282, %v1378
        %v1380 = vand.u32 %v342, 4294901760
        %1381 = vmatmul.f32.gmra.mxu0 %v1380
        %v1382 = vpop.f32.mrf.mxu0
        %v1383 = vadd.f32 %v1286, %v1382
        %v1384 = vand.u32 %v354, 4294901760
        %1385 = vmatmul.f32.gmra.mxu0 %v1384
        %v1386 = vpop.f32.mrf.mxu0
        %v1387 = vadd.f32 %v1290, %v1386
        %v1388 = vand.u32 %v366, 4294901760
        %1389 = vmatmul.f32.gmra.mxu0 %v1388
        %v1390 = vpop.f32.mrf.mxu0
        %v1391 = vadd.f32 %v1294, %v1390
        %v1392 = vand.u32 %v378, 4294901760
        %1393 = vmatmul.f32.gmra.mxu0 %v1392
        %v1394 = vpop.f32.mrf.mxu0
        %v1395 = vadd.f32 %v1298, %v1394
        %v1396 = vand.u32 %v390, 4294901760
        %1397 = vmatmul.f32.gmra.mxu0 %v1396
        %v1398 = vpop.f32.mrf.mxu0
        %v1399 = vadd.f32 %v1302, %v1398
        %v1400 = vand.u32 %v402, 4294901760
        %1401 = vmatmul.f32.gmra.mxu0 %v1400
        %v1402 = vpop.f32.mrf.mxu0
        %v1403 = vadd.f32 %v1306, %v1402
        %v1404 = vand.u32 %v414, 4294901760
        %1405 = vmatmul.f32.gmra.mxu0 %v1404
        %v1406 = vpop.f32.mrf.mxu0
        %v1407 = vadd.f32 %v1310, %v1406
        %v1408 = vand.u32 %v426, 4294901760
        %1409 = vmatmul.f32.gmra.mxu0 %v1408
        %v1410 = vpop.f32.mrf.mxu0
        %v1411 = vadd.f32 %v1314, %v1410
        %v1412 = vand.u32 %v438, 4294901760
        %1413 = vmatmul.f32.gmra.mxu0 %v1412
        %v1414 = vpop.f32.mrf.mxu0
        %v1415 = vadd.f32 %v1318, %v1414
        %v1416 = vand.u32 %v450, 4294901760
        %1417 = vmatmul.f32.gmra.mxu0 %v1416
        %v1418 = vpop.f32.mrf.mxu0
        %v1419 = vadd.f32 %v1322, %v1418
        %v1420 = vand.u32 %v462, 4294901760
        %1421 = vmatmul.f32.gmra.mxu0 %v1420
        %v1422 = vpop.f32.mrf.mxu0
        %v1423 = vadd.f32 %v1326, %v1422
        %v1424 = vand.u32 %v474, 4294901760
        %1425 = vmatmul.f32.gmra.mxu0 %v1424
        %v1426 = vpop.f32.mrf.mxu0
        %v1427 = vadd.f32 %v1330, %v1426
        %v1428 = vand.u32 %v486, 4294901760
        %1429 = vmatmul.f32.gmra.mxu0 %v1428
        %v1430 = vpop.f32.mrf.mxu0
        %v1431 = vadd.f32 %v1334, %v1430
        %v1432 = vand.u32 %v498, 4294901760
        %1433 = vmatmul.f32.gmra.mxu0 %v1432
        %v1434 = vpop.f32.mrf.mxu0
        %v1435 = vadd.f32 %v1338, %v1434
        %1436 = vdwg.mxu0
        %1453 = vrot.lane.b32.xlu0 %v1375, 1
        %v1454 = vpop.permute.xlu0 %1453
        %1455 = vrot.lane.b32.xlu0 %v1379, 1
        %v1456 = vpop.permute.xlu0 %1455
        %1457 = vrot.lane.b32.xlu0 %v1383, 1
        %v1458 = vpop.permute.xlu0 %1457
        %1459 = vrot.lane.b32.xlu0 %v1387, 1
        %v1460 = vpop.permute.xlu0 %1459
        %1461 = vrot.lane.b32.xlu0 %v1391, 1
        %v1462 = vpop.permute.xlu0 %1461
        %1463 = vrot.lane.b32.xlu0 %v1395, 1
        %v1464 = vpop.permute.xlu0 %1463
        %1465 = vrot.lane.b32.xlu0 %v1399, 1
        %v1466 = vpop.permute.xlu0 %1465
        %1467 = vrot.lane.b32.xlu0 %v1403, 1
        %v1468 = vpop.permute.xlu0 %1467
        %1469 = vrot.lane.b32.xlu0 %v1407, 1
        %v1470 = vpop.permute.xlu0 %1469
        %1471 = vrot.lane.b32.xlu0 %v1411, 1
        %v1472 = vpop.permute.xlu0 %1471
        %1473 = vrot.lane.b32.xlu0 %v1415, 1
        %v1474 = vpop.permute.xlu0 %1473
        %1475 = vrot.lane.b32.xlu0 %v1419, 1
        %v1476 = vpop.permute.xlu0 %1475
        %1477 = vrot.lane.b32.xlu0 %v1423, 1
        %v1478 = vpop.permute.xlu0 %1477
        %1479 = vrot.lane.b32.xlu0 %v1427, 1
        %v1480 = vpop.permute.xlu0 %1479
        %1481 = vrot.lane.b32.xlu0 %v1431, 1
        %v1482 = vpop.permute.xlu0 %1481
        %1483 = vrot.lane.b32.xlu0 %v1435, 1
        %v1484 = vpop.permute.xlu0 %1483
        %vm1501 = vcmask 7168
        %1502 = vst.msk [vmem:[#allocation2] sm:$0xff] %vm1501, %v1454
        %1503 = vst.msk [vmem:[#allocation2 + $0x8] sm:$0xff] %vm1501, %v1456
        %1504 = vst.msk [vmem:[#allocation2 + $0x10] sm:$0xff] %vm1501, %v1458
        %1505 = vst.msk [vmem:[#allocation2 + $0x18] sm:$0xff] %vm1501, %v1460
        %1506 = vst.msk [vmem:[#allocation2 + $0x20] sm:$0xff] %vm1501, %v1462
        %1507 = vst.msk [vmem:[#allocation2 + $0x28] sm:$0xff] %vm1501, %v1464
        %1508 = vst.msk [vmem:[#allocation2 + $0x30] sm:$0xff] %vm1501, %v1466
        %1509 = vst.msk [vmem:[#allocation2 + $0x38] sm:$0xff] %vm1501, %v1468
        %1510 = vst.msk [vmem:[#allocation2 + $0x40] sm:$0xff] %vm1501, %v1470
        %1511 = vst.msk [vmem:[#allocation2 + $0x48] sm:$0xff] %vm1501, %v1472
        %1512 = vst.msk [vmem:[#allocation2 + $0x50] sm:$0xff] %vm1501, %v1474
        %1513 = vst.msk [vmem:[#allocation2 + $0x58] sm:$0xff] %vm1501, %v1476
        %1514 = vst.msk [vmem:[#allocation2 + $0x60] sm:$0xff] %vm1501, %v1478
        %1515 = vst.msk [vmem:[#allocation2 + $0x68] sm:$0xff] %vm1501, %v1480
        %1516 = vst.msk [vmem:[#allocation2 + $0x70] sm:$0xff] %vm1501, %v1482
        %1517 = vst.msk [vmem:[#allocation2 + $0x78] sm:$0xff] %vm1501, %v1484
        %v1518 = vrsqrt.pop %v1375
        %v1519 = vmul.f32 %v1518, %v1375
        %v1520 = vmul.f32 %v1519, %v1518
        %v1521 = vmul.f32 0.5, %v1520
        %v1522 = vsub.f32 1.5, %v1521
        %v1523 = vmul.f32 %v1518, %v1522
        %vm1524 = vweird.f32 %v1375
        %vm1525 = vweird.f32 %v1518
        %vm1526 = vmor %vm1524, %vm1525
        %v1527 = vsel %vm1526, %v1518, %v1523
        %v1528 = vrsqrt.pop %v1379
        %v1529 = vmul.f32 %v1528, %v1379
        %v1530 = vmul.f32 %v1529, %v1528
        %v1531 = vmul.f32 0.5, %v1530
        %v1532 = vsub.f32 1.5, %v1531
        %v1533 = vmul.f32 %v1528, %v1532
        %vm1534 = vweird.f32 %v1379
        %vm1535 = vweird.f32 %v1528
        %vm1536 = vmor %vm1534, %vm1535
        %v1537 = vsel %vm1536, %v1528, %v1533
        %v1538 = vrsqrt.pop %v1383
        %v1539 = vmul.f32 %v1538, %v1383
        %v1540 = vmul.f32 %v1539, %v1538
        %v1541 = vmul.f32 0.5, %v1540
        %v1542 = vsub.f32 1.5, %v1541
        %v1543 = vmul.f32 %v1538, %v1542
        %vm1544 = vweird.f32 %v1383
        %vm1545 = vweird.f32 %v1538
        %vm1546 = vmor %vm1544, %vm1545
        %v1547 = vsel %vm1546, %v1538, %v1543
        %v1548 = vrsqrt.pop %v1387
        %v1549 = vmul.f32 %v1548, %v1387
        %v1550 = vmul.f32 %v1549, %v1548
        %v1551 = vmul.f32 0.5, %v1550
        %v1552 = vsub.f32 1.5, %v1551
        %v1553 = vmul.f32 %v1548, %v1552
        %vm1554 = vweird.f32 %v1387
        %vm1555 = vweird.f32 %v1548
        %vm1556 = vmor %vm1554, %vm1555
        %v1557 = vsel %vm1556, %v1548, %v1553
        %v1558 = vrsqrt.pop %v1391
        %v1559 = vmul.f32 %v1558, %v1391
        %v1560 = vmul.f32 %v1559, %v1558
        %v1561 = vmul.f32 0.5, %v1560
        %v1562 = vsub.f32 1.5, %v1561
        %v1563 = vmul.f32 %v1558, %v1562
        %vm1564 = vweird.f32 %v1391
        %vm1565 = vweird.f32 %v1558
        %vm1566 = vmor %vm1564, %vm1565
        %v1567 = vsel %vm1566, %v1558, %v1563
        %v1568 = vrsqrt.pop %v1395
        %v1569 = vmul.f32 %v1568, %v1395
        %v1570 = vmul.f32 %v1569, %v1568
        %v1571 = vmul.f32 0.5, %v1570
        %v1572 = vsub.f32 1.5, %v1571
        %v1573 = vmul.f32 %v1568, %v1572
        %vm1574 = vweird.f32 %v1395
        %vm1575 = vweird.f32 %v1568
        %vm1576 = vmor %vm1574, %vm1575
        %v1577 = vsel %vm1576, %v1568, %v1573
        %v1578 = vrsqrt.pop %v1399
        %v1579 = vmul.f32 %v1578, %v1399
        %v1580 = vmul.f32 %v1579, %v1578
        %v1581 = vmul.f32 0.5, %v1580
        %v1582 = vsub.f32 1.5, %v1581
        %v1583 = vmul.f32 %v1578, %v1582
        %vm1584 = vweird.f32 %v1399
        %vm1585 = vweird.f32 %v1578
        %vm1586 = vmor %vm1584, %vm1585
        %v1587 = vsel %vm1586, %v1578, %v1583
        %v1588 = vrsqrt.pop %v1403
        %v1589 = vmul.f32 %v1588, %v1403
        %v1590 = vmul.f32 %v1589, %v1588
        %v1591 = vmul.f32 0.5, %v1590
        %v1592 = vsub.f32 1.5, %v1591
        %v1593 = vmul.f32 %v1588, %v1592
        %vm1594 = vweird.f32 %v1403
        %vm1595 = vweird.f32 %v1588
        %vm1596 = vmor %vm1594, %vm1595
        %v1597 = vsel %vm1596, %v1588, %v1593
        %v1598 = vrsqrt.pop %v1407
        %v1599 = vmul.f32 %v1598, %v1407
        %v1600 = vmul.f32 %v1599, %v1598
        %v1601 = vmul.f32 0.5, %v1600
        %v1602 = vsub.f32 1.5, %v1601
        %v1603 = vmul.f32 %v1598, %v1602
        %vm1604 = vweird.f32 %v1407
        %vm1605 = vweird.f32 %v1598
        %vm1606 = vmor %vm1604, %vm1605
        %v1607 = vsel %vm1606, %v1598, %v1603
        %v1608 = vrsqrt.pop %v1411
        %v1609 = vmul.f32 %v1608, %v1411
        %v1610 = vmul.f32 %v1609, %v1608
        %v1611 = vmul.f32 0.5, %v1610
        %v1612 = vsub.f32 1.5, %v1611
        %v1613 = vmul.f32 %v1608, %v1612
        %vm1614 = vweird.f32 %v1411
        %vm1615 = vweird.f32 %v1608
        %vm1616 = vmor %vm1614, %vm1615
        %v1617 = vsel %vm1616, %v1608, %v1613
        %v1618 = vrsqrt.pop %v1415
        %v1619 = vmul.f32 %v1618, %v1415
        %v1620 = vmul.f32 %v1619, %v1618
        %v1621 = vmul.f32 0.5, %v1620
        %v1622 = vsub.f32 1.5, %v1621
        %v1623 = vmul.f32 %v1618, %v1622
        %vm1624 = vweird.f32 %v1415
        %vm1625 = vweird.f32 %v1618
        %vm1626 = vmor %vm1624, %vm1625
        %v1627 = vsel %vm1626, %v1618, %v1623
        %v1628 = vrsqrt.pop %v1419
        %v1629 = vmul.f32 %v1628, %v1419
        %v1630 = vmul.f32 %v1629, %v1628
        %v1631 = vmul.f32 0.5, %v1630
        %v1632 = vsub.f32 1.5, %v1631
        %v1633 = vmul.f32 %v1628, %v1632
        %vm1634 = vweird.f32 %v1419
        %vm1635 = vweird.f32 %v1628
        %vm1636 = vmor %vm1634, %vm1635
        %v1637 = vsel %vm1636, %v1628, %v1633
        %v1638 = vrsqrt.pop %v1423
        %v1639 = vmul.f32 %v1638, %v1423
        %v1640 = vmul.f32 %v1639, %v1638
        %v1641 = vmul.f32 0.5, %v1640
        %v1642 = vsub.f32 1.5, %v1641
        %v1643 = vmul.f32 %v1638, %v1642
        %vm1644 = vweird.f32 %v1423
        %vm1645 = vweird.f32 %v1638
        %vm1646 = vmor %vm1644, %vm1645
        %v1647 = vsel %vm1646, %v1638, %v1643
        %v1648 = vrsqrt.pop %v1427
        %v1649 = vmul.f32 %v1648, %v1427
        %v1650 = vmul.f32 %v1649, %v1648
        %v1651 = vmul.f32 0.5, %v1650
        %v1652 = vsub.f32 1.5, %v1651
        %v1653 = vmul.f32 %v1648, %v1652
        %vm1654 = vweird.f32 %v1427
        %vm1655 = vweird.f32 %v1648
        %vm1656 = vmor %vm1654, %vm1655
        %v1657 = vsel %vm1656, %v1648, %v1653
        %v1658 = vrsqrt.pop %v1431
        %v1659 = vmul.f32 %v1658, %v1431
        %v1660 = vmul.f32 %v1659, %v1658
        %v1661 = vmul.f32 0.5, %v1660
        %v1662 = vsub.f32 1.5, %v1661
        %v1663 = vmul.f32 %v1658, %v1662
        %vm1664 = vweird.f32 %v1431
        %vm1665 = vweird.f32 %v1658
        %vm1666 = vmor %vm1664, %vm1665
        %v1667 = vsel %vm1666, %v1658, %v1663
        %v1668 = vrsqrt.pop %v1435
        %v1669 = vmul.f32 %v1668, %v1435
        %v1670 = vmul.f32 %v1669, %v1668
        %v1671 = vmul.f32 0.5, %v1670
        %v1672 = vsub.f32 1.5, %v1671
        %v1673 = vmul.f32 %v1668, %v1672
        %vm1674 = vweird.f32 %v1435
        %vm1675 = vweird.f32 %v1668
        %vm1676 = vmor %vm1674, %vm1675
        %v1677 = vsel %vm1676, %v1668, %v1673
        %v1678 = vmul.f32 %v275, %v1527
        %v1679 = vmul.f32 %v276, %v1537
        %v1680 = vmul.f32 %v277, %v1547
        %v1681 = vmul.f32 %v278, %v1557
        %v1682 = vmul.f32 %v279, %v1567
        %v1683 = vmul.f32 %v280, %v1577
        %v1684 = vmul.f32 %v281, %v1587
        %v1685 = vmul.f32 %v282, %v1597
        %v1686 = vmul.f32 %v283, %v1607
        %v1687 = vmul.f32 %v284, %v1617
        %v1688 = vmul.f32 %v285, %v1627
        %v1689 = vmul.f32 %v286, %v1637
        %v1690 = vmul.f32 %v287, %v1647
        %v1691 = vmul.f32 %v288, %v1657
        %v1692 = vmul.f32 %v289, %v1667
        %v1693 = vmul.f32 %v290, %v1677
        %1694 = vst [vmem:[%s235] sm:$0xff] %v1678
        %1695 = vst [vmem:[%s235 + $0x20] sm:$0xff] %v1679
        %1696 = vst [vmem:[%s235 + $0x40] sm:$0xff] %v1680
        %1697 = vst [vmem:[%s235 + $0x60] sm:$0xff] %v1681
        %1698 = vst [vmem:[%s235 + $0x80] sm:$0xff] %v1682
        %1699 = vst [vmem:[%s235 + $0xa0] sm:$0xff] %v1683
        %1700 = vst [vmem:[%s235 + $0xc0] sm:$0xff] %v1684
        %1701 = vst [vmem:[%s235 + $0xe0] sm:$0xff] %v1685
        %1702 = vst [vmem:[%s235 + $0x100] sm:$0xff] %v1686
        %1703 = vst [vmem:[%s235 + $0x120] sm:$0xff] %v1687
        %1704 = vst [vmem:[%s235 + $0x140] sm:$0xff] %v1688
        %1705 = vst [vmem:[%s235 + $0x160] sm:$0xff] %v1689
        %1706 = vst [vmem:[%s235 + $0x180] sm:$0xff] %v1690
        %1707 = vst [vmem:[%s235 + $0x1a0] sm:$0xff] %v1691
        %1708 = vst [vmem:[%s235 + $0x1c0] sm:$0xff] %v1692
        %1709 = vst [vmem:[%s235 + $0x1e0] sm:$0xff] %v1693
        %s1710 = scalar_lea.vmem %s210, 8 [#allocation3]
        %v1711 = vld [vmem:[%s1710] sm:$0xff]
        %v1712 = vld [vmem:[%s1710 + $0x20] sm:$0xff]
        %v1713 = vld [vmem:[%s1710 + $0x40] sm:$0xff]
        %v1714 = vld [vmem:[%s1710 + $0x60] sm:$0xff]
        %v1715 = vld [vmem:[%s1710 + $0x80] sm:$0xff]
        %v1716 = vld [vmem:[%s1710 + $0xa0] sm:$0xff]
        %v1717 = vld [vmem:[%s1710 + $0xc0] sm:$0xff]
        %v1718 = vld [vmem:[%s1710 + $0xe0] sm:$0xff]
        %v1719 = vld [vmem:[%s1710 + $0x100] sm:$0xff]
        %v1720 = vld [vmem:[%s1710 + $0x120] sm:$0xff]
        %v1721 = vld [vmem:[%s1710 + $0x140] sm:$0xff]
        %v1722 = vld [vmem:[%s1710 + $0x160] sm:$0xff]
        %v1723 = vld [vmem:[%s1710 + $0x180] sm:$0xff]
        %v1724 = vld [vmem:[%s1710 + $0x1a0] sm:$0xff]
        %v1725 = vld [vmem:[%s1710 + $0x1c0] sm:$0xff]
        %v1726 = vld [vmem:[%s1710 + $0x1e0] sm:$0xff]
        %v1727 = vmax.f32 %v1711, 1e-10
        %v1728 = vmax.f32 %v1712, 1e-10
        %v1729 = vmax.f32 %v1713, 1e-10
        %v1730 = vmax.f32 %v1714, 1e-10
        %v1731 = vmax.f32 %v1715, 1e-10
        %v1732 = vmax.f32 %v1716, 1e-10
        %v1733 = vmax.f32 %v1717, 1e-10
        %v1734 = vmax.f32 %v1718, 1e-10
        %v1735 = vmax.f32 %v1719, 1e-10
        %v1736 = vmax.f32 %v1720, 1e-10
        %v1737 = vmax.f32 %v1721, 1e-10
        %v1738 = vmax.f32 %v1722, 1e-10
        %v1739 = vmax.f32 %v1723, 1e-10
        %v1740 = vmax.f32 %v1724, 1e-10
        %v1741 = vmax.f32 %v1725, 1e-10
        %v1742 = vmax.f32 %v1726, 1e-10
        %v1743 = vrsqrt.pop %v1727
        %v1744 = vmul.f32 %v1743, %v1727
        %v1745 = vmul.f32 %v1744, %v1743
        %v1746 = vmul.f32 0.5, %v1745
        %v1747 = vsub.f32 1.5, %v1746
        %v1748 = vmul.f32 %v1743, %v1747
        %v1749 = vmul.f32 %v1727, %v1748
        %vm1750 = vcmp.eq.f32.partialorder %v1727, inf
        %v1751 = vsel %vm1750, %v1727, %v1749
        %vm1752 = vcmp.eq.f32.partialorder %v1727, 0.0
        %v1753 = vand.u32 %v1727, 2147483648
        %v1754 = vsel %vm1752, %v1753, %v1751
        %v1755 = vrsqrt.pop %v1728
        %v1756 = vmul.f32 %v1755, %v1728
        %v1757 = vmul.f32 %v1756, %v1755
        %v1758 = vmul.f32 0.5, %v1757
        %v1759 = vsub.f32 1.5, %v1758
        %v1760 = vmul.f32 %v1755, %v1759
        %v1761 = vmul.f32 %v1728, %v1760
        %vm1762 = vcmp.eq.f32.partialorder %v1728, inf
        %v1763 = vsel %vm1762, %v1728, %v1761
        %vm1764 = vcmp.eq.f32.partialorder %v1728, 0.0
        %v1765 = vand.u32 %v1728, 2147483648
        %v1766 = vsel %vm1764, %v1765, %v1763
        %v1767 = vrsqrt.pop %v1729
        %v1768 = vmul.f32 %v1767, %v1729
        %v1769 = vmul.f32 %v1768, %v1767
        %v1770 = vmul.f32 0.5, %v1769
        %v1771 = vsub.f32 1.5, %v1770
        %v1772 = vmul.f32 %v1767, %v1771
        %v1773 = vmul.f32 %v1729, %v1772
        %vm1774 = vcmp.eq.f32.partialorder %v1729, inf
        %v1775 = vsel %vm1774, %v1729, %v1773
        %vm1776 = vcmp.eq.f32.partialorder %v1729, 0.0
        %v1777 = vand.u32 %v1729, 2147483648
        %v1778 = vsel %vm1776, %v1777, %v1775
        %v1779 = vrsqrt.pop %v1730
        %v1780 = vmul.f32 %v1779, %v1730
        %v1781 = vmul.f32 %v1780, %v1779
        %v1782 = vmul.f32 0.5, %v1781
        %v1783 = vsub.f32 1.5, %v1782
        %v1784 = vmul.f32 %v1779, %v1783
        %v1785 = vmul.f32 %v1730, %v1784
        %vm1786 = vcmp.eq.f32.partialorder %v1730, inf
        %v1787 = vsel %vm1786, %v1730, %v1785
        %vm1788 = vcmp.eq.f32.partialorder %v1730, 0.0
        %v1789 = vand.u32 %v1730, 2147483648
        %v1790 = vsel %vm1788, %v1789, %v1787
        %v1791 = vrsqrt.pop %v1731
        %v1792 = vmul.f32 %v1791, %v1731
        %v1793 = vmul.f32 %v1792, %v1791
        %v1794 = vmul.f32 0.5, %v1793
        %v1795 = vsub.f32 1.5, %v1794
        %v1796 = vmul.f32 %v1791, %v1795
        %v1797 = vmul.f32 %v1731, %v1796
        %vm1798 = vcmp.eq.f32.partialorder %v1731, inf
        %v1799 = vsel %vm1798, %v1731, %v1797
        %vm1800 = vcmp.eq.f32.partialorder %v1731, 0.0
        %v1801 = vand.u32 %v1731, 2147483648
        %v1802 = vsel %vm1800, %v1801, %v1799
        %v1803 = vrsqrt.pop %v1732
        %v1804 = vmul.f32 %v1803, %v1732
        %v1805 = vmul.f32 %v1804, %v1803
        %v1806 = vmul.f32 0.5, %v1805
        %v1807 = vsub.f32 1.5, %v1806
        %v1808 = vmul.f32 %v1803, %v1807
        %v1809 = vmul.f32 %v1732, %v1808
        %vm1810 = vcmp.eq.f32.partialorder %v1732, inf
        %v1811 = vsel %vm1810, %v1732, %v1809
        %vm1812 = vcmp.eq.f32.partialorder %v1732, 0.0
        %v1813 = vand.u32 %v1732, 2147483648
        %v1814 = vsel %vm1812, %v1813, %v1811
        %v1815 = vrsqrt.pop %v1733
        %v1816 = vmul.f32 %v1815, %v1733
        %v1817 = vmul.f32 %v1816, %v1815
        %v1818 = vmul.f32 0.5, %v1817
        %v1819 = vsub.f32 1.5, %v1818
        %v1820 = vmul.f32 %v1815, %v1819
        %v1821 = vmul.f32 %v1733, %v1820
        %vm1822 = vcmp.eq.f32.partialorder %v1733, inf
        %v1823 = vsel %vm1822, %v1733, %v1821
        %vm1824 = vcmp.eq.f32.partialorder %v1733, 0.0
        %v1825 = vand.u32 %v1733, 2147483648
        %v1826 = vsel %vm1824, %v1825, %v1823
        %v1827 = vrsqrt.pop %v1734
        %v1828 = vmul.f32 %v1827, %v1734
        %v1829 = vmul.f32 %v1828, %v1827
        %v1830 = vmul.f32 0.5, %v1829
        %v1831 = vsub.f32 1.5, %v1830
        %v1832 = vmul.f32 %v1827, %v1831
        %v1833 = vmul.f32 %v1734, %v1832
        %vm1834 = vcmp.eq.f32.partialorder %v1734, inf
        %v1835 = vsel %vm1834, %v1734, %v1833
        %vm1836 = vcmp.eq.f32.partialorder %v1734, 0.0
        %v1837 = vand.u32 %v1734, 2147483648
        %v1838 = vsel %vm1836, %v1837, %v1835
        %v1839 = vrsqrt.pop %v1735
        %v1840 = vmul.f32 %v1839, %v1735
        %v1841 = vmul.f32 %v1840, %v1839
        %v1842 = vmul.f32 0.5, %v1841
        %v1843 = vsub.f32 1.5, %v1842
        %v1844 = vmul.f32 %v1839, %v1843
        %v1845 = vmul.f32 %v1735, %v1844
        %vm1846 = vcmp.eq.f32.partialorder %v1735, inf
        %v1847 = vsel %vm1846, %v1735, %v1845
        %vm1848 = vcmp.eq.f32.partialorder %v1735, 0.0
        %v1849 = vand.u32 %v1735, 2147483648
        %v1850 = vsel %vm1848, %v1849, %v1847
        %v1851 = vrsqrt.pop %v1736
        %v1852 = vmul.f32 %v1851, %v1736
        %v1853 = vmul.f32 %v1852, %v1851
        %v1854 = vmul.f32 0.5, %v1853
        %v1855 = vsub.f32 1.5, %v1854
        %v1856 = vmul.f32 %v1851, %v1855
        %v1857 = vmul.f32 %v1736, %v1856
        %vm1858 = vcmp.eq.f32.partialorder %v1736, inf
        %v1859 = vsel %vm1858, %v1736, %v1857
        %vm1860 = vcmp.eq.f32.partialorder %v1736, 0.0
        %v1861 = vand.u32 %v1736, 2147483648
        %v1862 = vsel %vm1860, %v1861, %v1859
        %v1863 = vrsqrt.pop %v1737
        %v1864 = vmul.f32 %v1863, %v1737
        %v1865 = vmul.f32 %v1864, %v1863
        %v1866 = vmul.f32 0.5, %v1865
        %v1867 = vsub.f32 1.5, %v1866
        %v1868 = vmul.f32 %v1863, %v1867
        %v1869 = vmul.f32 %v1737, %v1868
        %vm1870 = vcmp.eq.f32.partialorder %v1737, inf
        %v1871 = vsel %vm1870, %v1737, %v1869
        %vm1872 = vcmp.eq.f32.partialorder %v1737, 0.0
        %v1873 = vand.u32 %v1737, 2147483648
        %v1874 = vsel %vm1872, %v1873, %v1871
        %v1875 = vrsqrt.pop %v1738
        %v1876 = vmul.f32 %v1875, %v1738
        %v1877 = vmul.f32 %v1876, %v1875
        %v1878 = vmul.f32 0.5, %v1877
        %v1879 = vsub.f32 1.5, %v1878
        %v1880 = vmul.f32 %v1875, %v1879
        %v1881 = vmul.f32 %v1738, %v1880
        %vm1882 = vcmp.eq.f32.partialorder %v1738, inf
        %v1883 = vsel %vm1882, %v1738, %v1881
        %vm1884 = vcmp.eq.f32.partialorder %v1738, 0.0
        %v1885 = vand.u32 %v1738, 2147483648
        %v1886 = vsel %vm1884, %v1885, %v1883
        %v1887 = vrsqrt.pop %v1739
        %v1888 = vmul.f32 %v1887, %v1739
        %v1889 = vmul.f32 %v1888, %v1887
        %v1890 = vmul.f32 0.5, %v1889
        %v1891 = vsub.f32 1.5, %v1890
        %v1892 = vmul.f32 %v1887, %v1891
        %v1893 = vmul.f32 %v1739, %v1892
        %vm1894 = vcmp.eq.f32.partialorder %v1739, inf
        %v1895 = vsel %vm1894, %v1739, %v1893
        %vm1896 = vcmp.eq.f32.partialorder %v1739, 0.0
        %v1897 = vand.u32 %v1739, 2147483648
        %v1898 = vsel %vm1896, %v1897, %v1895
        %v1899 = vrsqrt.pop %v1740
        %v1900 = vmul.f32 %v1899, %v1740
        %v1901 = vmul.f32 %v1900, %v1899
        %v1902 = vmul.f32 0.5, %v1901
        %v1903 = vsub.f32 1.5, %v1902
        %v1904 = vmul.f32 %v1899, %v1903
        %v1905 = vmul.f32 %v1740, %v1904
        %vm1906 = vcmp.eq.f32.partialorder %v1740, inf
        %v1907 = vsel %vm1906, %v1740, %v1905
        %vm1908 = vcmp.eq.f32.partialorder %v1740, 0.0
        %v1909 = vand.u32 %v1740, 2147483648
        %v1910 = vsel %vm1908, %v1909, %v1907
        %v1911 = vrsqrt.pop %v1741
        %v1912 = vmul.f32 %v1911, %v1741
        %v1913 = vmul.f32 %v1912, %v1911
        %v1914 = vmul.f32 0.5, %v1913
        %v1915 = vsub.f32 1.5, %v1914
        %v1916 = vmul.f32 %v1911, %v1915
        %v1917 = vmul.f32 %v1741, %v1916
        %vm1918 = vcmp.eq.f32.partialorder %v1741, inf
        %v1919 = vsel %vm1918, %v1741, %v1917
        %vm1920 = vcmp.eq.f32.partialorder %v1741, 0.0
        %v1921 = vand.u32 %v1741, 2147483648
        %v1922 = vsel %vm1920, %v1921, %v1919
        %v1923 = vrsqrt.pop %v1742
        %v1924 = vmul.f32 %v1923, %v1742
        %v1925 = vmul.f32 %v1924, %v1923
        %v1926 = vmul.f32 0.5, %v1925
        %v1927 = vsub.f32 1.5, %v1926
        %v1928 = vmul.f32 %v1923, %v1927
        %v1929 = vmul.f32 %v1742, %v1928
        %vm1930 = vcmp.eq.f32.partialorder %v1742, inf
        %v1931 = vsel %vm1930, %v1742, %v1929
        %vm1932 = vcmp.eq.f32.partialorder %v1742, 0.0
        %v1933 = vand.u32 %v1742, 2147483648
        %v1934 = vsel %vm1932, %v1933, %v1931
        %v1935 = vld [vmem:[%s1] sm:$0xff]
        %v1936 = vld [vmem:[%s1 + $0x8] sm:$0xff]
        %v1937 = vld [vmem:[%s1 + $0x10] sm:$0xff]
        %v1938 = vld [vmem:[%s1 + $0x18] sm:$0xff]
        %v1939 = vld [vmem:[%s1 + $0x20] sm:$0xff]
        %v1940 = vld [vmem:[%s1 + $0x28] sm:$0xff]
        %v1941 = vld [vmem:[%s1 + $0x30] sm:$0xff]
        %v1942 = vld [vmem:[%s1 + $0x38] sm:$0xff]
        %v1943 = vld [vmem:[%s1 + $0x40] sm:$0xff]
        %v1944 = vld [vmem:[%s1 + $0x48] sm:$0xff]
        %v1945 = vld [vmem:[%s1 + $0x50] sm:$0xff]
        %v1946 = vld [vmem:[%s1 + $0x58] sm:$0xff]
        %v1947 = vld [vmem:[%s1 + $0x60] sm:$0xff]
        %v1948 = vld [vmem:[%s1 + $0x68] sm:$0xff]
        %v1949 = vld [vmem:[%s1 + $0x70] sm:$0xff]
        %v1950 = vld [vmem:[%s1 + $0x78] sm:$0xff]
        %v1951 = vld [vmem:[#allocation2] sm:$0xff]
        %v1952 = vld [vmem:[#allocation2 + $0x8] sm:$0xff]
        %v1953 = vld [vmem:[#allocation2 + $0x10] sm:$0xff]
        %v1954 = vld [vmem:[#allocation2 + $0x18] sm:$0xff]
        %v1955 = vld [vmem:[#allocation2 + $0x20] sm:$0xff]
        %v1956 = vld [vmem:[#allocation2 + $0x28] sm:$0xff]
        %v1957 = vld [vmem:[#allocation2 + $0x30] sm:$0xff]
        %v1958 = vld [vmem:[#allocation2 + $0x38] sm:$0xff]
        %v1959 = vld [vmem:[#allocation2 + $0x40] sm:$0xff]
        %v1960 = vld [vmem:[#allocation2 + $0x48] sm:$0xff]
        %v1961 = vld [vmem:[#allocation2 + $0x50] sm:$0xff]
        %v1962 = vld [vmem:[#allocation2 + $0x58] sm:$0xff]
        %v1963 = vld [vmem:[#allocation2 + $0x60] sm:$0xff]
        %v1964 = vld [vmem:[#allocation2 + $0x68] sm:$0xff]
        %v1965 = vld [vmem:[#allocation2 + $0x70] sm:$0xff]
        %v1966 = vld [vmem:[#allocation2 + $0x78] sm:$0xff]
        %v1967 = vld [vmem:[%s2] sm:$0x1]
        %1969 = vset.pattern.permute.xlu0 0
        %1970 = vperm.xlu0 %1969, %v1951
        %v1971 = vpop.permute.xlu0 %1970
        %1974 = vset.pattern.permute.xlu0 0
        %1975 = vperm.xlu0 %1974, %v1952
        %v1976 = vpop.permute.xlu0 %1975
        %1979 = vset.pattern.permute.xlu0 0
        %1980 = vperm.xlu0 %1979, %v1953
        %v1981 = vpop.permute.xlu0 %1980
        %1984 = vset.pattern.permute.xlu0 0
        %1985 = vperm.xlu0 %1984, %v1954
        %v1986 = vpop.permute.xlu0 %1985
        %1989 = vset.pattern.permute.xlu0 0
        %1990 = vperm.xlu0 %1989, %v1955
        %v1991 = vpop.permute.xlu0 %1990
        %1994 = vset.pattern.permute.xlu0 0
        %1995 = vperm.xlu0 %1994, %v1956
        %v1996 = vpop.permute.xlu0 %1995
        %1999 = vset.pattern.permute.xlu0 0
        %2000 = vperm.xlu0 %1999, %v1957
        %v2001 = vpop.permute.xlu0 %2000
        %2004 = vset.pattern.permute.xlu0 0
        %2005 = vperm.xlu0 %2004, %v1958
        %v2006 = vpop.permute.xlu0 %2005
        %2009 = vset.pattern.permute.xlu0 0
        %2010 = vperm.xlu0 %2009, %v1959
        %v2011 = vpop.permute.xlu0 %2010
        %2014 = vset.pattern.permute.xlu0 0
        %2015 = vperm.xlu0 %2014, %v1960
        %v2016 = vpop.permute.xlu0 %2015
        %2019 = vset.pattern.permute.xlu0 0
        %2020 = vperm.xlu0 %2019, %v1961
        %v2021 = vpop.permute.xlu0 %2020
        %2024 = vset.pattern.permute.xlu0 0
        %2025 = vperm.xlu0 %2024, %v1962
        %v2026 = vpop.permute.xlu0 %2025
        %2029 = vset.pattern.permute.xlu0 0
        %2030 = vperm.xlu0 %2029, %v1963
        %v2031 = vpop.permute.xlu0 %2030
        %2034 = vset.pattern.permute.xlu0 0
        %2035 = vperm.xlu0 %2034, %v1964
        %v2036 = vpop.permute.xlu0 %2035
        %2039 = vset.pattern.permute.xlu0 0
        %2040 = vperm.xlu0 %2039, %v1965
        %v2041 = vpop.permute.xlu0 %2040
        %2044 = vset.pattern.permute.xlu0 0
        %2045 = vperm.xlu0 %2044, %v1966
        %v2046 = vpop.permute.xlu0 %2045
        %v2049 = vperm.slane %v1967, 0
        %v2051 = vmul.f32 %v1971, %v2049
        %v2052 = vmul.f32 %v1976, %v2049
        %v2053 = vmul.f32 %v1981, %v2049
        %v2054 = vmul.f32 %v1986, %v2049
        %v2055 = vmul.f32 %v1991, %v2049
        %v2056 = vmul.f32 %v1996, %v2049
        %v2057 = vmul.f32 %v2001, %v2049
        %v2058 = vmul.f32 %v2006, %v2049
        %v2059 = vmul.f32 %v2011, %v2049
        %v2060 = vmul.f32 %v2016, %v2049
        %v2061 = vmul.f32 %v2021, %v2049
        %v2062 = vmul.f32 %v2026, %v2049
        %v2063 = vmul.f32 %v2031, %v2049
        %v2064 = vmul.f32 %v2036, %v2049
        %v2065 = vmul.f32 %v2041, %v2049
        %v2066 = vmul.f32 %v2046, %v2049
        %v2067 = vand.u32 %v1950, 4294901760
        %2068 = vmatpush.msra.mxu0 %v2067
        %v2069 = vand.u32 %v1949, 4294901760
        %2070 = vmatpush.msra.mxu0 %v2069
        %v2071 = vand.u32 %v1948, 4294901760
        %2072 = vmatpush.msra.mxu0 %v2071
        %v2073 = vand.u32 %v1947, 4294901760
        %2074 = vmatpush.msra.mxu0 %v2073
        %v2075 = vand.u32 %v1946, 4294901760
        %2076 = vmatpush.msra.mxu0 %v2075
        %v2077 = vand.u32 %v1945, 4294901760
        %2078 = vmatpush.msra.mxu0 %v2077
        %v2079 = vand.u32 %v1944, 4294901760
        %2080 = vmatpush.msra.mxu0 %v2079
        %v2081 = vand.u32 %v1943, 4294901760
        %2082 = vmatpush.msra.mxu0 %v2081
        %v2083 = vand.u32 %v1942, 4294901760
        %2084 = vmatpush.msra.mxu0 %v2083
        %v2085 = vand.u32 %v1941, 4294901760
        %2086 = vmatpush.msra.mxu0 %v2085
        %v2087 = vand.u32 %v1940, 4294901760
        %2088 = vmatpush.msra.mxu0 %v2087
        %v2089 = vand.u32 %v1939, 4294901760
        %2090 = vmatpush.msra.mxu0 %v2089
        %v2091 = vand.u32 %v1938, 4294901760
        %2092 = vmatpush.msra.mxu0 %v2091
        %v2093 = vand.u32 %v1937, 4294901760
        %2094 = vmatpush.msra.mxu0 %v2093
        %v2095 = vand.u32 %v1936, 4294901760
        %2096 = vmatpush.msra.mxu0 %v2095
        %v2097 = vand.u32 %v1935, 4294901760
        %2098 = vmatpush.msra.mxu0 %v2097
        %v2099 = vand.u32 %v1754, 4294901760
        %v2100 = vsub.f32 %v1754, %v2099
        %v2101 = vand.u32 %v2100, 4294901760
        %v2102 = vsub.f32 %v2100, %v2101
        %v2103 = vand.u32 %v2102, 4294901760
        %2104 = vmatmul.f32.gmra.mxu0 %v2103
        %v2105 = vpop.f32.mrf.mxu0
        %v2106 = vadd.f32 %v2051, %v2105
        %v2107 = vand.u32 %v1766, 4294901760
        %v2108 = vsub.f32 %v1766, %v2107
        %v2109 = vand.u32 %v2108, 4294901760
        %v2110 = vsub.f32 %v2108, %v2109
        %v2111 = vand.u32 %v2110, 4294901760
        %2112 = vmatmul.f32.gmra.mxu0 %v2111
        %v2113 = vpop.f32.mrf.mxu0
        %v2114 = vadd.f32 %v2052, %v2113
        %v2115 = vand.u32 %v1778, 4294901760
        %v2116 = vsub.f32 %v1778, %v2115
        %v2117 = vand.u32 %v2116, 4294901760
        %v2118 = vsub.f32 %v2116, %v2117
        %v2119 = vand.u32 %v2118, 4294901760
        %2120 = vmatmul.f32.gmra.mxu0 %v2119
        %v2121 = vpop.f32.mrf.mxu0
        %v2122 = vadd.f32 %v2053, %v2121
        %v2123 = vand.u32 %v1790, 4294901760
        %v2124 = vsub.f32 %v1790, %v2123
        %v2125 = vand.u32 %v2124, 4294901760
        %v2126 = vsub.f32 %v2124, %v2125
        %v2127 = vand.u32 %v2126, 4294901760
        %2128 = vmatmul.f32.gmra.mxu0 %v2127
        %v2129 = vpop.f32.mrf.mxu0
        %v2130 = vadd.f32 %v2054, %v2129
        %v2131 = vand.u32 %v1802, 4294901760
        %v2132 = vsub.f32 %v1802, %v2131
        %v2133 = vand.u32 %v2132, 4294901760
        %v2134 = vsub.f32 %v2132, %v2133
        %v2135 = vand.u32 %v2134, 4294901760
        %2136 = vmatmul.f32.gmra.mxu0 %v2135
        %v2137 = vpop.f32.mrf.mxu0
        %v2138 = vadd.f32 %v2055, %v2137
        %v2139 = vand.u32 %v1814, 4294901760
        %v2140 = vsub.f32 %v1814, %v2139
        %v2141 = vand.u32 %v2140, 4294901760
        %v2142 = vsub.f32 %v2140, %v2141
        %v2143 = vand.u32 %v2142, 4294901760
        %2144 = vmatmul.f32.gmra.mxu0 %v2143
        %v2145 = vpop.f32.mrf.mxu0
        %v2146 = vadd.f32 %v2056, %v2145
        %v2147 = vand.u32 %v1826, 4294901760
        %v2148 = vsub.f32 %v1826, %v2147
        %v2149 = vand.u32 %v2148, 4294901760
        %v2150 = vsub.f32 %v2148, %v2149
        %v2151 = vand.u32 %v2150, 4294901760
        %2152 = vmatmul.f32.gmra.mxu0 %v2151
        %v2153 = vpop.f32.mrf.mxu0
        %v2154 = vadd.f32 %v2057, %v2153
        %v2155 = vand.u32 %v1838, 4294901760
        %v2156 = vsub.f32 %v1838, %v2155
        %v2157 = vand.u32 %v2156, 4294901760
        %v2158 = vsub.f32 %v2156, %v2157
        %v2159 = vand.u32 %v2158, 4294901760
        %2160 = vmatmul.f32.gmra.mxu0 %v2159
        %v2161 = vpop.f32.mrf.mxu0
        %v2162 = vadd.f32 %v2058, %v2161
        %v2163 = vand.u32 %v1850, 4294901760
        %v2164 = vsub.f32 %v1850, %v2163
        %v2165 = vand.u32 %v2164, 4294901760
        %v2166 = vsub.f32 %v2164, %v2165
        %v2167 = vand.u32 %v2166, 4294901760
        %2168 = vmatmul.f32.gmra.mxu0 %v2167
        %v2169 = vpop.f32.mrf.mxu0
        %v2170 = vadd.f32 %v2059, %v2169
        %v2171 = vand.u32 %v1862, 4294901760
        %v2172 = vsub.f32 %v1862, %v2171
        %v2173 = vand.u32 %v2172, 4294901760
        %v2174 = vsub.f32 %v2172, %v2173
        %v2175 = vand.u32 %v2174, 4294901760
        %2176 = vmatmul.f32.gmra.mxu0 %v2175
        %v2177 = vpop.f32.mrf.mxu0
        %v2178 = vadd.f32 %v2060, %v2177
        %v2179 = vand.u32 %v1874, 4294901760
        %v2180 = vsub.f32 %v1874, %v2179
        %v2181 = vand.u32 %v2180, 4294901760
        %v2182 = vsub.f32 %v2180, %v2181
        %v2183 = vand.u32 %v2182, 4294901760
        %2184 = vmatmul.f32.gmra.mxu0 %v2183
        %v2185 = vpop.f32.mrf.mxu0
        %v2186 = vadd.f32 %v2061, %v2185
        %v2187 = vand.u32 %v1886, 4294901760
        %v2188 = vsub.f32 %v1886, %v2187
        %v2189 = vand.u32 %v2188, 4294901760
        %v2190 = vsub.f32 %v2188, %v2189
        %v2191 = vand.u32 %v2190, 4294901760
        %2192 = vmatmul.f32.gmra.mxu0 %v2191
        %v2193 = vpop.f32.mrf.mxu0
        %v2194 = vadd.f32 %v2062, %v2193
        %v2195 = vand.u32 %v1898, 4294901760
        %v2196 = vsub.f32 %v1898, %v2195
        %v2197 = vand.u32 %v2196, 4294901760
        %v2198 = vsub.f32 %v2196, %v2197
        %v2199 = vand.u32 %v2198, 4294901760
        %2200 = vmatmul.f32.gmra.mxu0 %v2199
        %v2201 = vpop.f32.mrf.mxu0
        %v2202 = vadd.f32 %v2063, %v2201
        %v2203 = vand.u32 %v1910, 4294901760
        %v2204 = vsub.f32 %v1910, %v2203
        %v2205 = vand.u32 %v2204, 4294901760
        %v2206 = vsub.f32 %v2204, %v2205
        %v2207 = vand.u32 %v2206, 4294901760
        %2208 = vmatmul.f32.gmra.mxu0 %v2207
        %v2209 = vpop.f32.mrf.mxu0
        %v2210 = vadd.f32 %v2064, %v2209
        %v2211 = vand.u32 %v1922, 4294901760
        %v2212 = vsub.f32 %v1922, %v2211
        %v2213 = vand.u32 %v2212, 4294901760
        %v2214 = vsub.f32 %v2212, %v2213
        %v2215 = vand.u32 %v2214, 4294901760
        %2216 = vmatmul.f32.gmra.mxu0 %v2215
        %v2217 = vpop.f32.mrf.mxu0
        %v2218 = vadd.f32 %v2065, %v2217
        %v2219 = vand.u32 %v1934, 4294901760
        %v2220 = vsub.f32 %v1934, %v2219
        %v2221 = vand.u32 %v2220, 4294901760
        %v2222 = vsub.f32 %v2220, %v2221
        %v2223 = vand.u32 %v2222, 4294901760
        %2224 = vmatmul.f32.gmra.mxu0 %v2223
        %v2225 = vpop.f32.mrf.mxu0
        %v2226 = vadd.f32 %v2066, %v2225
        %2227 = vdwg.mxu0
        %v2228 = vand.u32 %v1950, 4294901760
        %v2229 = vsub.f32 %v1950, %v2228
        %v2230 = vand.u32 %v2229, 4294901760
        %v2231 = vsub.f32 %v2229, %v2230
        %v2232 = vand.u32 %v2231, 4294901760
        %2233 = vmatpush.msra.mxu0 %v2232
        %v2234 = vand.u32 %v1949, 4294901760
        %v2235 = vsub.f32 %v1949, %v2234
        %v2236 = vand.u32 %v2235, 4294901760
        %v2237 = vsub.f32 %v2235, %v2236
        %v2238 = vand.u32 %v2237, 4294901760
        %2239 = vmatpush.msra.mxu0 %v2238
        %v2240 = vand.u32 %v1948, 4294901760
        %v2241 = vsub.f32 %v1948, %v2240
        %v2242 = vand.u32 %v2241, 4294901760
        %v2243 = vsub.f32 %v2241, %v2242
        %v2244 = vand.u32 %v2243, 4294901760
        %2245 = vmatpush.msra.mxu0 %v2244
        %v2246 = vand.u32 %v1947, 4294901760
        %v2247 = vsub.f32 %v1947, %v2246
        %v2248 = vand.u32 %v2247, 4294901760
        %v2249 = vsub.f32 %v2247, %v2248
        %v2250 = vand.u32 %v2249, 4294901760
        %2251 = vmatpush.msra.mxu0 %v2250
        %v2252 = vand.u32 %v1946, 4294901760
        %v2253 = vsub.f32 %v1946, %v2252
        %v2254 = vand.u32 %v2253, 4294901760
        %v2255 = vsub.f32 %v2253, %v2254
        %v2256 = vand.u32 %v2255, 4294901760
        %2257 = vmatpush.msra.mxu0 %v2256
        %v2258 = vand.u32 %v1945, 4294901760
        %v2259 = vsub.f32 %v1945, %v2258
        %v2260 = vand.u32 %v2259, 4294901760
        %v2261 = vsub.f32 %v2259, %v2260
        %v2262 = vand.u32 %v2261, 4294901760
        %2263 = vmatpush.msra.mxu0 %v2262
        %v2264 = vand.u32 %v1944, 4294901760
        %v2265 = vsub.f32 %v1944, %v2264
        %v2266 = vand.u32 %v2265, 4294901760
        %v2267 = vsub.f32 %v2265, %v2266
        %v2268 = vand.u32 %v2267, 4294901760
        %2269 = vmatpush.msra.mxu0 %v2268
        %v2270 = vand.u32 %v1943, 4294901760
        %v2271 = vsub.f32 %v1943, %v2270
        %v2272 = vand.u32 %v2271, 4294901760
        %v2273 = vsub.f32 %v2271, %v2272
        %v2274 = vand.u32 %v2273, 4294901760
        %2275 = vmatpush.msra.mxu0 %v2274
        %v2276 = vand.u32 %v1942, 4294901760
        %v2277 = vsub.f32 %v1942, %v2276
        %v2278 = vand.u32 %v2277, 4294901760
        %v2279 = vsub.f32 %v2277, %v2278
        %v2280 = vand.u32 %v2279, 4294901760
        %2281 = vmatpush.msra.mxu0 %v2280
        %v2282 = vand.u32 %v1941, 4294901760
        %v2283 = vsub.f32 %v1941, %v2282
        %v2284 = vand.u32 %v2283, 4294901760
        %v2285 = vsub.f32 %v2283, %v2284
        %v2286 = vand.u32 %v2285, 4294901760
        %2287 = vmatpush.msra.mxu0 %v2286
        %v2288 = vand.u32 %v1940, 4294901760
        %v2289 = vsub.f32 %v1940, %v2288
        %v2290 = vand.u32 %v2289, 4294901760
        %v2291 = vsub.f32 %v2289, %v2290
        %v2292 = vand.u32 %v2291, 4294901760
        %2293 = vmatpush.msra.mxu0 %v2292
        %v2294 = vand.u32 %v1939, 4294901760
        %v2295 = vsub.f32 %v1939, %v2294
        %v2296 = vand.u32 %v2295, 4294901760
        %v2297 = vsub.f32 %v2295, %v2296
        %v2298 = vand.u32 %v2297, 4294901760
        %2299 = vmatpush.msra.mxu0 %v2298
        %v2300 = vand.u32 %v1938, 4294901760
        %v2301 = vsub.f32 %v1938, %v2300
        %v2302 = vand.u32 %v2301, 4294901760
        %v2303 = vsub.f32 %v2301, %v2302
        %v2304 = vand.u32 %v2303, 4294901760
        %2305 = vmatpush.msra.mxu0 %v2304
        %v2306 = vand.u32 %v1937, 4294901760
        %v2307 = vsub.f32 %v1937, %v2306
        %v2308 = vand.u32 %v2307, 4294901760
        %v2309 = vsub.f32 %v2307, %v2308
        %v2310 = vand.u32 %v2309, 4294901760
        %2311 = vmatpush.msra.mxu0 %v2310
        %v2312 = vand.u32 %v1936, 4294901760
        %v2313 = vsub.f32 %v1936, %v2312
        %v2314 = vand.u32 %v2313, 4294901760
        %v2315 = vsub.f32 %v2313, %v2314
        %v2316 = vand.u32 %v2315, 4294901760
        %2317 = vmatpush.msra.mxu0 %v2316
        %v2318 = vand.u32 %v1935, 4294901760
        %v2319 = vsub.f32 %v1935, %v2318
        %v2320 = vand.u32 %v2319, 4294901760
        %v2321 = vsub.f32 %v2319, %v2320
        %v2322 = vand.u32 %v2321, 4294901760
        %2323 = vmatpush.msra.mxu0 %v2322
        %v2324 = vand.u32 %v1754, 4294901760
        %2325 = vmatmul.f32.gmra.mxu0 %v2324
        %v2326 = vpop.f32.mrf.mxu0
        %v2327 = vadd.f32 %v2106, %v2326
        %v2328 = vand.u32 %v1766, 4294901760
        %2329 = vmatmul.f32.gmra.mxu0 %v2328
        %v2330 = vpop.f32.mrf.mxu0
        %v2331 = vadd.f32 %v2114, %v2330
        %v2332 = vand.u32 %v1778, 4294901760
        %2333 = vmatmul.f32.gmra.mxu0 %v2332
        %v2334 = vpop.f32.mrf.mxu0
        %v2335 = vadd.f32 %v2122, %v2334
        %v2336 = vand.u32 %v1790, 4294901760
        %2337 = vmatmul.f32.gmra.mxu0 %v2336
        %v2338 = vpop.f32.mrf.mxu0
        %v2339 = vadd.f32 %v2130, %v2338
        %v2340 = vand.u32 %v1802, 4294901760
        %2341 = vmatmul.f32.gmra.mxu0 %v2340
        %v2342 = vpop.f32.mrf.mxu0
        %v2343 = vadd.f32 %v2138, %v2342
        %v2344 = vand.u32 %v1814, 4294901760
        %2345 = vmatmul.f32.gmra.mxu0 %v2344
        %v2346 = vpop.f32.mrf.mxu0
        %v2347 = vadd.f32 %v2146, %v2346
        %v2348 = vand.u32 %v1826, 4294901760
        %2349 = vmatmul.f32.gmra.mxu0 %v2348
        %v2350 = vpop.f32.mrf.mxu0
        %v2351 = vadd.f32 %v2154, %v2350
        %v2352 = vand.u32 %v1838, 4294901760
        %2353 = vmatmul.f32.gmra.mxu0 %v2352
        %v2354 = vpop.f32.mrf.mxu0
        %v2355 = vadd.f32 %v2162, %v2354
        %v2356 = vand.u32 %v1850, 4294901760
        %2357 = vmatmul.f32.gmra.mxu0 %v2356
        %v2358 = vpop.f32.mrf.mxu0
        %v2359 = vadd.f32 %v2170, %v2358
        %v2360 = vand.u32 %v1862, 4294901760
        %2361 = vmatmul.f32.gmra.mxu0 %v2360
        %v2362 = vpop.f32.mrf.mxu0
        %v2363 = vadd.f32 %v2178, %v2362
        %v2364 = vand.u32 %v1874, 4294901760
        %2365 = vmatmul.f32.gmra.mxu0 %v2364
        %v2366 = vpop.f32.mrf.mxu0
        %v2367 = vadd.f32 %v2186, %v2366
        %v2368 = vand.u32 %v1886, 4294901760
        %2369 = vmatmul.f32.gmra.mxu0 %v2368
        %v2370 = vpop.f32.mrf.mxu0
        %v2371 = vadd.f32 %v2194, %v2370
        %v2372 = vand.u32 %v1898, 4294901760
        %2373 = vmatmul.f32.gmra.mxu0 %v2372
        %v2374 = vpop.f32.mrf.mxu0
        %v2375 = vadd.f32 %v2202, %v2374
        %v2376 = vand.u32 %v1910, 4294901760
        %2377 = vmatmul.f32.gmra.mxu0 %v2376
        %v2378 = vpop.f32.mrf.mxu0
        %v2379 = vadd.f32 %v2210, %v2378
        %v2380 = vand.u32 %v1922, 4294901760
        %2381 = vmatmul.f32.gmra.mxu0 %v2380
        %v2382 = vpop.f32.mrf.mxu0
        %v2383 = vadd.f32 %v2218, %v2382
        %v2384 = vand.u32 %v1934, 4294901760
        %2385 = vmatmul.f32.gmra.mxu0 %v2384
        %v2386 = vpop.f32.mrf.mxu0
        %v2387 = vadd.f32 %v2226, %v2386
        %2388 = vdwg.mxu0
        %v2389 = vand.u32 %v1950, 4294901760
        %v2390 = vsub.f32 %v1950, %v2389
        %2391 = vmatpush.msra.mxu0 %v2390
        %v2392 = vand.u32 %v1949, 4294901760
        %v2393 = vsub.f32 %v1949, %v2392
        %2394 = vmatpush.msra.mxu0 %v2393
        %v2395 = vand.u32 %v1948, 4294901760
        %v2396 = vsub.f32 %v1948, %v2395
        %2397 = vmatpush.msra.mxu0 %v2396
        %v2398 = vand.u32 %v1947, 4294901760
        %v2399 = vsub.f32 %v1947, %v2398
        %2400 = vmatpush.msra.mxu0 %v2399
        %v2401 = vand.u32 %v1946, 4294901760
        %v2402 = vsub.f32 %v1946, %v2401
        %2403 = vmatpush.msra.mxu0 %v2402
        %v2404 = vand.u32 %v1945, 4294901760
        %v2405 = vsub.f32 %v1945, %v2404
        %2406 = vmatpush.msra.mxu0 %v2405
        %v2407 = vand.u32 %v1944, 4294901760
        %v2408 = vsub.f32 %v1944, %v2407
        %2409 = vmatpush.msra.mxu0 %v2408
        %v2410 = vand.u32 %v1943, 4294901760
        %v2411 = vsub.f32 %v1943, %v2410
        %2412 = vmatpush.msra.mxu0 %v2411
        %v2413 = vand.u32 %v1942, 4294901760
        %v2414 = vsub.f32 %v1942, %v2413
        %2415 = vmatpush.msra.mxu0 %v2414
        %v2416 = vand.u32 %v1941, 4294901760
        %v2417 = vsub.f32 %v1941, %v2416
        %2418 = vmatpush.msra.mxu0 %v2417
        %v2419 = vand.u32 %v1940, 4294901760
        %v2420 = vsub.f32 %v1940, %v2419
        %2421 = vmatpush.msra.mxu0 %v2420
        %v2422 = vand.u32 %v1939, 4294901760
        %v2423 = vsub.f32 %v1939, %v2422
        %2424 = vmatpush.msra.mxu0 %v2423
        %v2425 = vand.u32 %v1938, 4294901760
        %v2426 = vsub.f32 %v1938, %v2425
        %2427 = vmatpush.msra.mxu0 %v2426
        %v2428 = vand.u32 %v1937, 4294901760
        %v2429 = vsub.f32 %v1937, %v2428
        %2430 = vmatpush.msra.mxu0 %v2429
        %v2431 = vand.u32 %v1936, 4294901760
        %v2432 = vsub.f32 %v1936, %v2431
        %2433 = vmatpush.msra.mxu0 %v2432
        %v2434 = vand.u32 %v1935, 4294901760
        %v2435 = vsub.f32 %v1935, %v2434
        %2436 = vmatpush.msra.mxu0 %v2435
        %v2437 = vand.u32 %v1754, 4294901760
        %v2438 = vsub.f32 %v1754, %v2437
        %2439 = vmatmul.f32.gmra.mxu0 %v2438
        %v2440 = vpop.f32.mrf.mxu0
        %v2441 = vadd.f32 %v2327, %v2440
        %v2442 = vand.u32 %v1766, 4294901760
        %v2443 = vsub.f32 %v1766, %v2442
        %2444 = vmatmul.f32.gmra.mxu0 %v2443
        %v2445 = vpop.f32.mrf.mxu0
        %v2446 = vadd.f32 %v2331, %v2445
        %v2447 = vand.u32 %v1778, 4294901760
        %v2448 = vsub.f32 %v1778, %v2447
        %2449 = vmatmul.f32.gmra.mxu0 %v2448
        %v2450 = vpop.f32.mrf.mxu0
        %v2451 = vadd.f32 %v2335, %v2450
        %v2452 = vand.u32 %v1790, 4294901760
        %v2453 = vsub.f32 %v1790, %v2452
        %2454 = vmatmul.f32.gmra.mxu0 %v2453
        %v2455 = vpop.f32.mrf.mxu0
        %v2456 = vadd.f32 %v2339, %v2455
        %v2457 = vand.u32 %v1802, 4294901760
        %v2458 = vsub.f32 %v1802, %v2457
        %2459 = vmatmul.f32.gmra.mxu0 %v2458
        %v2460 = vpop.f32.mrf.mxu0
        %v2461 = vadd.f32 %v2343, %v2460
        %v2462 = vand.u32 %v1814, 4294901760
        %v2463 = vsub.f32 %v1814, %v2462
        %2464 = vmatmul.f32.gmra.mxu0 %v2463
        %v2465 = vpop.f32.mrf.mxu0
        %v2466 = vadd.f32 %v2347, %v2465
        %v2467 = vand.u32 %v1826, 4294901760
        %v2468 = vsub.f32 %v1826, %v2467
        %2469 = vmatmul.f32.gmra.mxu0 %v2468
        %v2470 = vpop.f32.mrf.mxu0
        %v2471 = vadd.f32 %v2351, %v2470
        %v2472 = vand.u32 %v1838, 4294901760
        %v2473 = vsub.f32 %v1838, %v2472
        %2474 = vmatmul.f32.gmra.mxu0 %v2473
        %v2475 = vpop.f32.mrf.mxu0
        %v2476 = vadd.f32 %v2355, %v2475
        %v2477 = vand.u32 %v1850, 4294901760
        %v2478 = vsub.f32 %v1850, %v2477
        %2479 = vmatmul.f32.gmra.mxu0 %v2478
        %v2480 = vpop.f32.mrf.mxu0
        %v2481 = vadd.f32 %v2359, %v2480
        %v2482 = vand.u32 %v1862, 4294901760
        %v2483 = vsub.f32 %v1862, %v2482
        %2484 = vmatmul.f32.gmra.mxu0 %v2483
        %v2485 = vpop.f32.mrf.mxu0
        %v2486 = vadd.f32 %v2363, %v2485
        %v2487 = vand.u32 %v1874, 4294901760
        %v2488 = vsub.f32 %v1874, %v2487
        %2489 = vmatmul.f32.gmra.mxu0 %v2488
        %v2490 = vpop.f32.mrf.mxu0
        %v2491 = vadd.f32 %v2367, %v2490
        %v2492 = vand.u32 %v1886, 4294901760
        %v2493 = vsub.f32 %v1886, %v2492
        %2494 = vmatmul.f32.gmra.mxu0 %v2493
        %v2495 = vpop.f32.mrf.mxu0
        %v2496 = vadd.f32 %v2371, %v2495
        %v2497 = vand.u32 %v1898, 4294901760
        %v2498 = vsub.f32 %v1898, %v2497
        %2499 = vmatmul.f32.gmra.mxu0 %v2498
        %v2500 = vpop.f32.mrf.mxu0
        %v2501 = vadd.f32 %v2375, %v2500
        %v2502 = vand.u32 %v1910, 4294901760
        %v2503 = vsub.f32 %v1910, %v2502
        %2504 = vmatmul.f32.gmra.mxu0 %v2503
        %v2505 = vpop.f32.mrf.mxu0
        %v2506 = vadd.f32 %v2379, %v2505
        %v2507 = vand.u32 %v1922, 4294901760
        %v2508 = vsub.f32 %v1922, %v2507
        %2509 = vmatmul.f32.gmra.mxu0 %v2508
        %v2510 = vpop.f32.mrf.mxu0
        %v2511 = vadd.f32 %v2383, %v2510
        %v2512 = vand.u32 %v1934, 4294901760
        %v2513 = vsub.f32 %v1934, %v2512
        %2514 = vmatmul.f32.gmra.mxu0 %v2513
        %v2515 = vpop.f32.mrf.mxu0
        %v2516 = vadd.f32 %v2387, %v2515
        %2517 = vdwg.mxu0
        %v2518 = vand.u32 %v1950, 4294901760
        %2519 = vmatpush.msra.mxu0 %v2518
        %v2520 = vand.u32 %v1949, 4294901760
        %2521 = vmatpush.msra.mxu0 %v2520
        %v2522 = vand.u32 %v1948, 4294901760
        %2523 = vmatpush.msra.mxu0 %v2522
        %v2524 = vand.u32 %v1947, 4294901760
        %2525 = vmatpush.msra.mxu0 %v2524
        %v2526 = vand.u32 %v1946, 4294901760
        %2527 = vmatpush.msra.mxu0 %v2526
        %v2528 = vand.u32 %v1945, 4294901760
        %2529 = vmatpush.msra.mxu0 %v2528
        %v2530 = vand.u32 %v1944, 4294901760
        %2531 = vmatpush.msra.mxu0 %v2530
        %v2532 = vand.u32 %v1943, 4294901760
        %2533 = vmatpush.msra.mxu0 %v2532
        %v2534 = vand.u32 %v1942, 4294901760
        %2535 = vmatpush.msra.mxu0 %v2534
        %v2536 = vand.u32 %v1941, 4294901760
        %2537 = vmatpush.msra.mxu0 %v2536
        %v2538 = vand.u32 %v1940, 4294901760
        %2539 = vmatpush.msra.mxu0 %v2538
        %v2540 = vand.u32 %v1939, 4294901760
        %2541 = vmatpush.msra.mxu0 %v2540
        %v2542 = vand.u32 %v1938, 4294901760
        %2543 = vmatpush.msra.mxu0 %v2542
        %v2544 = vand.u32 %v1937, 4294901760
        %2545 = vmatpush.msra.mxu0 %v2544
        %v2546 = vand.u32 %v1936, 4294901760
        %2547 = vmatpush.msra.mxu0 %v2546
        %v2548 = vand.u32 %v1935, 4294901760
        %2549 = vmatpush.msra.mxu0 %v2548
        %v2550 = vand.u32 %v1754, 4294901760
        %v2551 = vsub.f32 %v1754, %v2550
        %v2552 = vand.u32 %v2551, 4294901760
        %2553 = vmatmul.f32.gmra.mxu0 %v2552
        %v2554 = vpop.f32.mrf.mxu0
        %v2555 = vadd.f32 %v2441, %v2554
        %v2556 = vand.u32 %v1766, 4294901760
        %v2557 = vsub.f32 %v1766, %v2556
        %v2558 = vand.u32 %v2557, 4294901760
        %2559 = vmatmul.f32.gmra.mxu0 %v2558
        %v2560 = vpop.f32.mrf.mxu0
        %v2561 = vadd.f32 %v2446, %v2560
        %v2562 = vand.u32 %v1778, 4294901760
        %v2563 = vsub.f32 %v1778, %v2562
        %v2564 = vand.u32 %v2563, 4294901760
        %2565 = vmatmul.f32.gmra.mxu0 %v2564
        %v2566 = vpop.f32.mrf.mxu0
        %v2567 = vadd.f32 %v2451, %v2566
        %v2568 = vand.u32 %v1790, 4294901760
        %v2569 = vsub.f32 %v1790, %v2568
        %v2570 = vand.u32 %v2569, 4294901760
        %2571 = vmatmul.f32.gmra.mxu0 %v2570
        %v2572 = vpop.f32.mrf.mxu0
        %v2573 = vadd.f32 %v2456, %v2572
        %v2574 = vand.u32 %v1802, 4294901760
        %v2575 = vsub.f32 %v1802, %v2574
        %v2576 = vand.u32 %v2575, 4294901760
        %2577 = vmatmul.f32.gmra.mxu0 %v2576
        %v2578 = vpop.f32.mrf.mxu0
        %v2579 = vadd.f32 %v2461, %v2578
        %v2580 = vand.u32 %v1814, 4294901760
        %v2581 = vsub.f32 %v1814, %v2580
        %v2582 = vand.u32 %v2581, 4294901760
        %2583 = vmatmul.f32.gmra.mxu0 %v2582
        %v2584 = vpop.f32.mrf.mxu0
        %v2585 = vadd.f32 %v2466, %v2584
        %v2586 = vand.u32 %v1826, 4294901760
        %v2587 = vsub.f32 %v1826, %v2586
        %v2588 = vand.u32 %v2587, 4294901760
        %2589 = vmatmul.f32.gmra.mxu0 %v2588
        %v2590 = vpop.f32.mrf.mxu0
        %v2591 = vadd.f32 %v2471, %v2590
        %v2592 = vand.u32 %v1838, 4294901760
        %v2593 = vsub.f32 %v1838, %v2592
        %v2594 = vand.u32 %v2593, 4294901760
        %2595 = vmatmul.f32.gmra.mxu0 %v2594
        %v2596 = vpop.f32.mrf.mxu0
        %v2597 = vadd.f32 %v2476, %v2596
        %v2598 = vand.u32 %v1850, 4294901760
        %v2599 = vsub.f32 %v1850, %v2598
        %v2600 = vand.u32 %v2599, 4294901760
        %2601 = vmatmul.f32.gmra.mxu0 %v2600
        %v2602 = vpop.f32.mrf.mxu0
        %v2603 = vadd.f32 %v2481, %v2602
        %v2604 = vand.u32 %v1862, 4294901760
        %v2605 = vsub.f32 %v1862, %v2604
        %v2606 = vand.u32 %v2605, 4294901760
        %2607 = vmatmul.f32.gmra.mxu0 %v2606
        %v2608 = vpop.f32.mrf.mxu0
        %v2609 = vadd.f32 %v2486, %v2608
        %v2610 = vand.u32 %v1874, 4294901760
        %v2611 = vsub.f32 %v1874, %v2610
        %v2612 = vand.u32 %v2611, 4294901760
        %2613 = vmatmul.f32.gmra.mxu0 %v2612
        %v2614 = vpop.f32.mrf.mxu0
        %v2615 = vadd.f32 %v2491, %v2614
        %v2616 = vand.u32 %v1886, 4294901760
        %v2617 = vsub.f32 %v1886, %v2616
        %v2618 = vand.u32 %v2617, 4294901760
        %2619 = vmatmul.f32.gmra.mxu0 %v2618
        %v2620 = vpop.f32.mrf.mxu0
        %v2621 = vadd.f32 %v2496, %v2620
        %v2622 = vand.u32 %v1898, 4294901760
        %v2623 = vsub.f32 %v1898, %v2622
        %v2624 = vand.u32 %v2623, 4294901760
        %2625 = vmatmul.f32.gmra.mxu0 %v2624
        %v2626 = vpop.f32.mrf.mxu0
        %v2627 = vadd.f32 %v2501, %v2626
        %v2628 = vand.u32 %v1910, 4294901760
        %v2629 = vsub.f32 %v1910, %v2628
        %v2630 = vand.u32 %v2629, 4294901760
        %2631 = vmatmul.f32.gmra.mxu0 %v2630
        %v2632 = vpop.f32.mrf.mxu0
        %v2633 = vadd.f32 %v2506, %v2632
        %v2634 = vand.u32 %v1922, 4294901760
        %v2635 = vsub.f32 %v1922, %v2634
        %v2636 = vand.u32 %v2635, 4294901760
        %2637 = vmatmul.f32.gmra.mxu0 %v2636
        %v2638 = vpop.f32.mrf.mxu0
        %v2639 = vadd.f32 %v2511, %v2638
        %v2640 = vand.u32 %v1934, 4294901760
        %v2641 = vsub.f32 %v1934, %v2640
        %v2642 = vand.u32 %v2641, 4294901760
        %2643 = vmatmul.f32.gmra.mxu0 %v2642
        %v2644 = vpop.f32.mrf.mxu0
        %v2645 = vadd.f32 %v2516, %v2644
        %2646 = vdwg.mxu0
        %v2647 = vand.u32 %v1950, 4294901760
        %v2648 = vsub.f32 %v1950, %v2647
        %v2649 = vand.u32 %v2648, 4294901760
        %2650 = vmatpush.msra.mxu0 %v2649
        %v2651 = vand.u32 %v1949, 4294901760
        %v2652 = vsub.f32 %v1949, %v2651
        %v2653 = vand.u32 %v2652, 4294901760
        %2654 = vmatpush.msra.mxu0 %v2653
        %v2655 = vand.u32 %v1948, 4294901760
        %v2656 = vsub.f32 %v1948, %v2655
        %v2657 = vand.u32 %v2656, 4294901760
        %2658 = vmatpush.msra.mxu0 %v2657
        %v2659 = vand.u32 %v1947, 4294901760
        %v2660 = vsub.f32 %v1947, %v2659
        %v2661 = vand.u32 %v2660, 4294901760
        %2662 = vmatpush.msra.mxu0 %v2661
        %v2663 = vand.u32 %v1946, 4294901760
        %v2664 = vsub.f32 %v1946, %v2663
        %v2665 = vand.u32 %v2664, 4294901760
        %2666 = vmatpush.msra.mxu0 %v2665
        %v2667 = vand.u32 %v1945, 4294901760
        %v2668 = vsub.f32 %v1945, %v2667
        %v2669 = vand.u32 %v2668, 4294901760
        %2670 = vmatpush.msra.mxu0 %v2669
        %v2671 = vand.u32 %v1944, 4294901760
        %v2672 = vsub.f32 %v1944, %v2671
        %v2673 = vand.u32 %v2672, 4294901760
        %2674 = vmatpush.msra.mxu0 %v2673
        %v2675 = vand.u32 %v1943, 4294901760
        %v2676 = vsub.f32 %v1943, %v2675
        %v2677 = vand.u32 %v2676, 4294901760
        %2678 = vmatpush.msra.mxu0 %v2677
        %v2679 = vand.u32 %v1942, 4294901760
        %v2680 = vsub.f32 %v1942, %v2679
        %v2681 = vand.u32 %v2680, 4294901760
        %2682 = vmatpush.msra.mxu0 %v2681
        %v2683 = vand.u32 %v1941, 4294901760
        %v2684 = vsub.f32 %v1941, %v2683
        %v2685 = vand.u32 %v2684, 4294901760
        %2686 = vmatpush.msra.mxu0 %v2685
        %v2687 = vand.u32 %v1940, 4294901760
        %v2688 = vsub.f32 %v1940, %v2687
        %v2689 = vand.u32 %v2688, 4294901760
        %2690 = vmatpush.msra.mxu0 %v2689
        %v2691 = vand.u32 %v1939, 4294901760
        %v2692 = vsub.f32 %v1939, %v2691
        %v2693 = vand.u32 %v2692, 4294901760
        %2694 = vmatpush.msra.mxu0 %v2693
        %v2695 = vand.u32 %v1938, 4294901760
        %v2696 = vsub.f32 %v1938, %v2695
        %v2697 = vand.u32 %v2696, 4294901760
        %2698 = vmatpush.msra.mxu0 %v2697
        %v2699 = vand.u32 %v1937, 4294901760
        %v2700 = vsub.f32 %v1937, %v2699
        %v2701 = vand.u32 %v2700, 4294901760
        %2702 = vmatpush.msra.mxu0 %v2701
        %v2703 = vand.u32 %v1936, 4294901760
        %v2704 = vsub.f32 %v1936, %v2703
        %v2705 = vand.u32 %v2704, 4294901760
        %2706 = vmatpush.msra.mxu0 %v2705
        %v2707 = vand.u32 %v1935, 4294901760
        %v2708 = vsub.f32 %v1935, %v2707
        %v2709 = vand.u32 %v2708, 4294901760
        %2710 = vmatpush.msra.mxu0 %v2709
        %v2711 = vand.u32 %v1754, 4294901760
        %2712 = vmatmul.f32.gmra.mxu0 %v2711
        %v2713 = vpop.f32.mrf.mxu0
        %v2714 = vadd.f32 %v2555, %v2713
        %v2715 = vand.u32 %v1766, 4294901760
        %2716 = vmatmul.f32.gmra.mxu0 %v2715
        %v2717 = vpop.f32.mrf.mxu0
        %v2718 = vadd.f32 %v2561, %v2717
        %v2719 = vand.u32 %v1778, 4294901760
        %2720 = vmatmul.f32.gmra.mxu0 %v2719
        %v2721 = vpop.f32.mrf.mxu0
        %v2722 = vadd.f32 %v2567, %v2721
        %v2723 = vand.u32 %v1790, 4294901760
        %2724 = vmatmul.f32.gmra.mxu0 %v2723
        %v2725 = vpop.f32.mrf.mxu0
        %v2726 = vadd.f32 %v2573, %v2725
        %v2727 = vand.u32 %v1802, 4294901760
        %2728 = vmatmul.f32.gmra.mxu0 %v2727
        %v2729 = vpop.f32.mrf.mxu0
        %v2730 = vadd.f32 %v2579, %v2729
        %v2731 = vand.u32 %v1814, 4294901760
        %2732 = vmatmul.f32.gmra.mxu0 %v2731
        %v2733 = vpop.f32.mrf.mxu0
        %v2734 = vadd.f32 %v2585, %v2733
        %v2735 = vand.u32 %v1826, 4294901760
        %2736 = vmatmul.f32.gmra.mxu0 %v2735
        %v2737 = vpop.f32.mrf.mxu0
        %v2738 = vadd.f32 %v2591, %v2737
        %v2739 = vand.u32 %v1838, 4294901760
        %2740 = vmatmul.f32.gmra.mxu0 %v2739
        %v2741 = vpop.f32.mrf.mxu0
        %v2742 = vadd.f32 %v2597, %v2741
        %v2743 = vand.u32 %v1850, 4294901760
        %2744 = vmatmul.f32.gmra.mxu0 %v2743
        %v2745 = vpop.f32.mrf.mxu0
        %v2746 = vadd.f32 %v2603, %v2745
        %v2747 = vand.u32 %v1862, 4294901760
        %2748 = vmatmul.f32.gmra.mxu0 %v2747
        %v2749 = vpop.f32.mrf.mxu0
        %v2750 = vadd.f32 %v2609, %v2749
        %v2751 = vand.u32 %v1874, 4294901760
        %2752 = vmatmul.f32.gmra.mxu0 %v2751
        %v2753 = vpop.f32.mrf.mxu0
        %v2754 = vadd.f32 %v2615, %v2753
        %v2755 = vand.u32 %v1886, 4294901760
        %2756 = vmatmul.f32.gmra.mxu0 %v2755
        %v2757 = vpop.f32.mrf.mxu0
        %v2758 = vadd.f32 %v2621, %v2757
        %v2759 = vand.u32 %v1898, 4294901760
        %2760 = vmatmul.f32.gmra.mxu0 %v2759
        %v2761 = vpop.f32.mrf.mxu0
        %v2762 = vadd.f32 %v2627, %v2761
        %v2763 = vand.u32 %v1910, 4294901760
        %2764 = vmatmul.f32.gmra.mxu0 %v2763
        %v2765 = vpop.f32.mrf.mxu0
        %v2766 = vadd.f32 %v2633, %v2765
        %v2767 = vand.u32 %v1922, 4294901760
        %2768 = vmatmul.f32.gmra.mxu0 %v2767
        %v2769 = vpop.f32.mrf.mxu0
        %v2770 = vadd.f32 %v2639, %v2769
        %v2771 = vand.u32 %v1934, 4294901760
        %2772 = vmatmul.f32.gmra.mxu0 %v2771
        %v2773 = vpop.f32.mrf.mxu0
        %v2774 = vadd.f32 %v2645, %v2773
        %2775 = vdwg.mxu0
        %v2776 = vand.u32 %v1950, 4294901760
        %2777 = vmatpush.msra.mxu0 %v2776
        %v2778 = vand.u32 %v1949, 4294901760
        %2779 = vmatpush.msra.mxu0 %v2778
        %v2780 = vand.u32 %v1948, 4294901760
        %2781 = vmatpush.msra.mxu0 %v2780
        %v2782 = vand.u32 %v1947, 4294901760
        %2783 = vmatpush.msra.mxu0 %v2782
        %v2784 = vand.u32 %v1946, 4294901760
        %2785 = vmatpush.msra.mxu0 %v2784
        %v2786 = vand.u32 %v1945, 4294901760
        %2787 = vmatpush.msra.mxu0 %v2786
        %v2788 = vand.u32 %v1944, 4294901760
        %2789 = vmatpush.msra.mxu0 %v2788
        %v2790 = vand.u32 %v1943, 4294901760
        %2791 = vmatpush.msra.mxu0 %v2790
        %v2792 = vand.u32 %v1942, 4294901760
        %2793 = vmatpush.msra.mxu0 %v2792
        %v2794 = vand.u32 %v1941, 4294901760
        %2795 = vmatpush.msra.mxu0 %v2794
        %v2796 = vand.u32 %v1940, 4294901760
        %2797 = vmatpush.msra.mxu0 %v2796
        %v2798 = vand.u32 %v1939, 4294901760
        %2799 = vmatpush.msra.mxu0 %v2798
        %v2800 = vand.u32 %v1938, 4294901760
        %2801 = vmatpush.msra.mxu0 %v2800
        %v2802 = vand.u32 %v1937, 4294901760
        %2803 = vmatpush.msra.mxu0 %v2802
        %v2804 = vand.u32 %v1936, 4294901760
        %2805 = vmatpush.msra.mxu0 %v2804
        %v2806 = vand.u32 %v1935, 4294901760
        %2807 = vmatpush.msra.mxu0 %v2806
        %v2808 = vand.u32 %v1754, 4294901760
        %2809 = vmatmul.f32.gmra.mxu0 %v2808
        %v2810 = vpop.f32.mrf.mxu0
        %v2811 = vadd.f32 %v2714, %v2810
        %v2812 = vand.u32 %v1766, 4294901760
        %2813 = vmatmul.f32.gmra.mxu0 %v2812
        %v2814 = vpop.f32.mrf.mxu0
        %v2815 = vadd.f32 %v2718, %v2814
        %v2816 = vand.u32 %v1778, 4294901760
        %2817 = vmatmul.f32.gmra.mxu0 %v2816
        %v2818 = vpop.f32.mrf.mxu0
        %v2819 = vadd.f32 %v2722, %v2818
        %v2820 = vand.u32 %v1790, 4294901760
        %2821 = vmatmul.f32.gmra.mxu0 %v2820
        %v2822 = vpop.f32.mrf.mxu0
        %v2823 = vadd.f32 %v2726, %v2822
        %v2824 = vand.u32 %v1802, 4294901760
        %2825 = vmatmul.f32.gmra.mxu0 %v2824
        %v2826 = vpop.f32.mrf.mxu0
        %v2827 = vadd.f32 %v2730, %v2826
        %v2828 = vand.u32 %v1814, 4294901760
        %2829 = vmatmul.f32.gmra.mxu0 %v2828
        %v2830 = vpop.f32.mrf.mxu0
        %v2831 = vadd.f32 %v2734, %v2830
        %v2832 = vand.u32 %v1826, 4294901760
        %2833 = vmatmul.f32.gmra.mxu0 %v2832
        %v2834 = vpop.f32.mrf.mxu0
        %v2835 = vadd.f32 %v2738, %v2834
        %v2836 = vand.u32 %v1838, 4294901760
        %2837 = vmatmul.f32.gmra.mxu0 %v2836
        %v2838 = vpop.f32.mrf.mxu0
        %v2839 = vadd.f32 %v2742, %v2838
        %v2840 = vand.u32 %v1850, 4294901760
        %2841 = vmatmul.f32.gmra.mxu0 %v2840
        %v2842 = vpop.f32.mrf.mxu0
        %v2843 = vadd.f32 %v2746, %v2842
        %v2844 = vand.u32 %v1862, 4294901760
        %2845 = vmatmul.f32.gmra.mxu0 %v2844
        %v2846 = vpop.f32.mrf.mxu0
        %v2847 = vadd.f32 %v2750, %v2846
        %v2848 = vand.u32 %v1874, 4294901760
        %2849 = vmatmul.f32.gmra.mxu0 %v2848
        %v2850 = vpop.f32.mrf.mxu0
        %v2851 = vadd.f32 %v2754, %v2850
        %v2852 = vand.u32 %v1886, 4294901760
        %2853 = vmatmul.f32.gmra.mxu0 %v2852
        %v2854 = vpop.f32.mrf.mxu0
        %v2855 = vadd.f32 %v2758, %v2854
        %v2856 = vand.u32 %v1898, 4294901760
        %2857 = vmatmul.f32.gmra.mxu0 %v2856
        %v2858 = vpop.f32.mrf.mxu0
        %v2859 = vadd.f32 %v2762, %v2858
        %v2860 = vand.u32 %v1910, 4294901760
        %2861 = vmatmul.f32.gmra.mxu0 %v2860
        %v2862 = vpop.f32.mrf.mxu0
        %v2863 = vadd.f32 %v2766, %v2862
        %v2864 = vand.u32 %v1922, 4294901760
        %2865 = vmatmul.f32.gmra.mxu0 %v2864
        %v2866 = vpop.f32.mrf.mxu0
        %v2867 = vadd.f32 %v2770, %v2866
        %v2868 = vand.u32 %v1934, 4294901760
        %2869 = vmatmul.f32.gmra.mxu0 %v2868
        %v2870 = vpop.f32.mrf.mxu0
        %v2871 = vadd.f32 %v2774, %v2870
        %2872 = vdwg.mxu0
        %2889 = vrot.lane.b32.xlu0 %v2811, 1
        %v2890 = vpop.permute.xlu0 %2889
        %2891 = vrot.lane.b32.xlu0 %v2815, 1
        %v2892 = vpop.permute.xlu0 %2891
        %2893 = vrot.lane.b32.xlu0 %v2819, 1
        %v2894 = vpop.permute.xlu0 %2893
        %2895 = vrot.lane.b32.xlu0 %v2823, 1
        %v2896 = vpop.permute.xlu0 %2895
        %2897 = vrot.lane.b32.xlu0 %v2827, 1
        %v2898 = vpop.permute.xlu0 %2897
        %2899 = vrot.lane.b32.xlu0 %v2831, 1
        %v2900 = vpop.permute.xlu0 %2899
        %2901 = vrot.lane.b32.xlu0 %v2835, 1
        %v2902 = vpop.permute.xlu0 %2901
        %2903 = vrot.lane.b32.xlu0 %v2839, 1
        %v2904 = vpop.permute.xlu0 %2903
        %2905 = vrot.lane.b32.xlu0 %v2843, 1
        %v2906 = vpop.permute.xlu0 %2905
        %2907 = vrot.lane.b32.xlu0 %v2847, 1
        %v2908 = vpop.permute.xlu0 %2907
        %2909 = vrot.lane.b32.xlu0 %v2851, 1
        %v2910 = vpop.permute.xlu0 %2909
        %2911 = vrot.lane.b32.xlu0 %v2855, 1
        %v2912 = vpop.permute.xlu0 %2911
        %2913 = vrot.lane.b32.xlu0 %v2859, 1
        %v2914 = vpop.permute.xlu0 %2913
        %2915 = vrot.lane.b32.xlu0 %v2863, 1
        %v2916 = vpop.permute.xlu0 %2915
        %2917 = vrot.lane.b32.xlu0 %v2867, 1
        %v2918 = vpop.permute.xlu0 %2917
        %2919 = vrot.lane.b32.xlu0 %v2871, 1
        %v2920 = vpop.permute.xlu0 %2919
        %2937 = vst.msk [vmem:[#allocation2] sm:$0xff] %vm1501, %v2890
        %2938 = vst.msk [vmem:[#allocation2 + $0x8] sm:$0xff] %vm1501, %v2892
        %2939 = vst.msk [vmem:[#allocation2 + $0x10] sm:$0xff] %vm1501, %v2894
        %2940 = vst.msk [vmem:[#allocation2 + $0x18] sm:$0xff] %vm1501, %v2896
        %2941 = vst.msk [vmem:[#allocation2 + $0x20] sm:$0xff] %vm1501, %v2898
        %2942 = vst.msk [vmem:[#allocation2 + $0x28] sm:$0xff] %vm1501, %v2900
        %2943 = vst.msk [vmem:[#allocation2 + $0x30] sm:$0xff] %vm1501, %v2902
        %2944 = vst.msk [vmem:[#allocation2 + $0x38] sm:$0xff] %vm1501, %v2904
        %2945 = vst.msk [vmem:[#allocation2 + $0x40] sm:$0xff] %vm1501, %v2906
        %2946 = vst.msk [vmem:[#allocation2 + $0x48] sm:$0xff] %vm1501, %v2908
        %2947 = vst.msk [vmem:[#allocation2 + $0x50] sm:$0xff] %vm1501, %v2910
        %2948 = vst.msk [vmem:[#allocation2 + $0x58] sm:$0xff] %vm1501, %v2912
        %2949 = vst.msk [vmem:[#allocation2 + $0x60] sm:$0xff] %vm1501, %v2914
        %2950 = vst.msk [vmem:[#allocation2 + $0x68] sm:$0xff] %vm1501, %v2916
        %2951 = vst.msk [vmem:[#allocation2 + $0x70] sm:$0xff] %vm1501, %v2918
        %2952 = vst.msk [vmem:[#allocation2 + $0x78] sm:$0xff] %vm1501, %v2920
        %v2953 = vrsqrt.pop %v2811
        %v2954 = vmul.f32 %v2953, %v2811
        %v2955 = vmul.f32 %v2954, %v2953
        %v2956 = vmul.f32 0.5, %v2955
        %v2957 = vsub.f32 1.5, %v2956
        %v2958 = vmul.f32 %v2953, %v2957
        %vm2959 = vweird.f32 %v2811
        %vm2960 = vweird.f32 %v2953
        %vm2961 = vmor %vm2959, %vm2960
        %v2962 = vsel %vm2961, %v2953, %v2958
        %v2963 = vrsqrt.pop %v2815
        %v2964 = vmul.f32 %v2963, %v2815
        %v2965 = vmul.f32 %v2964, %v2963
        %v2966 = vmul.f32 0.5, %v2965
        %v2967 = vsub.f32 1.5, %v2966
        %v2968 = vmul.f32 %v2963, %v2967
        %vm2969 = vweird.f32 %v2815
        %vm2970 = vweird.f32 %v2963
        %vm2971 = vmor %vm2969, %vm2970
        %v2972 = vsel %vm2971, %v2963, %v2968
        %v2973 = vrsqrt.pop %v2819
        %v2974 = vmul.f32 %v2973, %v2819
        %v2975 = vmul.f32 %v2974, %v2973
        %v2976 = vmul.f32 0.5, %v2975
        %v2977 = vsub.f32 1.5, %v2976
        %v2978 = vmul.f32 %v2973, %v2977
        %vm2979 = vweird.f32 %v2819
        %vm2980 = vweird.f32 %v2973
        %vm2981 = vmor %vm2979, %vm2980
        %v2982 = vsel %vm2981, %v2973, %v2978
        %v2983 = vrsqrt.pop %v2823
        %v2984 = vmul.f32 %v2983, %v2823
        %v2985 = vmul.f32 %v2984, %v2983
        %v2986 = vmul.f32 0.5, %v2985
        %v2987 = vsub.f32 1.5, %v2986
        %v2988 = vmul.f32 %v2983, %v2987
        %vm2989 = vweird.f32 %v2823
        %vm2990 = vweird.f32 %v2983
        %vm2991 = vmor %vm2989, %vm2990
        %v2992 = vsel %vm2991, %v2983, %v2988
        %v2993 = vrsqrt.pop %v2827
        %v2994 = vmul.f32 %v2993, %v2827
        %v2995 = vmul.f32 %v2994, %v2993
        %v2996 = vmul.f32 0.5, %v2995
        %v2997 = vsub.f32 1.5, %v2996
        %v2998 = vmul.f32 %v2993, %v2997
        %vm2999 = vweird.f32 %v2827
        %vm3000 = vweird.f32 %v2993
        %vm3001 = vmor %vm2999, %vm3000
        %v3002 = vsel %vm3001, %v2993, %v2998
        %v3003 = vrsqrt.pop %v2831
        %v3004 = vmul.f32 %v3003, %v2831
        %v3005 = vmul.f32 %v3004, %v3003
        %v3006 = vmul.f32 0.5, %v3005
        %v3007 = vsub.f32 1.5, %v3006
        %v3008 = vmul.f32 %v3003, %v3007
        %vm3009 = vweird.f32 %v2831
        %vm3010 = vweird.f32 %v3003
        %vm3011 = vmor %vm3009, %vm3010
        %v3012 = vsel %vm3011, %v3003, %v3008
        %v3013 = vrsqrt.pop %v2835
        %v3014 = vmul.f32 %v3013, %v2835
        %v3015 = vmul.f32 %v3014, %v3013
        %v3016 = vmul.f32 0.5, %v3015
        %v3017 = vsub.f32 1.5, %v3016
        %v3018 = vmul.f32 %v3013, %v3017
        %vm3019 = vweird.f32 %v2835
        %vm3020 = vweird.f32 %v3013
        %vm3021 = vmor %vm3019, %vm3020
        %v3022 = vsel %vm3021, %v3013, %v3018
        %v3023 = vrsqrt.pop %v2839
        %v3024 = vmul.f32 %v3023, %v2839
        %v3025 = vmul.f32 %v3024, %v3023
        %v3026 = vmul.f32 0.5, %v3025
        %v3027 = vsub.f32 1.5, %v3026
        %v3028 = vmul.f32 %v3023, %v3027
        %vm3029 = vweird.f32 %v2839
        %vm3030 = vweird.f32 %v3023
        %vm3031 = vmor %vm3029, %vm3030
        %v3032 = vsel %vm3031, %v3023, %v3028
        %v3033 = vrsqrt.pop %v2843
        %v3034 = vmul.f32 %v3033, %v2843
        %v3035 = vmul.f32 %v3034, %v3033
        %v3036 = vmul.f32 0.5, %v3035
        %v3037 = vsub.f32 1.5, %v3036
        %v3038 = vmul.f32 %v3033, %v3037
        %vm3039 = vweird.f32 %v2843
        %vm3040 = vweird.f32 %v3033
        %vm3041 = vmor %vm3039, %vm3040
        %v3042 = vsel %vm3041, %v3033, %v3038
        %v3043 = vrsqrt.pop %v2847
        %v3044 = vmul.f32 %v3043, %v2847
        %v3045 = vmul.f32 %v3044, %v3043
        %v3046 = vmul.f32 0.5, %v3045
        %v3047 = vsub.f32 1.5, %v3046
        %v3048 = vmul.f32 %v3043, %v3047
        %vm3049 = vweird.f32 %v2847
        %vm3050 = vweird.f32 %v3043
        %vm3051 = vmor %vm3049, %vm3050
        %v3052 = vsel %vm3051, %v3043, %v3048
        %v3053 = vrsqrt.pop %v2851
        %v3054 = vmul.f32 %v3053, %v2851
        %v3055 = vmul.f32 %v3054, %v3053
        %v3056 = vmul.f32 0.5, %v3055
        %v3057 = vsub.f32 1.5, %v3056
        %v3058 = vmul.f32 %v3053, %v3057
        %vm3059 = vweird.f32 %v2851
        %vm3060 = vweird.f32 %v3053
        %vm3061 = vmor %vm3059, %vm3060
        %v3062 = vsel %vm3061, %v3053, %v3058
        %v3063 = vrsqrt.pop %v2855
        %v3064 = vmul.f32 %v3063, %v2855
        %v3065 = vmul.f32 %v3064, %v3063
        %v3066 = vmul.f32 0.5, %v3065
        %v3067 = vsub.f32 1.5, %v3066
        %v3068 = vmul.f32 %v3063, %v3067
        %vm3069 = vweird.f32 %v2855
        %vm3070 = vweird.f32 %v3063
        %vm3071 = vmor %vm3069, %vm3070
        %v3072 = vsel %vm3071, %v3063, %v3068
        %v3073 = vrsqrt.pop %v2859
        %v3074 = vmul.f32 %v3073, %v2859
        %v3075 = vmul.f32 %v3074, %v3073
        %v3076 = vmul.f32 0.5, %v3075
        %v3077 = vsub.f32 1.5, %v3076
        %v3078 = vmul.f32 %v3073, %v3077
        %vm3079 = vweird.f32 %v2859
        %vm3080 = vweird.f32 %v3073
        %vm3081 = vmor %vm3079, %vm3080
        %v3082 = vsel %vm3081, %v3073, %v3078
        %v3083 = vrsqrt.pop %v2863
        %v3084 = vmul.f32 %v3083, %v2863
        %v3085 = vmul.f32 %v3084, %v3083
        %v3086 = vmul.f32 0.5, %v3085
        %v3087 = vsub.f32 1.5, %v3086
        %v3088 = vmul.f32 %v3083, %v3087
        %vm3089 = vweird.f32 %v2863
        %vm3090 = vweird.f32 %v3083
        %vm3091 = vmor %vm3089, %vm3090
        %v3092 = vsel %vm3091, %v3083, %v3088
        %v3093 = vrsqrt.pop %v2867
        %v3094 = vmul.f32 %v3093, %v2867
        %v3095 = vmul.f32 %v3094, %v3093
        %v3096 = vmul.f32 0.5, %v3095
        %v3097 = vsub.f32 1.5, %v3096
        %v3098 = vmul.f32 %v3093, %v3097
        %vm3099 = vweird.f32 %v2867
        %vm3100 = vweird.f32 %v3093
        %vm3101 = vmor %vm3099, %vm3100
        %v3102 = vsel %vm3101, %v3093, %v3098
        %v3103 = vrsqrt.pop %v2871
        %v3104 = vmul.f32 %v3103, %v2871
        %v3105 = vmul.f32 %v3104, %v3103
        %v3106 = vmul.f32 0.5, %v3105
        %v3107 = vsub.f32 1.5, %v3106
        %v3108 = vmul.f32 %v3103, %v3107
        %vm3109 = vweird.f32 %v2871
        %vm3110 = vweird.f32 %v3103
        %vm3111 = vmor %vm3109, %vm3110
        %v3112 = vsel %vm3111, %v3103, %v3108
        %v3113 = vmul.f32 %v1711, %v2962
        %v3114 = vmul.f32 %v1712, %v2972
        %v3115 = vmul.f32 %v1713, %v2982
        %v3116 = vmul.f32 %v1714, %v2992
        %v3117 = vmul.f32 %v1715, %v3002
        %v3118 = vmul.f32 %v1716, %v3012
        %v3119 = vmul.f32 %v1717, %v3022
        %v3120 = vmul.f32 %v1718, %v3032
        %v3121 = vmul.f32 %v1719, %v3042
        %v3122 = vmul.f32 %v1720, %v3052
        %v3123 = vmul.f32 %v1721, %v3062
        %v3124 = vmul.f32 %v1722, %v3072
        %v3125 = vmul.f32 %v1723, %v3082
        %v3126 = vmul.f32 %v1724, %v3092
        %v3127 = vmul.f32 %v1725, %v3102
        %v3128 = vmul.f32 %v1726, %v3112
        %s3129 = scalar_lea.vmem %s235, 8 [#allocation6]
        %3130 = vst [vmem:[%s3129] sm:$0xff] %v3113
        %3131 = vst [vmem:[%s3129 + $0x20] sm:$0xff] %v3114
        %3132 = vst [vmem:[%s3129 + $0x40] sm:$0xff] %v3115
        %3133 = vst [vmem:[%s3129 + $0x60] sm:$0xff] %v3116
        %3134 = vst [vmem:[%s3129 + $0x80] sm:$0xff] %v3117
        %3135 = vst [vmem:[%s3129 + $0xa0] sm:$0xff] %v3118
        %3136 = vst [vmem:[%s3129 + $0xc0] sm:$0xff] %v3119
        %3137 = vst [vmem:[%s3129 + $0xe0] sm:$0xff] %v3120
        %3138 = vst [vmem:[%s3129 + $0x100] sm:$0xff] %v3121
        %3139 = vst [vmem:[%s3129 + $0x120] sm:$0xff] %v3122
        %3140 = vst [vmem:[%s3129 + $0x140] sm:$0xff] %v3123
        %3141 = vst [vmem:[%s3129 + $0x160] sm:$0xff] %v3124
        %3142 = vst [vmem:[%s3129 + $0x180] sm:$0xff] %v3125
        %3143 = vst [vmem:[%s3129 + $0x1a0] sm:$0xff] %v3126
        %3144 = vst [vmem:[%s3129 + $0x1c0] sm:$0xff] %v3127
        %3145 = vst [vmem:[%s3129 + $0x1e0] sm:$0xff] %v3128
        %s3146 = scalar_lea.vmem %s210, 16 [#allocation3]
        %v3147 = vld [vmem:[%s3146] sm:$0xff]
        %v3148 = vld [vmem:[%s3146 + $0x20] sm:$0xff]
        %v3149 = vld [vmem:[%s3146 + $0x40] sm:$0xff]
        %v3150 = vld [vmem:[%s3146 + $0x60] sm:$0xff]
        %v3151 = vld [vmem:[%s3146 + $0x80] sm:$0xff]
        %v3152 = vld [vmem:[%s3146 + $0xa0] sm:$0xff]
        %v3153 = vld [vmem:[%s3146 + $0xc0] sm:$0xff]
        %v3154 = vld [vmem:[%s3146 + $0xe0] sm:$0xff]
        %v3155 = vld [vmem:[%s3146 + $0x100] sm:$0xff]
        %v3156 = vld [vmem:[%s3146 + $0x120] sm:$0xff]
        %v3157 = vld [vmem:[%s3146 + $0x140] sm:$0xff]
        %v3158 = vld [vmem:[%s3146 + $0x160] sm:$0xff]
        %v3159 = vld [vmem:[%s3146 + $0x180] sm:$0xff]
        %v3160 = vld [vmem:[%s3146 + $0x1a0] sm:$0xff]
        %v3161 = vld [vmem:[%s3146 + $0x1c0] sm:$0xff]
        %v3162 = vld [vmem:[%s3146 + $0x1e0] sm:$0xff]
        %v3163 = vmax.f32 %v3147, 1e-10
        %v3164 = vmax.f32 %v3148, 1e-10
        %v3165 = vmax.f32 %v3149, 1e-10
        %v3166 = vmax.f32 %v3150, 1e-10
        %v3167 = vmax.f32 %v3151, 1e-10
        %v3168 = vmax.f32 %v3152, 1e-10
        %v3169 = vmax.f32 %v3153, 1e-10
        %v3170 = vmax.f32 %v3154, 1e-10
        %v3171 = vmax.f32 %v3155, 1e-10
        %v3172 = vmax.f32 %v3156, 1e-10
        %v3173 = vmax.f32 %v3157, 1e-10
        %v3174 = vmax.f32 %v3158, 1e-10
        %v3175 = vmax.f32 %v3159, 1e-10
        %v3176 = vmax.f32 %v3160, 1e-10
        %v3177 = vmax.f32 %v3161, 1e-10
        %v3178 = vmax.f32 %v3162, 1e-10
        %v3179 = vrsqrt.pop %v3163
        %v3180 = vmul.f32 %v3179, %v3163
        %v3181 = vmul.f32 %v3180, %v3179
        %v3182 = vmul.f32 0.5, %v3181
        %v3183 = vsub.f32 1.5, %v3182
        %v3184 = vmul.f32 %v3179, %v3183
        %v3185 = vmul.f32 %v3163, %v3184
        %vm3186 = vcmp.eq.f32.partialorder %v3163, inf
        %v3187 = vsel %vm3186, %v3163, %v3185
        %vm3188 = vcmp.eq.f32.partialorder %v3163, 0.0
        %v3189 = vand.u32 %v3163, 2147483648
        %v3190 = vsel %vm3188, %v3189, %v3187
        %v3191 = vrsqrt.pop %v3164
        %v3192 = vmul.f32 %v3191, %v3164
        %v3193 = vmul.f32 %v3192, %v3191
        %v3194 = vmul.f32 0.5, %v3193
        %v3195 = vsub.f32 1.5, %v3194
        %v3196 = vmul.f32 %v3191, %v3195
        %v3197 = vmul.f32 %v3164, %v3196
        %vm3198 = vcmp.eq.f32.partialorder %v3164, inf
        %v3199 = vsel %vm3198, %v3164, %v3197
        %vm3200 = vcmp.eq.f32.partialorder %v3164, 0.0
        %v3201 = vand.u32 %v3164, 2147483648
        %v3202 = vsel %vm3200, %v3201, %v3199
        %v3203 = vrsqrt.pop %v3165
        %v3204 = vmul.f32 %v3203, %v3165
        %v3205 = vmul.f32 %v3204, %v3203
        %v3206 = vmul.f32 0.5, %v3205
        %v3207 = vsub.f32 1.5, %v3206
        %v3208 = vmul.f32 %v3203, %v3207
        %v3209 = vmul.f32 %v3165, %v3208
        %vm3210 = vcmp.eq.f32.partialorder %v3165, inf
        %v3211 = vsel %vm3210, %v3165, %v3209
        %vm3212 = vcmp.eq.f32.partialorder %v3165, 0.0
        %v3213 = vand.u32 %v3165, 2147483648
        %v3214 = vsel %vm3212, %v3213, %v3211
        %v3215 = vrsqrt.pop %v3166
        %v3216 = vmul.f32 %v3215, %v3166
        %v3217 = vmul.f32 %v3216, %v3215
        %v3218 = vmul.f32 0.5, %v3217
        %v3219 = vsub.f32 1.5, %v3218
        %v3220 = vmul.f32 %v3215, %v3219
        %v3221 = vmul.f32 %v3166, %v3220
        %vm3222 = vcmp.eq.f32.partialorder %v3166, inf
        %v3223 = vsel %vm3222, %v3166, %v3221
        %vm3224 = vcmp.eq.f32.partialorder %v3166, 0.0
        %v3225 = vand.u32 %v3166, 2147483648
        %v3226 = vsel %vm3224, %v3225, %v3223
        %v3227 = vrsqrt.pop %v3167
        %v3228 = vmul.f32 %v3227, %v3167
        %v3229 = vmul.f32 %v3228, %v3227
        %v3230 = vmul.f32 0.5, %v3229
        %v3231 = vsub.f32 1.5, %v3230
        %v3232 = vmul.f32 %v3227, %v3231
        %v3233 = vmul.f32 %v3167, %v3232
        %vm3234 = vcmp.eq.f32.partialorder %v3167, inf
        %v3235 = vsel %vm3234, %v3167, %v3233
        %vm3236 = vcmp.eq.f32.partialorder %v3167, 0.0
        %v3237 = vand.u32 %v3167, 2147483648
        %v3238 = vsel %vm3236, %v3237, %v3235
        %v3239 = vrsqrt.pop %v3168
        %v3240 = vmul.f32 %v3239, %v3168
        %v3241 = vmul.f32 %v3240, %v3239
        %v3242 = vmul.f32 0.5, %v3241
        %v3243 = vsub.f32 1.5, %v3242
        %v3244 = vmul.f32 %v3239, %v3243
        %v3245 = vmul.f32 %v3168, %v3244
        %vm3246 = vcmp.eq.f32.partialorder %v3168, inf
        %v3247 = vsel %vm3246, %v3168, %v3245
        %vm3248 = vcmp.eq.f32.partialorder %v3168, 0.0
        %v3249 = vand.u32 %v3168, 2147483648
        %v3250 = vsel %vm3248, %v3249, %v3247
        %v3251 = vrsqrt.pop %v3169
        %v3252 = vmul.f32 %v3251, %v3169
        %v3253 = vmul.f32 %v3252, %v3251
        %v3254 = vmul.f32 0.5, %v3253
        %v3255 = vsub.f32 1.5, %v3254
        %v3256 = vmul.f32 %v3251, %v3255
        %v3257 = vmul.f32 %v3169, %v3256
        %vm3258 = vcmp.eq.f32.partialorder %v3169, inf
        %v3259 = vsel %vm3258, %v3169, %v3257
        %vm3260 = vcmp.eq.f32.partialorder %v3169, 0.0
        %v3261 = vand.u32 %v3169, 2147483648
        %v3262 = vsel %vm3260, %v3261, %v3259
        %v3263 = vrsqrt.pop %v3170
        %v3264 = vmul.f32 %v3263, %v3170
        %v3265 = vmul.f32 %v3264, %v3263
        %v3266 = vmul.f32 0.5, %v3265
        %v3267 = vsub.f32 1.5, %v3266
        %v3268 = vmul.f32 %v3263, %v3267
        %v3269 = vmul.f32 %v3170, %v3268
        %vm3270 = vcmp.eq.f32.partialorder %v3170, inf
        %v3271 = vsel %vm3270, %v3170, %v3269
        %vm3272 = vcmp.eq.f32.partialorder %v3170, 0.0
        %v3273 = vand.u32 %v3170, 2147483648
        %v3274 = vsel %vm3272, %v3273, %v3271
        %v3275 = vrsqrt.pop %v3171
        %v3276 = vmul.f32 %v3275, %v3171
        %v3277 = vmul.f32 %v3276, %v3275
        %v3278 = vmul.f32 0.5, %v3277
        %v3279 = vsub.f32 1.5, %v3278
        %v3280 = vmul.f32 %v3275, %v3279
        %v3281 = vmul.f32 %v3171, %v3280
        %vm3282 = vcmp.eq.f32.partialorder %v3171, inf
        %v3283 = vsel %vm3282, %v3171, %v3281
        %vm3284 = vcmp.eq.f32.partialorder %v3171, 0.0
        %v3285 = vand.u32 %v3171, 2147483648
        %v3286 = vsel %vm3284, %v3285, %v3283
        %v3287 = vrsqrt.pop %v3172
        %v3288 = vmul.f32 %v3287, %v3172
        %v3289 = vmul.f32 %v3288, %v3287
        %v3290 = vmul.f32 0.5, %v3289
        %v3291 = vsub.f32 1.5, %v3290
        %v3292 = vmul.f32 %v3287, %v3291
        %v3293 = vmul.f32 %v3172, %v3292
        %vm3294 = vcmp.eq.f32.partialorder %v3172, inf
        %v3295 = vsel %vm3294, %v3172, %v3293
        %vm3296 = vcmp.eq.f32.partialorder %v3172, 0.0
        %v3297 = vand.u32 %v3172, 2147483648
        %v3298 = vsel %vm3296, %v3297, %v3295
        %v3299 = vrsqrt.pop %v3173
        %v3300 = vmul.f32 %v3299, %v3173
        %v3301 = vmul.f32 %v3300, %v3299
        %v3302 = vmul.f32 0.5, %v3301
        %v3303 = vsub.f32 1.5, %v3302
        %v3304 = vmul.f32 %v3299, %v3303
        %v3305 = vmul.f32 %v3173, %v3304
        %vm3306 = vcmp.eq.f32.partialorder %v3173, inf
        %v3307 = vsel %vm3306, %v3173, %v3305
        %vm3308 = vcmp.eq.f32.partialorder %v3173, 0.0
        %v3309 = vand.u32 %v3173, 2147483648
        %v3310 = vsel %vm3308, %v3309, %v3307
        %v3311 = vrsqrt.pop %v3174
        %v3312 = vmul.f32 %v3311, %v3174
        %v3313 = vmul.f32 %v3312, %v3311
        %v3314 = vmul.f32 0.5, %v3313
        %v3315 = vsub.f32 1.5, %v3314
        %v3316 = vmul.f32 %v3311, %v3315
        %v3317 = vmul.f32 %v3174, %v3316
        %vm3318 = vcmp.eq.f32.partialorder %v3174, inf
        %v3319 = vsel %vm3318, %v3174, %v3317
        %vm3320 = vcmp.eq.f32.partialorder %v3174, 0.0
        %v3321 = vand.u32 %v3174, 2147483648
        %v3322 = vsel %vm3320, %v3321, %v3319
        %v3323 = vrsqrt.pop %v3175
        %v3324 = vmul.f32 %v3323, %v3175
        %v3325 = vmul.f32 %v3324, %v3323
        %v3326 = vmul.f32 0.5, %v3325
        %v3327 = vsub.f32 1.5, %v3326
        %v3328 = vmul.f32 %v3323, %v3327
        %v3329 = vmul.f32 %v3175, %v3328
        %vm3330 = vcmp.eq.f32.partialorder %v3175, inf
        %v3331 = vsel %vm3330, %v3175, %v3329
        %vm3332 = vcmp.eq.f32.partialorder %v3175, 0.0
        %v3333 = vand.u32 %v3175, 2147483648
        %v3334 = vsel %vm3332, %v3333, %v3331
        %v3335 = vrsqrt.pop %v3176
        %v3336 = vmul.f32 %v3335, %v3176
        %v3337 = vmul.f32 %v3336, %v3335
        %v3338 = vmul.f32 0.5, %v3337
        %v3339 = vsub.f32 1.5, %v3338
        %v3340 = vmul.f32 %v3335, %v3339
        %v3341 = vmul.f32 %v3176, %v3340
        %vm3342 = vcmp.eq.f32.partialorder %v3176, inf
        %v3343 = vsel %vm3342, %v3176, %v3341
        %vm3344 = vcmp.eq.f32.partialorder %v3176, 0.0
        %v3345 = vand.u32 %v3176, 2147483648
        %v3346 = vsel %vm3344, %v3345, %v3343
        %v3347 = vrsqrt.pop %v3177
        %v3348 = vmul.f32 %v3347, %v3177
        %v3349 = vmul.f32 %v3348, %v3347
        %v3350 = vmul.f32 0.5, %v3349
        %v3351 = vsub.f32 1.5, %v3350
        %v3352 = vmul.f32 %v3347, %v3351
        %v3353 = vmul.f32 %v3177, %v3352
        %vm3354 = vcmp.eq.f32.partialorder %v3177, inf
        %v3355 = vsel %vm3354, %v3177, %v3353
        %vm3356 = vcmp.eq.f32.partialorder %v3177, 0.0
        %v3357 = vand.u32 %v3177, 2147483648
        %v3358 = vsel %vm3356, %v3357, %v3355
        %v3359 = vrsqrt.pop %v3178
        %v3360 = vmul.f32 %v3359, %v3178
        %v3361 = vmul.f32 %v3360, %v3359
        %v3362 = vmul.f32 0.5, %v3361
        %v3363 = vsub.f32 1.5, %v3362
        %v3364 = vmul.f32 %v3359, %v3363
        %v3365 = vmul.f32 %v3178, %v3364
        %vm3366 = vcmp.eq.f32.partialorder %v3178, inf
        %v3367 = vsel %vm3366, %v3178, %v3365
        %vm3368 = vcmp.eq.f32.partialorder %v3178, 0.0
        %v3369 = vand.u32 %v3178, 2147483648
        %v3370 = vsel %vm3368, %v3369, %v3367
        %v3371 = vld [vmem:[%s1] sm:$0xff]
        %v3372 = vld [vmem:[%s1 + $0x8] sm:$0xff]
        %v3373 = vld [vmem:[%s1 + $0x10] sm:$0xff]
        %v3374 = vld [vmem:[%s1 + $0x18] sm:$0xff]
        %v3375 = vld [vmem:[%s1 + $0x20] sm:$0xff]
        %v3376 = vld [vmem:[%s1 + $0x28] sm:$0xff]
        %v3377 = vld [vmem:[%s1 + $0x30] sm:$0xff]
        %v3378 = vld [vmem:[%s1 + $0x38] sm:$0xff]
        %v3379 = vld [vmem:[%s1 + $0x40] sm:$0xff]
        %v3380 = vld [vmem:[%s1 + $0x48] sm:$0xff]
        %v3381 = vld [vmem:[%s1 + $0x50] sm:$0xff]
        %v3382 = vld [vmem:[%s1 + $0x58] sm:$0xff]
        %v3383 = vld [vmem:[%s1 + $0x60] sm:$0xff]
        %v3384 = vld [vmem:[%s1 + $0x68] sm:$0xff]
        %v3385 = vld [vmem:[%s1 + $0x70] sm:$0xff]
        %v3386 = vld [vmem:[%s1 + $0x78] sm:$0xff]
        %v3387 = vld [vmem:[#allocation2] sm:$0xff]
        %v3388 = vld [vmem:[#allocation2 + $0x8] sm:$0xff]
        %v3389 = vld [vmem:[#allocation2 + $0x10] sm:$0xff]
        %v3390 = vld [vmem:[#allocation2 + $0x18] sm:$0xff]
        %v3391 = vld [vmem:[#allocation2 + $0x20] sm:$0xff]
        %v3392 = vld [vmem:[#allocation2 + $0x28] sm:$0xff]
        %v3393 = vld [vmem:[#allocation2 + $0x30] sm:$0xff]
        %v3394 = vld [vmem:[#allocation2 + $0x38] sm:$0xff]
        %v3395 = vld [vmem:[#allocation2 + $0x40] sm:$0xff]
        %v3396 = vld [vmem:[#allocation2 + $0x48] sm:$0xff]
        %v3397 = vld [vmem:[#allocation2 + $0x50] sm:$0xff]
        %v3398 = vld [vmem:[#allocation2 + $0x58] sm:$0xff]
        %v3399 = vld [vmem:[#allocation2 + $0x60] sm:$0xff]
        %v3400 = vld [vmem:[#allocation2 + $0x68] sm:$0xff]
        %v3401 = vld [vmem:[#allocation2 + $0x70] sm:$0xff]
        %v3402 = vld [vmem:[#allocation2 + $0x78] sm:$0xff]
        %v3403 = vld [vmem:[%s2] sm:$0x1]
        %3405 = vset.pattern.permute.xlu0 0
        %3406 = vperm.xlu0 %3405, %v3387
        %v3407 = vpop.permute.xlu0 %3406
        %3410 = vset.pattern.permute.xlu0 0
        %3411 = vperm.xlu0 %3410, %v3388
        %v3412 = vpop.permute.xlu0 %3411
        %3415 = vset.pattern.permute.xlu0 0
        %3416 = vperm.xlu0 %3415, %v3389
        %v3417 = vpop.permute.xlu0 %3416
        %3420 = vset.pattern.permute.xlu0 0
        %3421 = vperm.xlu0 %3420, %v3390
        %v3422 = vpop.permute.xlu0 %3421
        %3425 = vset.pattern.permute.xlu0 0
        %3426 = vperm.xlu0 %3425, %v3391
        %v3427 = vpop.permute.xlu0 %3426
        %3430 = vset.pattern.permute.xlu0 0
        %3431 = vperm.xlu0 %3430, %v3392
        %v3432 = vpop.permute.xlu0 %3431
        %3435 = vset.pattern.permute.xlu0 0
        %3436 = vperm.xlu0 %3435, %v3393
        %v3437 = vpop.permute.xlu0 %3436
        %3440 = vset.pattern.permute.xlu0 0
        %3441 = vperm.xlu0 %3440, %v3394
        %v3442 = vpop.permute.xlu0 %3441
        %3445 = vset.pattern.permute.xlu0 0
        %3446 = vperm.xlu0 %3445, %v3395
        %v3447 = vpop.permute.xlu0 %3446
        %3450 = vset.pattern.permute.xlu0 0
        %3451 = vperm.xlu0 %3450, %v3396
        %v3452 = vpop.permute.xlu0 %3451
        %3455 = vset.pattern.permute.xlu0 0
        %3456 = vperm.xlu0 %3455, %v3397
        %v3457 = vpop.permute.xlu0 %3456
        %3460 = vset.pattern.permute.xlu0 0
        %3461 = vperm.xlu0 %3460, %v3398
        %v3462 = vpop.permute.xlu0 %3461
        %3465 = vset.pattern.permute.xlu0 0
        %3466 = vperm.xlu0 %3465, %v3399
        %v3467 = vpop.permute.xlu0 %3466
        %3470 = vset.pattern.permute.xlu0 0
        %3471 = vperm.xlu0 %3470, %v3400
        %v3472 = vpop.permute.xlu0 %3471
        %3475 = vset.pattern.permute.xlu0 0
        %3476 = vperm.xlu0 %3475, %v3401
        %v3477 = vpop.permute.xlu0 %3476
        %3480 = vset.pattern.permute.xlu0 0
        %3481 = vperm.xlu0 %3480, %v3402
        %v3482 = vpop.permute.xlu0 %3481
        %v3485 = vperm.slane %v3403, 0
        %v3487 = vmul.f32 %v3407, %v3485
        %v3488 = vmul.f32 %v3412, %v3485
        %v3489 = vmul.f32 %v3417, %v3485
        %v3490 = vmul.f32 %v3422, %v3485
        %v3491 = vmul.f32 %v3427, %v3485
        %v3492 = vmul.f32 %v3432, %v3485
        %v3493 = vmul.f32 %v3437, %v3485
        %v3494 = vmul.f32 %v3442, %v3485
        %v3495 = vmul.f32 %v3447, %v3485
        %v3496 = vmul.f32 %v3452, %v3485
        %v3497 = vmul.f32 %v3457, %v3485
        %v3498 = vmul.f32 %v3462, %v3485
        %v3499 = vmul.f32 %v3467, %v3485
        %v3500 = vmul.f32 %v3472, %v3485
        %v3501 = vmul.f32 %v3477, %v3485
        %v3502 = vmul.f32 %v3482, %v3485
        %v3503 = vand.u32 %v3386, 4294901760
        %3504 = vmatpush.msra.mxu0 %v3503
        %v3505 = vand.u32 %v3385, 4294901760
        %3506 = vmatpush.msra.mxu0 %v3505
        %v3507 = vand.u32 %v3384, 4294901760
        %3508 = vmatpush.msra.mxu0 %v3507
        %v3509 = vand.u32 %v3383, 4294901760
        %3510 = vmatpush.msra.mxu0 %v3509
        %v3511 = vand.u32 %v3382, 4294901760
        %3512 = vmatpush.msra.mxu0 %v3511
        %v3513 = vand.u32 %v3381, 4294901760
        %3514 = vmatpush.msra.mxu0 %v3513
        %v3515 = vand.u32 %v3380, 4294901760
        %3516 = vmatpush.msra.mxu0 %v3515
        %v3517 = vand.u32 %v3379, 4294901760
        %3518 = vmatpush.msra.mxu0 %v3517
        %v3519 = vand.u32 %v3378, 4294901760
        %3520 = vmatpush.msra.mxu0 %v3519
        %v3521 = vand.u32 %v3377, 4294901760
        %3522 = vmatpush.msra.mxu0 %v3521
        %v3523 = vand.u32 %v3376, 4294901760
        %3524 = vmatpush.msra.mxu0 %v3523
        %v3525 = vand.u32 %v3375, 4294901760
        %3526 = vmatpush.msra.mxu0 %v3525
        %v3527 = vand.u32 %v3374, 4294901760
        %3528 = vmatpush.msra.mxu0 %v3527
        %v3529 = vand.u32 %v3373, 4294901760
        %3530 = vmatpush.msra.mxu0 %v3529
        %v3531 = vand.u32 %v3372, 4294901760
        %3532 = vmatpush.msra.mxu0 %v3531
        %v3533 = vand.u32 %v3371, 4294901760
        %3534 = vmatpush.msra.mxu0 %v3533
        %v3535 = vand.u32 %v3190, 4294901760
        %v3536 = vsub.f32 %v3190, %v3535
        %v3537 = vand.u32 %v3536, 4294901760
        %v3538 = vsub.f32 %v3536, %v3537
        %v3539 = vand.u32 %v3538, 4294901760
        %3540 = vmatmul.f32.gmra.mxu0 %v3539
        %v3541 = vpop.f32.mrf.mxu0
        %v3542 = vadd.f32 %v3487, %v3541
        %v3543 = vand.u32 %v3202, 4294901760
        %v3544 = vsub.f32 %v3202, %v3543
        %v3545 = vand.u32 %v3544, 4294901760
        %v3546 = vsub.f32 %v3544, %v3545
        %v3547 = vand.u32 %v3546, 4294901760
        %3548 = vmatmul.f32.gmra.mxu0 %v3547
        %v3549 = vpop.f32.mrf.mxu0
        %v3550 = vadd.f32 %v3488, %v3549
        %v3551 = vand.u32 %v3214, 4294901760
        %v3552 = vsub.f32 %v3214, %v3551
        %v3553 = vand.u32 %v3552, 4294901760
        %v3554 = vsub.f32 %v3552, %v3553
        %v3555 = vand.u32 %v3554, 4294901760
        %3556 = vmatmul.f32.gmra.mxu0 %v3555
        %v3557 = vpop.f32.mrf.mxu0
        %v3558 = vadd.f32 %v3489, %v3557
        %v3559 = vand.u32 %v3226, 4294901760
        %v3560 = vsub.f32 %v3226, %v3559
        %v3561 = vand.u32 %v3560, 4294901760
        %v3562 = vsub.f32 %v3560, %v3561
        %v3563 = vand.u32 %v3562, 4294901760
        %3564 = vmatmul.f32.gmra.mxu0 %v3563
        %v3565 = vpop.f32.mrf.mxu0
        %v3566 = vadd.f32 %v3490, %v3565
        %v3567 = vand.u32 %v3238, 4294901760
        %v3568 = vsub.f32 %v3238, %v3567
        %v3569 = vand.u32 %v3568, 4294901760
        %v3570 = vsub.f32 %v3568, %v3569
        %v3571 = vand.u32 %v3570, 4294901760
        %3572 = vmatmul.f32.gmra.mxu0 %v3571
        %v3573 = vpop.f32.mrf.mxu0
        %v3574 = vadd.f32 %v3491, %v3573
        %v3575 = vand.u32 %v3250, 4294901760
        %v3576 = vsub.f32 %v3250, %v3575
        %v3577 = vand.u32 %v3576, 4294901760
        %v3578 = vsub.f32 %v3576, %v3577
        %v3579 = vand.u32 %v3578, 4294901760
        %3580 = vmatmul.f32.gmra.mxu0 %v3579
        %v3581 = vpop.f32.mrf.mxu0
        %v3582 = vadd.f32 %v3492, %v3581
        %v3583 = vand.u32 %v3262, 4294901760
        %v3584 = vsub.f32 %v3262, %v3583
        %v3585 = vand.u32 %v3584, 4294901760
        %v3586 = vsub.f32 %v3584, %v3585
        %v3587 = vand.u32 %v3586, 4294901760
        %3588 = vmatmul.f32.gmra.mxu0 %v3587
        %v3589 = vpop.f32.mrf.mxu0
        %v3590 = vadd.f32 %v3493, %v3589
        %v3591 = vand.u32 %v3274, 4294901760
        %v3592 = vsub.f32 %v3274, %v3591
        %v3593 = vand.u32 %v3592, 4294901760
        %v3594 = vsub.f32 %v3592, %v3593
        %v3595 = vand.u32 %v3594, 4294901760
        %3596 = vmatmul.f32.gmra.mxu0 %v3595
        %v3597 = vpop.f32.mrf.mxu0
        %v3598 = vadd.f32 %v3494, %v3597
        %v3599 = vand.u32 %v3286, 4294901760
        %v3600 = vsub.f32 %v3286, %v3599
        %v3601 = vand.u32 %v3600, 4294901760
        %v3602 = vsub.f32 %v3600, %v3601
        %v3603 = vand.u32 %v3602, 4294901760
        %3604 = vmatmul.f32.gmra.mxu0 %v3603
        %v3605 = vpop.f32.mrf.mxu0
        %v3606 = vadd.f32 %v3495, %v3605
        %v3607 = vand.u32 %v3298, 4294901760
        %v3608 = vsub.f32 %v3298, %v3607
        %v3609 = vand.u32 %v3608, 4294901760
        %v3610 = vsub.f32 %v3608, %v3609
        %v3611 = vand.u32 %v3610, 4294901760
        %3612 = vmatmul.f32.gmra.mxu0 %v3611
        %v3613 = vpop.f32.mrf.mxu0
        %v3614 = vadd.f32 %v3496, %v3613
        %v3615 = vand.u32 %v3310, 4294901760
        %v3616 = vsub.f32 %v3310, %v3615
        %v3617 = vand.u32 %v3616, 4294901760
        %v3618 = vsub.f32 %v3616, %v3617
        %v3619 = vand.u32 %v3618, 4294901760
        %3620 = vmatmul.f32.gmra.mxu0 %v3619
        %v3621 = vpop.f32.mrf.mxu0
        %v3622 = vadd.f32 %v3497, %v3621
        %v3623 = vand.u32 %v3322, 4294901760
        %v3624 = vsub.f32 %v3322, %v3623
        %v3625 = vand.u32 %v3624, 4294901760
        %v3626 = vsub.f32 %v3624, %v3625
        %v3627 = vand.u32 %v3626, 4294901760
        %3628 = vmatmul.f32.gmra.mxu0 %v3627
        %v3629 = vpop.f32.mrf.mxu0
        %v3630 = vadd.f32 %v3498, %v3629
        %v3631 = vand.u32 %v3334, 4294901760
        %v3632 = vsub.f32 %v3334, %v3631
        %v3633 = vand.u32 %v3632, 4294901760
        %v3634 = vsub.f32 %v3632, %v3633
        %v3635 = vand.u32 %v3634, 4294901760
        %3636 = vmatmul.f32.gmra.mxu0 %v3635
        %v3637 = vpop.f32.mrf.mxu0
        %v3638 = vadd.f32 %v3499, %v3637
        %v3639 = vand.u32 %v3346, 4294901760
        %v3640 = vsub.f32 %v3346, %v3639
        %v3641 = vand.u32 %v3640, 4294901760
        %v3642 = vsub.f32 %v3640, %v3641
        %v3643 = vand.u32 %v3642, 4294901760
        %3644 = vmatmul.f32.gmra.mxu0 %v3643
        %v3645 = vpop.f32.mrf.mxu0
        %v3646 = vadd.f32 %v3500, %v3645
        %v3647 = vand.u32 %v3358, 4294901760
        %v3648 = vsub.f32 %v3358, %v3647
        %v3649 = vand.u32 %v3648, 4294901760
        %v3650 = vsub.f32 %v3648, %v3649
        %v3651 = vand.u32 %v3650, 4294901760
        %3652 = vmatmul.f32.gmra.mxu0 %v3651
        %v3653 = vpop.f32.mrf.mxu0
        %v3654 = vadd.f32 %v3501, %v3653
        %v3655 = vand.u32 %v3370, 4294901760
        %v3656 = vsub.f32 %v3370, %v3655
        %v3657 = vand.u32 %v3656, 4294901760
        %v3658 = vsub.f32 %v3656, %v3657
        %v3659 = vand.u32 %v3658, 4294901760
        %3660 = vmatmul.f32.gmra.mxu0 %v3659
        %v3661 = vpop.f32.mrf.mxu0
        %v3662 = vadd.f32 %v3502, %v3661
        %3663 = vdwg.mxu0
        %v3664 = vand.u32 %v3386, 4294901760
        %v3665 = vsub.f32 %v3386, %v3664
        %v3666 = vand.u32 %v3665, 4294901760
        %v3667 = vsub.f32 %v3665, %v3666
        %v3668 = vand.u32 %v3667, 4294901760
        %3669 = vmatpush.msra.mxu0 %v3668
        %v3670 = vand.u32 %v3385, 4294901760
        %v3671 = vsub.f32 %v3385, %v3670
        %v3672 = vand.u32 %v3671, 4294901760
        %v3673 = vsub.f32 %v3671, %v3672
        %v3674 = vand.u32 %v3673, 4294901760
        %3675 = vmatpush.msra.mxu0 %v3674
        %v3676 = vand.u32 %v3384, 4294901760
        %v3677 = vsub.f32 %v3384, %v3676
        %v3678 = vand.u32 %v3677, 4294901760
        %v3679 = vsub.f32 %v3677, %v3678
        %v3680 = vand.u32 %v3679, 4294901760
        %3681 = vmatpush.msra.mxu0 %v3680
        %v3682 = vand.u32 %v3383, 4294901760
        %v3683 = vsub.f32 %v3383, %v3682
        %v3684 = vand.u32 %v3683, 4294901760
        %v3685 = vsub.f32 %v3683, %v3684
        %v3686 = vand.u32 %v3685, 4294901760
        %3687 = vmatpush.msra.mxu0 %v3686
        %v3688 = vand.u32 %v3382, 4294901760
        %v3689 = vsub.f32 %v3382, %v3688
        %v3690 = vand.u32 %v3689, 4294901760
        %v3691 = vsub.f32 %v3689, %v3690
        %v3692 = vand.u32 %v3691, 4294901760
        %3693 = vmatpush.msra.mxu0 %v3692
        %v3694 = vand.u32 %v3381, 4294901760
        %v3695 = vsub.f32 %v3381, %v3694
        %v3696 = vand.u32 %v3695, 4294901760
        %v3697 = vsub.f32 %v3695, %v3696
        %v3698 = vand.u32 %v3697, 4294901760
        %3699 = vmatpush.msra.mxu0 %v3698
        %v3700 = vand.u32 %v3380, 4294901760
        %v3701 = vsub.f32 %v3380, %v3700
        %v3702 = vand.u32 %v3701, 4294901760
        %v3703 = vsub.f32 %v3701, %v3702
        %v3704 = vand.u32 %v3703, 4294901760
        %3705 = vmatpush.msra.mxu0 %v3704
        %v3706 = vand.u32 %v3379, 4294901760
        %v3707 = vsub.f32 %v3379, %v3706
        %v3708 = vand.u32 %v3707, 4294901760
        %v3709 = vsub.f32 %v3707, %v3708
        %v3710 = vand.u32 %v3709, 4294901760
        %3711 = vmatpush.msra.mxu0 %v3710
        %v3712 = vand.u32 %v3378, 4294901760
        %v3713 = vsub.f32 %v3378, %v3712
        %v3714 = vand.u32 %v3713, 4294901760
        %v3715 = vsub.f32 %v3713, %v3714
        %v3716 = vand.u32 %v3715, 4294901760
        %3717 = vmatpush.msra.mxu0 %v3716
        %v3718 = vand.u32 %v3377, 4294901760
        %v3719 = vsub.f32 %v3377, %v3718
        %v3720 = vand.u32 %v3719, 4294901760
        %v3721 = vsub.f32 %v3719, %v3720
        %v3722 = vand.u32 %v3721, 4294901760
        %3723 = vmatpush.msra.mxu0 %v3722
        %v3724 = vand.u32 %v3376, 4294901760
        %v3725 = vsub.f32 %v3376, %v3724
        %v3726 = vand.u32 %v3725, 4294901760
        %v3727 = vsub.f32 %v3725, %v3726
        %v3728 = vand.u32 %v3727, 4294901760
        %3729 = vmatpush.msra.mxu0 %v3728
        %v3730 = vand.u32 %v3375, 4294901760
        %v3731 = vsub.f32 %v3375, %v3730
        %v3732 = vand.u32 %v3731, 4294901760
        %v3733 = vsub.f32 %v3731, %v3732
        %v3734 = vand.u32 %v3733, 4294901760
        %3735 = vmatpush.msra.mxu0 %v3734
        %v3736 = vand.u32 %v3374, 4294901760
        %v3737 = vsub.f32 %v3374, %v3736
        %v3738 = vand.u32 %v3737, 4294901760
        %v3739 = vsub.f32 %v3737, %v3738
        %v3740 = vand.u32 %v3739, 4294901760
        %3741 = vmatpush.msra.mxu0 %v3740
        %v3742 = vand.u32 %v3373, 4294901760
        %v3743 = vsub.f32 %v3373, %v3742
        %v3744 = vand.u32 %v3743, 4294901760
        %v3745 = vsub.f32 %v3743, %v3744
        %v3746 = vand.u32 %v3745, 4294901760
        %3747 = vmatpush.msra.mxu0 %v3746
        %v3748 = vand.u32 %v3372, 4294901760
        %v3749 = vsub.f32 %v3372, %v3748
        %v3750 = vand.u32 %v3749, 4294901760
        %v3751 = vsub.f32 %v3749, %v3750
        %v3752 = vand.u32 %v3751, 4294901760
        %3753 = vmatpush.msra.mxu0 %v3752
        %v3754 = vand.u32 %v3371, 4294901760
        %v3755 = vsub.f32 %v3371, %v3754
        %v3756 = vand.u32 %v3755, 4294901760
        %v3757 = vsub.f32 %v3755, %v3756
        %v3758 = vand.u32 %v3757, 4294901760
        %3759 = vmatpush.msra.mxu0 %v3758
        %v3760 = vand.u32 %v3190, 4294901760
        %3761 = vmatmul.f32.gmra.mxu0 %v3760
        %v3762 = vpop.f32.mrf.mxu0
        %v3763 = vadd.f32 %v3542, %v3762
        %v3764 = vand.u32 %v3202, 4294901760
        %3765 = vmatmul.f32.gmra.mxu0 %v3764
        %v3766 = vpop.f32.mrf.mxu0
        %v3767 = vadd.f32 %v3550, %v3766
        %v3768 = vand.u32 %v3214, 4294901760
        %3769 = vmatmul.f32.gmra.mxu0 %v3768
        %v3770 = vpop.f32.mrf.mxu0
        %v3771 = vadd.f32 %v3558, %v3770
        %v3772 = vand.u32 %v3226, 4294901760
        %3773 = vmatmul.f32.gmra.mxu0 %v3772
        %v3774 = vpop.f32.mrf.mxu0
        %v3775 = vadd.f32 %v3566, %v3774
        %v3776 = vand.u32 %v3238, 4294901760
        %3777 = vmatmul.f32.gmra.mxu0 %v3776
        %v3778 = vpop.f32.mrf.mxu0
        %v3779 = vadd.f32 %v3574, %v3778
        %v3780 = vand.u32 %v3250, 4294901760
        %3781 = vmatmul.f32.gmra.mxu0 %v3780
        %v3782 = vpop.f32.mrf.mxu0
        %v3783 = vadd.f32 %v3582, %v3782
        %v3784 = vand.u32 %v3262, 4294901760
        %3785 = vmatmul.f32.gmra.mxu0 %v3784
        %v3786 = vpop.f32.mrf.mxu0
        %v3787 = vadd.f32 %v3590, %v3786
        %v3788 = vand.u32 %v3274, 4294901760
        %3789 = vmatmul.f32.gmra.mxu0 %v3788
        %v3790 = vpop.f32.mrf.mxu0
        %v3791 = vadd.f32 %v3598, %v3790
        %v3792 = vand.u32 %v3286, 4294901760
        %3793 = vmatmul.f32.gmra.mxu0 %v3792
        %v3794 = vpop.f32.mrf.mxu0
        %v3795 = vadd.f32 %v3606, %v3794
        %v3796 = vand.u32 %v3298, 4294901760
        %3797 = vmatmul.f32.gmra.mxu0 %v3796
        %v3798 = vpop.f32.mrf.mxu0
        %v3799 = vadd.f32 %v3614, %v3798
        %v3800 = vand.u32 %v3310, 4294901760
        %3801 = vmatmul.f32.gmra.mxu0 %v3800
        %v3802 = vpop.f32.mrf.mxu0
        %v3803 = vadd.f32 %v3622, %v3802
        %v3804 = vand.u32 %v3322, 4294901760
        %3805 = vmatmul.f32.gmra.mxu0 %v3804
        %v3806 = vpop.f32.mrf.mxu0
        %v3807 = vadd.f32 %v3630, %v3806
        %v3808 = vand.u32 %v3334, 4294901760
        %3809 = vmatmul.f32.gmra.mxu0 %v3808
        %v3810 = vpop.f32.mrf.mxu0
        %v3811 = vadd.f32 %v3638, %v3810
        %v3812 = vand.u32 %v3346, 4294901760
        %3813 = vmatmul.f32.gmra.mxu0 %v3812
        %v3814 = vpop.f32.mrf.mxu0
        %v3815 = vadd.f32 %v3646, %v3814
        %v3816 = vand.u32 %v3358, 4294901760
        %3817 = vmatmul.f32.gmra.mxu0 %v3816
        %v3818 = vpop.f32.mrf.mxu0
        %v3819 = vadd.f32 %v3654, %v3818
        %v3820 = vand.u32 %v3370, 4294901760
        %3821 = vmatmul.f32.gmra.mxu0 %v3820
        %v3822 = vpop.f32.mrf.mxu0
        %v3823 = vadd.f32 %v3662, %v3822
        %3824 = vdwg.mxu0
        %v3825 = vand.u32 %v3386, 4294901760
        %v3826 = vsub.f32 %v3386, %v3825
        %3827 = vmatpush.msra.mxu0 %v3826
        %v3828 = vand.u32 %v3385, 4294901760
        %v3829 = vsub.f32 %v3385, %v3828
        %3830 = vmatpush.msra.mxu0 %v3829
        %v3831 = vand.u32 %v3384, 4294901760
        %v3832 = vsub.f32 %v3384, %v3831
        %3833 = vmatpush.msra.mxu0 %v3832
        %v3834 = vand.u32 %v3383, 4294901760
        %v3835 = vsub.f32 %v3383, %v3834
        %3836 = vmatpush.msra.mxu0 %v3835
        %v3837 = vand.u32 %v3382, 4294901760
        %v3838 = vsub.f32 %v3382, %v3837
        %3839 = vmatpush.msra.mxu0 %v3838
        %v3840 = vand.u32 %v3381, 4294901760
        %v3841 = vsub.f32 %v3381, %v3840
        %3842 = vmatpush.msra.mxu0 %v3841
        %v3843 = vand.u32 %v3380, 4294901760
        %v3844 = vsub.f32 %v3380, %v3843
        %3845 = vmatpush.msra.mxu0 %v3844
        %v3846 = vand.u32 %v3379, 4294901760
        %v3847 = vsub.f32 %v3379, %v3846
        %3848 = vmatpush.msra.mxu0 %v3847
        %v3849 = vand.u32 %v3378, 4294901760
        %v3850 = vsub.f32 %v3378, %v3849
        %3851 = vmatpush.msra.mxu0 %v3850
        %v3852 = vand.u32 %v3377, 4294901760
        %v3853 = vsub.f32 %v3377, %v3852
        %3854 = vmatpush.msra.mxu0 %v3853
        %v3855 = vand.u32 %v3376, 4294901760
        %v3856 = vsub.f32 %v3376, %v3855
        %3857 = vmatpush.msra.mxu0 %v3856
        %v3858 = vand.u32 %v3375, 4294901760
        %v3859 = vsub.f32 %v3375, %v3858
        %3860 = vmatpush.msra.mxu0 %v3859
        %v3861 = vand.u32 %v3374, 4294901760
        %v3862 = vsub.f32 %v3374, %v3861
        %3863 = vmatpush.msra.mxu0 %v3862
        %v3864 = vand.u32 %v3373, 4294901760
        %v3865 = vsub.f32 %v3373, %v3864
        %3866 = vmatpush.msra.mxu0 %v3865
        %v3867 = vand.u32 %v3372, 4294901760
        %v3868 = vsub.f32 %v3372, %v3867
        %3869 = vmatpush.msra.mxu0 %v3868
        %v3870 = vand.u32 %v3371, 4294901760
        %v3871 = vsub.f32 %v3371, %v3870
        %3872 = vmatpush.msra.mxu0 %v3871
        %v3873 = vand.u32 %v3190, 4294901760
        %v3874 = vsub.f32 %v3190, %v3873
        %3875 = vmatmul.f32.gmra.mxu0 %v3874
        %v3876 = vpop.f32.mrf.mxu0
        %v3877 = vadd.f32 %v3763, %v3876
        %v3878 = vand.u32 %v3202, 4294901760
        %v3879 = vsub.f32 %v3202, %v3878
        %3880 = vmatmul.f32.gmra.mxu0 %v3879
        %v3881 = vpop.f32.mrf.mxu0
        %v3882 = vadd.f32 %v3767, %v3881
        %v3883 = vand.u32 %v3214, 4294901760
        %v3884 = vsub.f32 %v3214, %v3883
        %3885 = vmatmul.f32.gmra.mxu0 %v3884
        %v3886 = vpop.f32.mrf.mxu0
        %v3887 = vadd.f32 %v3771, %v3886
        %v3888 = vand.u32 %v3226, 4294901760
        %v3889 = vsub.f32 %v3226, %v3888
        %3890 = vmatmul.f32.gmra.mxu0 %v3889
        %v3891 = vpop.f32.mrf.mxu0
        %v3892 = vadd.f32 %v3775, %v3891
        %v3893 = vand.u32 %v3238, 4294901760
        %v3894 = vsub.f32 %v3238, %v3893
        %3895 = vmatmul.f32.gmra.mxu0 %v3894
        %v3896 = vpop.f32.mrf.mxu0
        %v3897 = vadd.f32 %v3779, %v3896
        %v3898 = vand.u32 %v3250, 4294901760
        %v3899 = vsub.f32 %v3250, %v3898
        %3900 = vmatmul.f32.gmra.mxu0 %v3899
        %v3901 = vpop.f32.mrf.mxu0
        %v3902 = vadd.f32 %v3783, %v3901
        %v3903 = vand.u32 %v3262, 4294901760
        %v3904 = vsub.f32 %v3262, %v3903
        %3905 = vmatmul.f32.gmra.mxu0 %v3904
        %v3906 = vpop.f32.mrf.mxu0
        %v3907 = vadd.f32 %v3787, %v3906
        %v3908 = vand.u32 %v3274, 4294901760
        %v3909 = vsub.f32 %v3274, %v3908
        %3910 = vmatmul.f32.gmra.mxu0 %v3909
        %v3911 = vpop.f32.mrf.mxu0
        %v3912 = vadd.f32 %v3791, %v3911
        %v3913 = vand.u32 %v3286, 4294901760
        %v3914 = vsub.f32 %v3286, %v3913
        %3915 = vmatmul.f32.gmra.mxu0 %v3914
        %v3916 = vpop.f32.mrf.mxu0
        %v3917 = vadd.f32 %v3795, %v3916
        %v3918 = vand.u32 %v3298, 4294901760
        %v3919 = vsub.f32 %v3298, %v3918
        %3920 = vmatmul.f32.gmra.mxu0 %v3919
        %v3921 = vpop.f32.mrf.mxu0
        %v3922 = vadd.f32 %v3799, %v3921
        %v3923 = vand.u32 %v3310, 4294901760
        %v3924 = vsub.f32 %v3310, %v3923
        %3925 = vmatmul.f32.gmra.mxu0 %v3924
        %v3926 = vpop.f32.mrf.mxu0
        %v3927 = vadd.f32 %v3803, %v3926
        %v3928 = vand.u32 %v3322, 4294901760
        %v3929 = vsub.f32 %v3322, %v3928
        %3930 = vmatmul.f32.gmra.mxu0 %v3929
        %v3931 = vpop.f32.mrf.mxu0
        %v3932 = vadd.f32 %v3807, %v3931
        %v3933 = vand.u32 %v3334, 4294901760
        %v3934 = vsub.f32 %v3334, %v3933
        %3935 = vmatmul.f32.gmra.mxu0 %v3934
        %v3936 = vpop.f32.mrf.mxu0
        %v3937 = vadd.f32 %v3811, %v3936
        %v3938 = vand.u32 %v3346, 4294901760
        %v3939 = vsub.f32 %v3346, %v3938
        %3940 = vmatmul.f32.gmra.mxu0 %v3939
        %v3941 = vpop.f32.mrf.mxu0
        %v3942 = vadd.f32 %v3815, %v3941
        %v3943 = vand.u32 %v3358, 4294901760
        %v3944 = vsub.f32 %v3358, %v3943
        %3945 = vmatmul.f32.gmra.mxu0 %v3944
        %v3946 = vpop.f32.mrf.mxu0
        %v3947 = vadd.f32 %v3819, %v3946
        %v3948 = vand.u32 %v3370, 4294901760
        %v3949 = vsub.f32 %v3370, %v3948
        %3950 = vmatmul.f32.gmra.mxu0 %v3949
        %v3951 = vpop.f32.mrf.mxu0
        %v3952 = vadd.f32 %v3823, %v3951
        %3953 = vdwg.mxu0
        %v3954 = vand.u32 %v3386, 4294901760
        %3955 = vmatpush.msra.mxu0 %v3954
        %v3956 = vand.u32 %v3385, 4294901760
        %3957 = vmatpush.msra.mxu0 %v3956
        %v3958 = vand.u32 %v3384, 4294901760
        %3959 = vmatpush.msra.mxu0 %v3958
        %v3960 = vand.u32 %v3383, 4294901760
        %3961 = vmatpush.msra.mxu0 %v3960
        %v3962 = vand.u32 %v3382, 4294901760
        %3963 = vmatpush.msra.mxu0 %v3962
        %v3964 = vand.u32 %v3381, 4294901760
        %3965 = vmatpush.msra.mxu0 %v3964
        %v3966 = vand.u32 %v3380, 4294901760
        %3967 = vmatpush.msra.mxu0 %v3966
        %v3968 = vand.u32 %v3379, 4294901760
        %3969 = vmatpush.msra.mxu0 %v3968
        %v3970 = vand.u32 %v3378, 4294901760
        %3971 = vmatpush.msra.mxu0 %v3970
        %v3972 = vand.u32 %v3377, 4294901760
        %3973 = vmatpush.msra.mxu0 %v3972
        %v3974 = vand.u32 %v3376, 4294901760
        %3975 = vmatpush.msra.mxu0 %v3974
        %v3976 = vand.u32 %v3375, 4294901760
        %3977 = vmatpush.msra.mxu0 %v3976
        %v3978 = vand.u32 %v3374, 4294901760
        %3979 = vmatpush.msra.mxu0 %v3978
        %v3980 = vand.u32 %v3373, 4294901760
        %3981 = vmatpush.msra.mxu0 %v3980
        %v3982 = vand.u32 %v3372, 4294901760
        %3983 = vmatpush.msra.mxu0 %v3982
        %v3984 = vand.u32 %v3371, 4294901760
        %3985 = vmatpush.msra.mxu0 %v3984
        %v3986 = vand.u32 %v3190, 4294901760
        %v3987 = vsub.f32 %v3190, %v3986
        %v3988 = vand.u32 %v3987, 4294901760
        %3989 = vmatmul.f32.gmra.mxu0 %v3988
        %v3990 = vpop.f32.mrf.mxu0
        %v3991 = vadd.f32 %v3877, %v3990
        %v3992 = vand.u32 %v3202, 4294901760
        %v3993 = vsub.f32 %v3202, %v3992
        %v3994 = vand.u32 %v3993, 4294901760
        %3995 = vmatmul.f32.gmra.mxu0 %v3994
        %v3996 = vpop.f32.mrf.mxu0
        %v3997 = vadd.f32 %v3882, %v3996
        %v3998 = vand.u32 %v3214, 4294901760
        %v3999 = vsub.f32 %v3214, %v3998
        %v4000 = vand.u32 %v3999, 4294901760
        %4001 = vmatmul.f32.gmra.mxu0 %v4000
        %v4002 = vpop.f32.mrf.mxu0
        %v4003 = vadd.f32 %v3887, %v4002
        %v4004 = vand.u32 %v3226, 4294901760
        %v4005 = vsub.f32 %v3226, %v4004
        %v4006 = vand.u32 %v4005, 4294901760
        %4007 = vmatmul.f32.gmra.mxu0 %v4006
        %v4008 = vpop.f32.mrf.mxu0
        %v4009 = vadd.f32 %v3892, %v4008
        %v4010 = vand.u32 %v3238, 4294901760
        %v4011 = vsub.f32 %v3238, %v4010
        %v4012 = vand.u32 %v4011, 4294901760
        %4013 = vmatmul.f32.gmra.mxu0 %v4012
        %v4014 = vpop.f32.mrf.mxu0
        %v4015 = vadd.f32 %v3897, %v4014
        %v4016 = vand.u32 %v3250, 4294901760
        %v4017 = vsub.f32 %v3250, %v4016
        %v4018 = vand.u32 %v4017, 4294901760
        %4019 = vmatmul.f32.gmra.mxu0 %v4018
        %v4020 = vpop.f32.mrf.mxu0
        %v4021 = vadd.f32 %v3902, %v4020
        %v4022 = vand.u32 %v3262, 4294901760
        %v4023 = vsub.f32 %v3262, %v4022
        %v4024 = vand.u32 %v4023, 4294901760
        %4025 = vmatmul.f32.gmra.mxu0 %v4024
        %v4026 = vpop.f32.mrf.mxu0
        %v4027 = vadd.f32 %v3907, %v4026
        %v4028 = vand.u32 %v3274, 4294901760
        %v4029 = vsub.f32 %v3274, %v4028
        %v4030 = vand.u32 %v4029, 4294901760
        %4031 = vmatmul.f32.gmra.mxu0 %v4030
        %v4032 = vpop.f32.mrf.mxu0
        %v4033 = vadd.f32 %v3912, %v4032
        %v4034 = vand.u32 %v3286, 4294901760
        %v4035 = vsub.f32 %v3286, %v4034
        %v4036 = vand.u32 %v4035, 4294901760
        %4037 = vmatmul.f32.gmra.mxu0 %v4036
        %v4038 = vpop.f32.mrf.mxu0
        %v4039 = vadd.f32 %v3917, %v4038
        %v4040 = vand.u32 %v3298, 4294901760
        %v4041 = vsub.f32 %v3298, %v4040
        %v4042 = vand.u32 %v4041, 4294901760
        %4043 = vmatmul.f32.gmra.mxu0 %v4042
        %v4044 = vpop.f32.mrf.mxu0
        %v4045 = vadd.f32 %v3922, %v4044
        %v4046 = vand.u32 %v3310, 4294901760
        %v4047 = vsub.f32 %v3310, %v4046
        %v4048 = vand.u32 %v4047, 4294901760
        %4049 = vmatmul.f32.gmra.mxu0 %v4048
        %v4050 = vpop.f32.mrf.mxu0
        %v4051 = vadd.f32 %v3927, %v4050
        %v4052 = vand.u32 %v3322, 4294901760
        %v4053 = vsub.f32 %v3322, %v4052
        %v4054 = vand.u32 %v4053, 4294901760
        %4055 = vmatmul.f32.gmra.mxu0 %v4054
        %v4056 = vpop.f32.mrf.mxu0
        %v4057 = vadd.f32 %v3932, %v4056
        %v4058 = vand.u32 %v3334, 4294901760
        %v4059 = vsub.f32 %v3334, %v4058
        %v4060 = vand.u32 %v4059, 4294901760
        %4061 = vmatmul.f32.gmra.mxu0 %v4060
        %v4062 = vpop.f32.mrf.mxu0
        %v4063 = vadd.f32 %v3937, %v4062
        %v4064 = vand.u32 %v3346, 4294901760
        %v4065 = vsub.f32 %v3346, %v4064
        %v4066 = vand.u32 %v4065, 4294901760
        %4067 = vmatmul.f32.gmra.mxu0 %v4066
        %v4068 = vpop.f32.mrf.mxu0
        %v4069 = vadd.f32 %v3942, %v4068
        %v4070 = vand.u32 %v3358, 4294901760
        %v4071 = vsub.f32 %v3358, %v4070
        %v4072 = vand.u32 %v4071, 4294901760
        %4073 = vmatmul.f32.gmra.mxu0 %v4072
        %v4074 = vpop.f32.mrf.mxu0
        %v4075 = vadd.f32 %v3947, %v4074
        %v4076 = vand.u32 %v3370, 4294901760
        %v4077 = vsub.f32 %v3370, %v4076
        %v4078 = vand.u32 %v4077, 4294901760
        %4079 = vmatmul.f32.gmra.mxu0 %v4078
        %v4080 = vpop.f32.mrf.mxu0
        %v4081 = vadd.f32 %v3952, %v4080
        %4082 = vdwg.mxu0
        %v4083 = vand.u32 %v3386, 4294901760
        %v4084 = vsub.f32 %v3386, %v4083
        %v4085 = vand.u32 %v4084, 4294901760
        %4086 = vmatpush.msra.mxu0 %v4085
        %v4087 = vand.u32 %v3385, 4294901760
        %v4088 = vsub.f32 %v3385, %v4087
        %v4089 = vand.u32 %v4088, 4294901760
        %4090 = vmatpush.msra.mxu0 %v4089
        %v4091 = vand.u32 %v3384, 4294901760
        %v4092 = vsub.f32 %v3384, %v4091
        %v4093 = vand.u32 %v4092, 4294901760
        %4094 = vmatpush.msra.mxu0 %v4093
        %v4095 = vand.u32 %v3383, 4294901760
        %v4096 = vsub.f32 %v3383, %v4095
        %v4097 = vand.u32 %v4096, 4294901760
        %4098 = vmatpush.msra.mxu0 %v4097
        %v4099 = vand.u32 %v3382, 4294901760
        %v4100 = vsub.f32 %v3382, %v4099
        %v4101 = vand.u32 %v4100, 4294901760
        %4102 = vmatpush.msra.mxu0 %v4101
        %v4103 = vand.u32 %v3381, 4294901760
        %v4104 = vsub.f32 %v3381, %v4103
        %v4105 = vand.u32 %v4104, 4294901760
        %4106 = vmatpush.msra.mxu0 %v4105
        %v4107 = vand.u32 %v3380, 4294901760
        %v4108 = vsub.f32 %v3380, %v4107
        %v4109 = vand.u32 %v4108, 4294901760
        %4110 = vmatpush.msra.mxu0 %v4109
        %v4111 = vand.u32 %v3379, 4294901760
        %v4112 = vsub.f32 %v3379, %v4111
        %v4113 = vand.u32 %v4112, 4294901760
        %4114 = vmatpush.msra.mxu0 %v4113
        %v4115 = vand.u32 %v3378, 4294901760
        %v4116 = vsub.f32 %v3378, %v4115
        %v4117 = vand.u32 %v4116, 4294901760
        %4118 = vmatpush.msra.mxu0 %v4117
        %v4119 = vand.u32 %v3377, 4294901760
        %v4120 = vsub.f32 %v3377, %v4119
        %v4121 = vand.u32 %v4120, 4294901760
        %4122 = vmatpush.msra.mxu0 %v4121
        %v4123 = vand.u32 %v3376, 4294901760
        %v4124 = vsub.f32 %v3376, %v4123
        %v4125 = vand.u32 %v4124, 4294901760
        %4126 = vmatpush.msra.mxu0 %v4125
        %v4127 = vand.u32 %v3375, 4294901760
        %v4128 = vsub.f32 %v3375, %v4127
        %v4129 = vand.u32 %v4128, 4294901760
        %4130 = vmatpush.msra.mxu0 %v4129
        %v4131 = vand.u32 %v3374, 4294901760
        %v4132 = vsub.f32 %v3374, %v4131
        %v4133 = vand.u32 %v4132, 4294901760
        %4134 = vmatpush.msra.mxu0 %v4133
        %v4135 = vand.u32 %v3373, 4294901760
        %v4136 = vsub.f32 %v3373, %v4135
        %v4137 = vand.u32 %v4136, 4294901760
        %4138 = vmatpush.msra.mxu0 %v4137
        %v4139 = vand.u32 %v3372, 4294901760
        %v4140 = vsub.f32 %v3372, %v4139
        %v4141 = vand.u32 %v4140, 4294901760
        %4142 = vmatpush.msra.mxu0 %v4141
        %v4143 = vand.u32 %v3371, 4294901760
        %v4144 = vsub.f32 %v3371, %v4143
        %v4145 = vand.u32 %v4144, 4294901760
        %4146 = vmatpush.msra.mxu0 %v4145
        %v4147 = vand.u32 %v3190, 4294901760
        %4148 = vmatmul.f32.gmra.mxu0 %v4147
        %v4149 = vpop.f32.mrf.mxu0
        %v4150 = vadd.f32 %v3991, %v4149
        %v4151 = vand.u32 %v3202, 4294901760
        %4152 = vmatmul.f32.gmra.mxu0 %v4151
        %v4153 = vpop.f32.mrf.mxu0
        %v4154 = vadd.f32 %v3997, %v4153
        %v4155 = vand.u32 %v3214, 4294901760
        %4156 = vmatmul.f32.gmra.mxu0 %v4155
        %v4157 = vpop.f32.mrf.mxu0
        %v4158 = vadd.f32 %v4003, %v4157
        %v4159 = vand.u32 %v3226, 4294901760
        %4160 = vmatmul.f32.gmra.mxu0 %v4159
        %v4161 = vpop.f32.mrf.mxu0
        %v4162 = vadd.f32 %v4009, %v4161
        %v4163 = vand.u32 %v3238, 4294901760
        %4164 = vmatmul.f32.gmra.mxu0 %v4163
        %v4165 = vpop.f32.mrf.mxu0
        %v4166 = vadd.f32 %v4015, %v4165
        %v4167 = vand.u32 %v3250, 4294901760
        %4168 = vmatmul.f32.gmra.mxu0 %v4167
        %v4169 = vpop.f32.mrf.mxu0
        %v4170 = vadd.f32 %v4021, %v4169
        %v4171 = vand.u32 %v3262, 4294901760
        %4172 = vmatmul.f32.gmra.mxu0 %v4171
        %v4173 = vpop.f32.mrf.mxu0
        %v4174 = vadd.f32 %v4027, %v4173
        %v4175 = vand.u32 %v3274, 4294901760
        %4176 = vmatmul.f32.gmra.mxu0 %v4175
        %v4177 = vpop.f32.mrf.mxu0
        %v4178 = vadd.f32 %v4033, %v4177
        %v4179 = vand.u32 %v3286, 4294901760
        %4180 = vmatmul.f32.gmra.mxu0 %v4179
        %v4181 = vpop.f32.mrf.mxu0
        %v4182 = vadd.f32 %v4039, %v4181
        %v4183 = vand.u32 %v3298, 4294901760
        %4184 = vmatmul.f32.gmra.mxu0 %v4183
        %v4185 = vpop.f32.mrf.mxu0
        %v4186 = vadd.f32 %v4045, %v4185
        %v4187 = vand.u32 %v3310, 4294901760
        %4188 = vmatmul.f32.gmra.mxu0 %v4187
        %v4189 = vpop.f32.mrf.mxu0
        %v4190 = vadd.f32 %v4051, %v4189
        %v4191 = vand.u32 %v3322, 4294901760
        %4192 = vmatmul.f32.gmra.mxu0 %v4191
        %v4193 = vpop.f32.mrf.mxu0
        %v4194 = vadd.f32 %v4057, %v4193
        %v4195 = vand.u32 %v3334, 4294901760
        %4196 = vmatmul.f32.gmra.mxu0 %v4195
        %v4197 = vpop.f32.mrf.mxu0
        %v4198 = vadd.f32 %v4063, %v4197
        %v4199 = vand.u32 %v3346, 4294901760
        %4200 = vmatmul.f32.gmra.mxu0 %v4199
        %v4201 = vpop.f32.mrf.mxu0
        %v4202 = vadd.f32 %v4069, %v4201
        %v4203 = vand.u32 %v3358, 4294901760
        %4204 = vmatmul.f32.gmra.mxu0 %v4203
        %v4205 = vpop.f32.mrf.mxu0
        %v4206 = vadd.f32 %v4075, %v4205
        %v4207 = vand.u32 %v3370, 4294901760
        %4208 = vmatmul.f32.gmra.mxu0 %v4207
        %v4209 = vpop.f32.mrf.mxu0
        %v4210 = vadd.f32 %v4081, %v4209
        %4211 = vdwg.mxu0
        %v4212 = vand.u32 %v3386, 4294901760
        %4213 = vmatpush.msra.mxu0 %v4212
        %v4214 = vand.u32 %v3385, 4294901760
        %4215 = vmatpush.msra.mxu0 %v4214
        %v4216 = vand.u32 %v3384, 4294901760
        %4217 = vmatpush.msra.mxu0 %v4216
        %v4218 = vand.u32 %v3383, 4294901760
        %4219 = vmatpush.msra.mxu0 %v4218
        %v4220 = vand.u32 %v3382, 4294901760
        %4221 = vmatpush.msra.mxu0 %v4220
        %v4222 = vand.u32 %v3381, 4294901760
        %4223 = vmatpush.msra.mxu0 %v4222
        %v4224 = vand.u32 %v3380, 4294901760
        %4225 = vmatpush.msra.mxu0 %v4224
        %v4226 = vand.u32 %v3379, 4294901760
        %4227 = vmatpush.msra.mxu0 %v4226
        %v4228 = vand.u32 %v3378, 4294901760
        %4229 = vmatpush.msra.mxu0 %v4228
        %v4230 = vand.u32 %v3377, 4294901760
        %4231 = vmatpush.msra.mxu0 %v4230
        %v4232 = vand.u32 %v3376, 4294901760
        %4233 = vmatpush.msra.mxu0 %v4232
        %v4234 = vand.u32 %v3375, 4294901760
        %4235 = vmatpush.msra.mxu0 %v4234
        %v4236 = vand.u32 %v3374, 4294901760
        %4237 = vmatpush.msra.mxu0 %v4236
        %v4238 = vand.u32 %v3373, 4294901760
        %4239 = vmatpush.msra.mxu0 %v4238
        %v4240 = vand.u32 %v3372, 4294901760
        %4241 = vmatpush.msra.mxu0 %v4240
        %v4242 = vand.u32 %v3371, 4294901760
        %4243 = vmatpush.msra.mxu0 %v4242
        %v4244 = vand.u32 %v3190, 4294901760
        %4245 = vmatmul.f32.gmra.mxu0 %v4244
        %v4246 = vpop.f32.mrf.mxu0
        %v4247 = vadd.f32 %v4150, %v4246
        %v4248 = vand.u32 %v3202, 4294901760
        %4249 = vmatmul.f32.gmra.mxu0 %v4248
        %v4250 = vpop.f32.mrf.mxu0
        %v4251 = vadd.f32 %v4154, %v4250
        %v4252 = vand.u32 %v3214, 4294901760
        %4253 = vmatmul.f32.gmra.mxu0 %v4252
        %v4254 = vpop.f32.mrf.mxu0
        %v4255 = vadd.f32 %v4158, %v4254
        %v4256 = vand.u32 %v3226, 4294901760
        %4257 = vmatmul.f32.gmra.mxu0 %v4256
        %v4258 = vpop.f32.mrf.mxu0
        %v4259 = vadd.f32 %v4162, %v4258
        %v4260 = vand.u32 %v3238, 4294901760
        %4261 = vmatmul.f32.gmra.mxu0 %v4260
        %v4262 = vpop.f32.mrf.mxu0
        %v4263 = vadd.f32 %v4166, %v4262
        %v4264 = vand.u32 %v3250, 4294901760
        %4265 = vmatmul.f32.gmra.mxu0 %v4264
        %v4266 = vpop.f32.mrf.mxu0
        %v4267 = vadd.f32 %v4170, %v4266
        %v4268 = vand.u32 %v3262, 4294901760
        %4269 = vmatmul.f32.gmra.mxu0 %v4268
        %v4270 = vpop.f32.mrf.mxu0
        %v4271 = vadd.f32 %v4174, %v4270
        %v4272 = vand.u32 %v3274, 4294901760
        %4273 = vmatmul.f32.gmra.mxu0 %v4272
        %v4274 = vpop.f32.mrf.mxu0
        %v4275 = vadd.f32 %v4178, %v4274
        %v4276 = vand.u32 %v3286, 4294901760
        %4277 = vmatmul.f32.gmra.mxu0 %v4276
        %v4278 = vpop.f32.mrf.mxu0
        %v4279 = vadd.f32 %v4182, %v4278
        %v4280 = vand.u32 %v3298, 4294901760
        %4281 = vmatmul.f32.gmra.mxu0 %v4280
        %v4282 = vpop.f32.mrf.mxu0
        %v4283 = vadd.f32 %v4186, %v4282
        %v4284 = vand.u32 %v3310, 4294901760
        %4285 = vmatmul.f32.gmra.mxu0 %v4284
        %v4286 = vpop.f32.mrf.mxu0
        %v4287 = vadd.f32 %v4190, %v4286
        %v4288 = vand.u32 %v3322, 4294901760
        %4289 = vmatmul.f32.gmra.mxu0 %v4288
        %v4290 = vpop.f32.mrf.mxu0
        %v4291 = vadd.f32 %v4194, %v4290
        %v4292 = vand.u32 %v3334, 4294901760
        %4293 = vmatmul.f32.gmra.mxu0 %v4292
        %v4294 = vpop.f32.mrf.mxu0
        %v4295 = vadd.f32 %v4198, %v4294
        %v4296 = vand.u32 %v3346, 4294901760
        %4297 = vmatmul.f32.gmra.mxu0 %v4296
        %v4298 = vpop.f32.mrf.mxu0
        %v4299 = vadd.f32 %v4202, %v4298
        %v4300 = vand.u32 %v3358, 4294901760
        %4301 = vmatmul.f32.gmra.mxu0 %v4300
        %v4302 = vpop.f32.mrf.mxu0
        %v4303 = vadd.f32 %v4206, %v4302
        %v4304 = vand.u32 %v3370, 4294901760
        %4305 = vmatmul.f32.gmra.mxu0 %v4304
        %v4306 = vpop.f32.mrf.mxu0
        %v4307 = vadd.f32 %v4210, %v4306
        %4308 = vdwg.mxu0
        %4325 = vrot.lane.b32.xlu0 %v4247, 1
        %v4326 = vpop.permute.xlu0 %4325
        %4327 = vrot.lane.b32.xlu0 %v4251, 1
        %v4328 = vpop.permute.xlu0 %4327
        %4329 = vrot.lane.b32.xlu0 %v4255, 1
        %v4330 = vpop.permute.xlu0 %4329
        %4331 = vrot.lane.b32.xlu0 %v4259, 1
        %v4332 = vpop.permute.xlu0 %4331
        %4333 = vrot.lane.b32.xlu0 %v4263, 1
        %v4334 = vpop.permute.xlu0 %4333
        %4335 = vrot.lane.b32.xlu0 %v4267, 1
        %v4336 = vpop.permute.xlu0 %4335
        %4337 = vrot.lane.b32.xlu0 %v4271, 1
        %v4338 = vpop.permute.xlu0 %4337
        %4339 = vrot.lane.b32.xlu0 %v4275, 1
        %v4340 = vpop.permute.xlu0 %4339
        %4341 = vrot.lane.b32.xlu0 %v4279, 1
        %v4342 = vpop.permute.xlu0 %4341
        %4343 = vrot.lane.b32.xlu0 %v4283, 1
        %v4344 = vpop.permute.xlu0 %4343
        %4345 = vrot.lane.b32.xlu0 %v4287, 1
        %v4346 = vpop.permute.xlu0 %4345
        %4347 = vrot.lane.b32.xlu0 %v4291, 1
        %v4348 = vpop.permute.xlu0 %4347
        %4349 = vrot.lane.b32.xlu0 %v4295, 1
        %v4350 = vpop.permute.xlu0 %4349
        %4351 = vrot.lane.b32.xlu0 %v4299, 1
        %v4352 = vpop.permute.xlu0 %4351
        %4353 = vrot.lane.b32.xlu0 %v4303, 1
        %v4354 = vpop.permute.xlu0 %4353
        %4355 = vrot.lane.b32.xlu0 %v4307, 1
        %v4356 = vpop.permute.xlu0 %4355
        %4373 = vst.msk [vmem:[#allocation2] sm:$0xff] %vm1501, %v4326
        %4374 = vst.msk [vmem:[#allocation2 + $0x8] sm:$0xff] %vm1501, %v4328
        %4375 = vst.msk [vmem:[#allocation2 + $0x10] sm:$0xff] %vm1501, %v4330
        %4376 = vst.msk [vmem:[#allocation2 + $0x18] sm:$0xff] %vm1501, %v4332
        %4377 = vst.msk [vmem:[#allocation2 + $0x20] sm:$0xff] %vm1501, %v4334
        %4378 = vst.msk [vmem:[#allocation2 + $0x28] sm:$0xff] %vm1501, %v4336
        %4379 = vst.msk [vmem:[#allocation2 + $0x30] sm:$0xff] %vm1501, %v4338
        %4380 = vst.msk [vmem:[#allocation2 + $0x38] sm:$0xff] %vm1501, %v4340
        %4381 = vst.msk [vmem:[#allocation2 + $0x40] sm:$0xff] %vm1501, %v4342
        %4382 = vst.msk [vmem:[#allocation2 + $0x48] sm:$0xff] %vm1501, %v4344
        %4383 = vst.msk [vmem:[#allocation2 + $0x50] sm:$0xff] %vm1501, %v4346
        %4384 = vst.msk [vmem:[#allocation2 + $0x58] sm:$0xff] %vm1501, %v4348
        %4385 = vst.msk [vmem:[#allocation2 + $0x60] sm:$0xff] %vm1501, %v4350
        %4386 = vst.msk [vmem:[#allocation2 + $0x68] sm:$0xff] %vm1501, %v4352
        %4387 = vst.msk [vmem:[#allocation2 + $0x70] sm:$0xff] %vm1501, %v4354
        %4388 = vst.msk [vmem:[#allocation2 + $0x78] sm:$0xff] %vm1501, %v4356
        %v4389 = vrsqrt.pop %v4247
        %v4390 = vmul.f32 %v4389, %v4247
        %v4391 = vmul.f32 %v4390, %v4389
        %v4392 = vmul.f32 0.5, %v4391
        %v4393 = vsub.f32 1.5, %v4392
        %v4394 = vmul.f32 %v4389, %v4393
        %vm4395 = vweird.f32 %v4247
        %vm4396 = vweird.f32 %v4389
        %vm4397 = vmor %vm4395, %vm4396
        %v4398 = vsel %vm4397, %v4389, %v4394
        %v4399 = vrsqrt.pop %v4251
        %v4400 = vmul.f32 %v4399, %v4251
        %v4401 = vmul.f32 %v4400, %v4399
        %v4402 = vmul.f32 0.5, %v4401
        %v4403 = vsub.f32 1.5, %v4402
        %v4404 = vmul.f32 %v4399, %v4403
        %vm4405 = vweird.f32 %v4251
        %vm4406 = vweird.f32 %v4399
        %vm4407 = vmor %vm4405, %vm4406
        %v4408 = vsel %vm4407, %v4399, %v4404
        %v4409 = vrsqrt.pop %v4255
        %v4410 = vmul.f32 %v4409, %v4255
        %v4411 = vmul.f32 %v4410, %v4409
        %v4412 = vmul.f32 0.5, %v4411
        %v4413 = vsub.f32 1.5, %v4412
        %v4414 = vmul.f32 %v4409, %v4413
        %vm4415 = vweird.f32 %v4255
        %vm4416 = vweird.f32 %v4409
        %vm4417 = vmor %vm4415, %vm4416
        %v4418 = vsel %vm4417, %v4409, %v4414
        %v4419 = vrsqrt.pop %v4259
        %v4420 = vmul.f32 %v4419, %v4259
        %v4421 = vmul.f32 %v4420, %v4419
        %v4422 = vmul.f32 0.5, %v4421
        %v4423 = vsub.f32 1.5, %v4422
        %v4424 = vmul.f32 %v4419, %v4423
        %vm4425 = vweird.f32 %v4259
        %vm4426 = vweird.f32 %v4419
        %vm4427 = vmor %vm4425, %vm4426
        %v4428 = vsel %vm4427, %v4419, %v4424
        %v4429 = vrsqrt.pop %v4263
        %v4430 = vmul.f32 %v4429, %v4263
        %v4431 = vmul.f32 %v4430, %v4429
        %v4432 = vmul.f32 0.5, %v4431
        %v4433 = vsub.f32 1.5, %v4432
        %v4434 = vmul.f32 %v4429, %v4433
        %vm4435 = vweird.f32 %v4263
        %vm4436 = vweird.f32 %v4429
        %vm4437 = vmor %vm4435, %vm4436
        %v4438 = vsel %vm4437, %v4429, %v4434
        %v4439 = vrsqrt.pop %v4267
        %v4440 = vmul.f32 %v4439, %v4267
        %v4441 = vmul.f32 %v4440, %v4439
        %v4442 = vmul.f32 0.5, %v4441
        %v4443 = vsub.f32 1.5, %v4442
        %v4444 = vmul.f32 %v4439, %v4443
        %vm4445 = vweird.f32 %v4267
        %vm4446 = vweird.f32 %v4439
        %vm4447 = vmor %vm4445, %vm4446
        %v4448 = vsel %vm4447, %v4439, %v4444
        %v4449 = vrsqrt.pop %v4271
        %v4450 = vmul.f32 %v4449, %v4271
        %v4451 = vmul.f32 %v4450, %v4449
        %v4452 = vmul.f32 0.5, %v4451
        %v4453 = vsub.f32 1.5, %v4452
        %v4454 = vmul.f32 %v4449, %v4453
        %vm4455 = vweird.f32 %v4271
        %vm4456 = vweird.f32 %v4449
        %vm4457 = vmor %vm4455, %vm4456
        %v4458 = vsel %vm4457, %v4449, %v4454
        %v4459 = vrsqrt.pop %v4275
        %v4460 = vmul.f32 %v4459, %v4275
        %v4461 = vmul.f32 %v4460, %v4459
        %v4462 = vmul.f32 0.5, %v4461
        %v4463 = vsub.f32 1.5, %v4462
        %v4464 = vmul.f32 %v4459, %v4463
        %vm4465 = vweird.f32 %v4275
        %vm4466 = vweird.f32 %v4459
        %vm4467 = vmor %vm4465, %vm4466
        %v4468 = vsel %vm4467, %v4459, %v4464
        %v4469 = vrsqrt.pop %v4279
        %v4470 = vmul.f32 %v4469, %v4279
        %v4471 = vmul.f32 %v4470, %v4469
        %v4472 = vmul.f32 0.5, %v4471
        %v4473 = vsub.f32 1.5, %v4472
        %v4474 = vmul.f32 %v4469, %v4473
        %vm4475 = vweird.f32 %v4279
        %vm4476 = vweird.f32 %v4469
        %vm4477 = vmor %vm4475, %vm4476
        %v4478 = vsel %vm4477, %v4469, %v4474
        %v4479 = vrsqrt.pop %v4283
        %v4480 = vmul.f32 %v4479, %v4283
        %v4481 = vmul.f32 %v4480, %v4479
        %v4482 = vmul.f32 0.5, %v4481
        %v4483 = vsub.f32 1.5, %v4482
        %v4484 = vmul.f32 %v4479, %v4483
        %vm4485 = vweird.f32 %v4283
        %vm4486 = vweird.f32 %v4479
        %vm4487 = vmor %vm4485, %vm4486
        %v4488 = vsel %vm4487, %v4479, %v4484
        %v4489 = vrsqrt.pop %v4287
        %v4490 = vmul.f32 %v4489, %v4287
        %v4491 = vmul.f32 %v4490, %v4489
        %v4492 = vmul.f32 0.5, %v4491
        %v4493 = vsub.f32 1.5, %v4492
        %v4494 = vmul.f32 %v4489, %v4493
        %vm4495 = vweird.f32 %v4287
        %vm4496 = vweird.f32 %v4489
        %vm4497 = vmor %vm4495, %vm4496
        %v4498 = vsel %vm4497, %v4489, %v4494
        %v4499 = vrsqrt.pop %v4291
        %v4500 = vmul.f32 %v4499, %v4291
        %v4501 = vmul.f32 %v4500, %v4499
        %v4502 = vmul.f32 0.5, %v4501
        %v4503 = vsub.f32 1.5, %v4502
        %v4504 = vmul.f32 %v4499, %v4503
        %vm4505 = vweird.f32 %v4291
        %vm4506 = vweird.f32 %v4499
        %vm4507 = vmor %vm4505, %vm4506
        %v4508 = vsel %vm4507, %v4499, %v4504
        %v4509 = vrsqrt.pop %v4295
        %v4510 = vmul.f32 %v4509, %v4295
        %v4511 = vmul.f32 %v4510, %v4509
        %v4512 = vmul.f32 0.5, %v4511
        %v4513 = vsub.f32 1.5, %v4512
        %v4514 = vmul.f32 %v4509, %v4513
        %vm4515 = vweird.f32 %v4295
        %vm4516 = vweird.f32 %v4509
        %vm4517 = vmor %vm4515, %vm4516
        %v4518 = vsel %vm4517, %v4509, %v4514
        %v4519 = vrsqrt.pop %v4299
        %v4520 = vmul.f32 %v4519, %v4299
        %v4521 = vmul.f32 %v4520, %v4519
        %v4522 = vmul.f32 0.5, %v4521
        %v4523 = vsub.f32 1.5, %v4522
        %v4524 = vmul.f32 %v4519, %v4523
        %vm4525 = vweird.f32 %v4299
        %vm4526 = vweird.f32 %v4519
        %vm4527 = vmor %vm4525, %vm4526
        %v4528 = vsel %vm4527, %v4519, %v4524
        %v4529 = vrsqrt.pop %v4303
        %v4530 = vmul.f32 %v4529, %v4303
        %v4531 = vmul.f32 %v4530, %v4529
        %v4532 = vmul.f32 0.5, %v4531
        %v4533 = vsub.f32 1.5, %v4532
        %v4534 = vmul.f32 %v4529, %v4533
        %vm4535 = vweird.f32 %v4303
        %vm4536 = vweird.f32 %v4529
        %vm4537 = vmor %vm4535, %vm4536
        %v4538 = vsel %vm4537, %v4529, %v4534
        %v4539 = vrsqrt.pop %v4307
        %v4540 = vmul.f32 %v4539, %v4307
        %v4541 = vmul.f32 %v4540, %v4539
        %v4542 = vmul.f32 0.5, %v4541
        %v4543 = vsub.f32 1.5, %v4542
        %v4544 = vmul.f32 %v4539, %v4543
        %vm4545 = vweird.f32 %v4307
        %vm4546 = vweird.f32 %v4539
        %vm4547 = vmor %vm4545, %vm4546
        %v4548 = vsel %vm4547, %v4539, %v4544
        %v4549 = vmul.f32 %v3147, %v4398
        %v4550 = vmul.f32 %v3148, %v4408
        %v4551 = vmul.f32 %v3149, %v4418
        %v4552 = vmul.f32 %v3150, %v4428
        %v4553 = vmul.f32 %v3151, %v4438
        %v4554 = vmul.f32 %v3152, %v4448
        %v4555 = vmul.f32 %v3153, %v4458
        %v4556 = vmul.f32 %v3154, %v4468
        %v4557 = vmul.f32 %v3155, %v4478
        %v4558 = vmul.f32 %v3156, %v4488
        %v4559 = vmul.f32 %v3157, %v4498
        %v4560 = vmul.f32 %v3158, %v4508
        %v4561 = vmul.f32 %v3159, %v4518
        %v4562 = vmul.f32 %v3160, %v4528
        %v4563 = vmul.f32 %v3161, %v4538
        %v4564 = vmul.f32 %v3162, %v4548
        %s4565 = scalar_lea.vmem %s235, 16 [#allocation6]
        %4566 = vst [vmem:[%s4565] sm:$0xff] %v4549
        %4567 = vst [vmem:[%s4565 + $0x20] sm:$0xff] %v4550
        %4568 = vst [vmem:[%s4565 + $0x40] sm:$0xff] %v4551
        %4569 = vst [vmem:[%s4565 + $0x60] sm:$0xff] %v4552
        %4570 = vst [vmem:[%s4565 + $0x80] sm:$0xff] %v4553
        %4571 = vst [vmem:[%s4565 + $0xa0] sm:$0xff] %v4554
        %4572 = vst [vmem:[%s4565 + $0xc0] sm:$0xff] %v4555
        %4573 = vst [vmem:[%s4565 + $0xe0] sm:$0xff] %v4556
        %4574 = vst [vmem:[%s4565 + $0x100] sm:$0xff] %v4557
        %4575 = vst [vmem:[%s4565 + $0x120] sm:$0xff] %v4558
        %4576 = vst [vmem:[%s4565 + $0x140] sm:$0xff] %v4559
        %4577 = vst [vmem:[%s4565 + $0x160] sm:$0xff] %v4560
        %4578 = vst [vmem:[%s4565 + $0x180] sm:$0xff] %v4561
        %4579 = vst [vmem:[%s4565 + $0x1a0] sm:$0xff] %v4562
        %4580 = vst [vmem:[%s4565 + $0x1c0] sm:$0xff] %v4563
        %4581 = vst [vmem:[%s4565 + $0x1e0] sm:$0xff] %v4564
        %s4582 = scalar_lea.vmem %s210, 24 [#allocation3]
        %v4583 = vld [vmem:[%s4582] sm:$0xff]
        %v4584 = vld [vmem:[%s4582 + $0x20] sm:$0xff]
        %v4585 = vld [vmem:[%s4582 + $0x40] sm:$0xff]
        %v4586 = vld [vmem:[%s4582 + $0x60] sm:$0xff]
        %v4587 = vld [vmem:[%s4582 + $0x80] sm:$0xff]
        %v4588 = vld [vmem:[%s4582 + $0xa0] sm:$0xff]
        %v4589 = vld [vmem:[%s4582 + $0xc0] sm:$0xff]
        %v4590 = vld [vmem:[%s4582 + $0xe0] sm:$0xff]
        %v4591 = vld [vmem:[%s4582 + $0x100] sm:$0xff]
        %v4592 = vld [vmem:[%s4582 + $0x120] sm:$0xff]
        %v4593 = vld [vmem:[%s4582 + $0x140] sm:$0xff]
        %v4594 = vld [vmem:[%s4582 + $0x160] sm:$0xff]
        %v4595 = vld [vmem:[%s4582 + $0x180] sm:$0xff]
        %v4596 = vld [vmem:[%s4582 + $0x1a0] sm:$0xff]
        %v4597 = vld [vmem:[%s4582 + $0x1c0] sm:$0xff]
        %v4598 = vld [vmem:[%s4582 + $0x1e0] sm:$0xff]
        %v4599 = vmax.f32 %v4583, 1e-10
        %v4600 = vmax.f32 %v4584, 1e-10
        %v4601 = vmax.f32 %v4585, 1e-10
        %v4602 = vmax.f32 %v4586, 1e-10
        %v4603 = vmax.f32 %v4587, 1e-10
        %v4604 = vmax.f32 %v4588, 1e-10
        %v4605 = vmax.f32 %v4589, 1e-10
        %v4606 = vmax.f32 %v4590, 1e-10
        %v4607 = vmax.f32 %v4591, 1e-10
        %v4608 = vmax.f32 %v4592, 1e-10
        %v4609 = vmax.f32 %v4593, 1e-10
        %v4610 = vmax.f32 %v4594, 1e-10
        %v4611 = vmax.f32 %v4595, 1e-10
        %v4612 = vmax.f32 %v4596, 1e-10
        %v4613 = vmax.f32 %v4597, 1e-10
        %v4614 = vmax.f32 %v4598, 1e-10
        %v4615 = vrsqrt.pop %v4599
        %v4616 = vmul.f32 %v4615, %v4599
        %v4617 = vmul.f32 %v4616, %v4615
        %v4618 = vmul.f32 0.5, %v4617
        %v4619 = vsub.f32 1.5, %v4618
        %v4620 = vmul.f32 %v4615, %v4619
        %v4621 = vmul.f32 %v4599, %v4620
        %vm4622 = vcmp.eq.f32.partialorder %v4599, inf
        %v4623 = vsel %vm4622, %v4599, %v4621
        %vm4624 = vcmp.eq.f32.partialorder %v4599, 0.0
        %v4625 = vand.u32 %v4599, 2147483648
        %v4626 = vsel %vm4624, %v4625, %v4623
        %v4627 = vrsqrt.pop %v4600
        %v4628 = vmul.f32 %v4627, %v4600
        %v4629 = vmul.f32 %v4628, %v4627
        %v4630 = vmul.f32 0.5, %v4629
        %v4631 = vsub.f32 1.5, %v4630
        %v4632 = vmul.f32 %v4627, %v4631
        %v4633 = vmul.f32 %v4600, %v4632
        %vm4634 = vcmp.eq.f32.partialorder %v4600, inf
        %v4635 = vsel %vm4634, %v4600, %v4633
        %vm4636 = vcmp.eq.f32.partialorder %v4600, 0.0
        %v4637 = vand.u32 %v4600, 2147483648
        %v4638 = vsel %vm4636, %v4637, %v4635
        %v4639 = vrsqrt.pop %v4601
        %v4640 = vmul.f32 %v4639, %v4601
        %v4641 = vmul.f32 %v4640, %v4639
        %v4642 = vmul.f32 0.5, %v4641
        %v4643 = vsub.f32 1.5, %v4642
        %v4644 = vmul.f32 %v4639, %v4643
        %v4645 = vmul.f32 %v4601, %v4644
        %vm4646 = vcmp.eq.f32.partialorder %v4601, inf
        %v4647 = vsel %vm4646, %v4601, %v4645
        %vm4648 = vcmp.eq.f32.partialorder %v4601, 0.0
        %v4649 = vand.u32 %v4601, 2147483648
        %v4650 = vsel %vm4648, %v4649, %v4647
        %v4651 = vrsqrt.pop %v4602
        %v4652 = vmul.f32 %v4651, %v4602
        %v4653 = vmul.f32 %v4652, %v4651
        %v4654 = vmul.f32 0.5, %v4653
        %v4655 = vsub.f32 1.5, %v4654
        %v4656 = vmul.f32 %v4651, %v4655
        %v4657 = vmul.f32 %v4602, %v4656
        %vm4658 = vcmp.eq.f32.partialorder %v4602, inf
        %v4659 = vsel %vm4658, %v4602, %v4657
        %vm4660 = vcmp.eq.f32.partialorder %v4602, 0.0
        %v4661 = vand.u32 %v4602, 2147483648
        %v4662 = vsel %vm4660, %v4661, %v4659
        %v4663 = vrsqrt.pop %v4603
        %v4664 = vmul.f32 %v4663, %v4603
        %v4665 = vmul.f32 %v4664, %v4663
        %v4666 = vmul.f32 0.5, %v4665
        %v4667 = vsub.f32 1.5, %v4666
        %v4668 = vmul.f32 %v4663, %v4667
        %v4669 = vmul.f32 %v4603, %v4668
        %vm4670 = vcmp.eq.f32.partialorder %v4603, inf
        %v4671 = vsel %vm4670, %v4603, %v4669
        %vm4672 = vcmp.eq.f32.partialorder %v4603, 0.0
        %v4673 = vand.u32 %v4603, 2147483648
        %v4674 = vsel %vm4672, %v4673, %v4671
        %v4675 = vrsqrt.pop %v4604
        %v4676 = vmul.f32 %v4675, %v4604
        %v4677 = vmul.f32 %v4676, %v4675
        %v4678 = vmul.f32 0.5, %v4677
        %v4679 = vsub.f32 1.5, %v4678
        %v4680 = vmul.f32 %v4675, %v4679
        %v4681 = vmul.f32 %v4604, %v4680
        %vm4682 = vcmp.eq.f32.partialorder %v4604, inf
        %v4683 = vsel %vm4682, %v4604, %v4681
        %vm4684 = vcmp.eq.f32.partialorder %v4604, 0.0
        %v4685 = vand.u32 %v4604, 2147483648
        %v4686 = vsel %vm4684, %v4685, %v4683
        %v4687 = vrsqrt.pop %v4605
        %v4688 = vmul.f32 %v4687, %v4605
        %v4689 = vmul.f32 %v4688, %v4687
        %v4690 = vmul.f32 0.5, %v4689
        %v4691 = vsub.f32 1.5, %v4690
        %v4692 = vmul.f32 %v4687, %v4691
        %v4693 = vmul.f32 %v4605, %v4692
        %vm4694 = vcmp.eq.f32.partialorder %v4605, inf
        %v4695 = vsel %vm4694, %v4605, %v4693
        %vm4696 = vcmp.eq.f32.partialorder %v4605, 0.0
        %v4697 = vand.u32 %v4605, 2147483648
        %v4698 = vsel %vm4696, %v4697, %v4695
        %v4699 = vrsqrt.pop %v4606
        %v4700 = vmul.f32 %v4699, %v4606
        %v4701 = vmul.f32 %v4700, %v4699
        %v4702 = vmul.f32 0.5, %v4701
        %v4703 = vsub.f32 1.5, %v4702
        %v4704 = vmul.f32 %v4699, %v4703
        %v4705 = vmul.f32 %v4606, %v4704
        %vm4706 = vcmp.eq.f32.partialorder %v4606, inf
        %v4707 = vsel %vm4706, %v4606, %v4705
        %vm4708 = vcmp.eq.f32.partialorder %v4606, 0.0
        %v4709 = vand.u32 %v4606, 2147483648
        %v4710 = vsel %vm4708, %v4709, %v4707
        %v4711 = vrsqrt.pop %v4607
        %v4712 = vmul.f32 %v4711, %v4607
        %v4713 = vmul.f32 %v4712, %v4711
        %v4714 = vmul.f32 0.5, %v4713
        %v4715 = vsub.f32 1.5, %v4714
        %v4716 = vmul.f32 %v4711, %v4715
        %v4717 = vmul.f32 %v4607, %v4716
        %vm4718 = vcmp.eq.f32.partialorder %v4607, inf
        %v4719 = vsel %vm4718, %v4607, %v4717
        %vm4720 = vcmp.eq.f32.partialorder %v4607, 0.0
        %v4721 = vand.u32 %v4607, 2147483648
        %v4722 = vsel %vm4720, %v4721, %v4719
        %v4723 = vrsqrt.pop %v4608
        %v4724 = vmul.f32 %v4723, %v4608
        %v4725 = vmul.f32 %v4724, %v4723
        %v4726 = vmul.f32 0.5, %v4725
        %v4727 = vsub.f32 1.5, %v4726
        %v4728 = vmul.f32 %v4723, %v4727
        %v4729 = vmul.f32 %v4608, %v4728
        %vm4730 = vcmp.eq.f32.partialorder %v4608, inf
        %v4731 = vsel %vm4730, %v4608, %v4729
        %vm4732 = vcmp.eq.f32.partialorder %v4608, 0.0
        %v4733 = vand.u32 %v4608, 2147483648
        %v4734 = vsel %vm4732, %v4733, %v4731
        %v4735 = vrsqrt.pop %v4609
        %v4736 = vmul.f32 %v4735, %v4609
        %v4737 = vmul.f32 %v4736, %v4735
        %v4738 = vmul.f32 0.5, %v4737
        %v4739 = vsub.f32 1.5, %v4738
        %v4740 = vmul.f32 %v4735, %v4739
        %v4741 = vmul.f32 %v4609, %v4740
        %vm4742 = vcmp.eq.f32.partialorder %v4609, inf
        %v4743 = vsel %vm4742, %v4609, %v4741
        %vm4744 = vcmp.eq.f32.partialorder %v4609, 0.0
        %v4745 = vand.u32 %v4609, 2147483648
        %v4746 = vsel %vm4744, %v4745, %v4743
        %v4747 = vrsqrt.pop %v4610
        %v4748 = vmul.f32 %v4747, %v4610
        %v4749 = vmul.f32 %v4748, %v4747
        %v4750 = vmul.f32 0.5, %v4749
        %v4751 = vsub.f32 1.5, %v4750
        %v4752 = vmul.f32 %v4747, %v4751
        %v4753 = vmul.f32 %v4610, %v4752
        %vm4754 = vcmp.eq.f32.partialorder %v4610, inf
        %v4755 = vsel %vm4754, %v4610, %v4753
        %vm4756 = vcmp.eq.f32.partialorder %v4610, 0.0
        %v4757 = vand.u32 %v4610, 2147483648
        %v4758 = vsel %vm4756, %v4757, %v4755
        %v4759 = vrsqrt.pop %v4611
        %v4760 = vmul.f32 %v4759, %v4611
        %v4761 = vmul.f32 %v4760, %v4759
        %v4762 = vmul.f32 0.5, %v4761
        %v4763 = vsub.f32 1.5, %v4762
        %v4764 = vmul.f32 %v4759, %v4763
        %v4765 = vmul.f32 %v4611, %v4764
        %vm4766 = vcmp.eq.f32.partialorder %v4611, inf
        %v4767 = vsel %vm4766, %v4611, %v4765
        %vm4768 = vcmp.eq.f32.partialorder %v4611, 0.0
        %v4769 = vand.u32 %v4611, 2147483648
        %v4770 = vsel %vm4768, %v4769, %v4767
        %v4771 = vrsqrt.pop %v4612
        %v4772 = vmul.f32 %v4771, %v4612
        %v4773 = vmul.f32 %v4772, %v4771
        %v4774 = vmul.f32 0.5, %v4773
        %v4775 = vsub.f32 1.5, %v4774
        %v4776 = vmul.f32 %v4771, %v4775
        %v4777 = vmul.f32 %v4612, %v4776
        %vm4778 = vcmp.eq.f32.partialorder %v4612, inf
        %v4779 = vsel %vm4778, %v4612, %v4777
        %vm4780 = vcmp.eq.f32.partialorder %v4612, 0.0
        %v4781 = vand.u32 %v4612, 2147483648
        %v4782 = vsel %vm4780, %v4781, %v4779
        %v4783 = vrsqrt.pop %v4613
        %v4784 = vmul.f32 %v4783, %v4613
        %v4785 = vmul.f32 %v4784, %v4783
        %v4786 = vmul.f32 0.5, %v4785
        %v4787 = vsub.f32 1.5, %v4786
        %v4788 = vmul.f32 %v4783, %v4787
        %v4789 = vmul.f32 %v4613, %v4788
        %vm4790 = vcmp.eq.f32.partialorder %v4613, inf
        %v4791 = vsel %vm4790, %v4613, %v4789
        %vm4792 = vcmp.eq.f32.partialorder %v4613, 0.0
        %v4793 = vand.u32 %v4613, 2147483648
        %v4794 = vsel %vm4792, %v4793, %v4791
        %v4795 = vrsqrt.pop %v4614
        %v4796 = vmul.f32 %v4795, %v4614
        %v4797 = vmul.f32 %v4796, %v4795
        %v4798 = vmul.f32 0.5, %v4797
        %v4799 = vsub.f32 1.5, %v4798
        %v4800 = vmul.f32 %v4795, %v4799
        %v4801 = vmul.f32 %v4614, %v4800
        %vm4802 = vcmp.eq.f32.partialorder %v4614, inf
        %v4803 = vsel %vm4802, %v4614, %v4801
        %vm4804 = vcmp.eq.f32.partialorder %v4614, 0.0
        %v4805 = vand.u32 %v4614, 2147483648
        %v4806 = vsel %vm4804, %v4805, %v4803
        %v4807 = vld [vmem:[%s1] sm:$0xff]
        %v4808 = vld [vmem:[%s1 + $0x8] sm:$0xff]
        %v4809 = vld [vmem:[%s1 + $0x10] sm:$0xff]
        %v4810 = vld [vmem:[%s1 + $0x18] sm:$0xff]
        %v4811 = vld [vmem:[%s1 + $0x20] sm:$0xff]
        %v4812 = vld [vmem:[%s1 + $0x28] sm:$0xff]
        %v4813 = vld [vmem:[%s1 + $0x30] sm:$0xff]
        %v4814 = vld [vmem:[%s1 + $0x38] sm:$0xff]
        %v4815 = vld [vmem:[%s1 + $0x40] sm:$0xff]
        %v4816 = vld [vmem:[%s1 + $0x48] sm:$0xff]
        %v4817 = vld [vmem:[%s1 + $0x50] sm:$0xff]
        %v4818 = vld [vmem:[%s1 + $0x58] sm:$0xff]
        %v4819 = vld [vmem:[%s1 + $0x60] sm:$0xff]
        %v4820 = vld [vmem:[%s1 + $0x68] sm:$0xff]
        %v4821 = vld [vmem:[%s1 + $0x70] sm:$0xff]
        %v4822 = vld [vmem:[%s1 + $0x78] sm:$0xff]
        %v4823 = vld [vmem:[#allocation2] sm:$0xff]
        %v4824 = vld [vmem:[#allocation2 + $0x8] sm:$0xff]
        %v4825 = vld [vmem:[#allocation2 + $0x10] sm:$0xff]
        %v4826 = vld [vmem:[#allocation2 + $0x18] sm:$0xff]
        %v4827 = vld [vmem:[#allocation2 + $0x20] sm:$0xff]
        %v4828 = vld [vmem:[#allocation2 + $0x28] sm:$0xff]
        %v4829 = vld [vmem:[#allocation2 + $0x30] sm:$0xff]
        %v4830 = vld [vmem:[#allocation2 + $0x38] sm:$0xff]
        %v4831 = vld [vmem:[#allocation2 + $0x40] sm:$0xff]
        %v4832 = vld [vmem:[#allocation2 + $0x48] sm:$0xff]
        %v4833 = vld [vmem:[#allocation2 + $0x50] sm:$0xff]
        %v4834 = vld [vmem:[#allocation2 + $0x58] sm:$0xff]
        %v4835 = vld [vmem:[#allocation2 + $0x60] sm:$0xff]
        %v4836 = vld [vmem:[#allocation2 + $0x68] sm:$0xff]
        %v4837 = vld [vmem:[#allocation2 + $0x70] sm:$0xff]
        %v4838 = vld [vmem:[#allocation2 + $0x78] sm:$0xff]
        %v4839 = vld [vmem:[%s2] sm:$0x1]
        %4841 = vset.pattern.permute.xlu0 0
        %4842 = vperm.xlu0 %4841, %v4823
        %v4843 = vpop.permute.xlu0 %4842
        %4846 = vset.pattern.permute.xlu0 0
        %4847 = vperm.xlu0 %4846, %v4824
        %v4848 = vpop.permute.xlu0 %4847
        %4851 = vset.pattern.permute.xlu0 0
        %4852 = vperm.xlu0 %4851, %v4825
        %v4853 = vpop.permute.xlu0 %4852
        %4856 = vset.pattern.permute.xlu0 0
        %4857 = vperm.xlu0 %4856, %v4826
        %v4858 = vpop.permute.xlu0 %4857
        %4861 = vset.pattern.permute.xlu0 0
        %4862 = vperm.xlu0 %4861, %v4827
        %v4863 = vpop.permute.xlu0 %4862
        %4866 = vset.pattern.permute.xlu0 0
        %4867 = vperm.xlu0 %4866, %v4828
        %v4868 = vpop.permute.xlu0 %4867
        %4871 = vset.pattern.permute.xlu0 0
        %4872 = vperm.xlu0 %4871, %v4829
        %v4873 = vpop.permute.xlu0 %4872
        %4876 = vset.pattern.permute.xlu0 0
        %4877 = vperm.xlu0 %4876, %v4830
        %v4878 = vpop.permute.xlu0 %4877
        %4881 = vset.pattern.permute.xlu0 0
        %4882 = vperm.xlu0 %4881, %v4831
        %v4883 = vpop.permute.xlu0 %4882
        %4886 = vset.pattern.permute.xlu0 0
        %4887 = vperm.xlu0 %4886, %v4832
        %v4888 = vpop.permute.xlu0 %4887
        %4891 = vset.pattern.permute.xlu0 0
        %4892 = vperm.xlu0 %4891, %v4833
        %v4893 = vpop.permute.xlu0 %4892
        %4896 = vset.pattern.permute.xlu0 0
        %4897 = vperm.xlu0 %4896, %v4834
        %v4898 = vpop.permute.xlu0 %4897
        %4901 = vset.pattern.permute.xlu0 0
        %4902 = vperm.xlu0 %4901, %v4835
        %v4903 = vpop.permute.xlu0 %4902
        %4906 = vset.pattern.permute.xlu0 0
        %4907 = vperm.xlu0 %4906, %v4836
        %v4908 = vpop.permute.xlu0 %4907
        %4911 = vset.pattern.permute.xlu0 0
        %4912 = vperm.xlu0 %4911, %v4837
        %v4913 = vpop.permute.xlu0 %4912
        %4916 = vset.pattern.permute.xlu0 0
        %4917 = vperm.xlu0 %4916, %v4838
        %v4918 = vpop.permute.xlu0 %4917
        %v4921 = vperm.slane %v4839, 0
        %v4923 = vmul.f32 %v4843, %v4921
        %v4924 = vmul.f32 %v4848, %v4921
        %v4925 = vmul.f32 %v4853, %v4921
        %v4926 = vmul.f32 %v4858, %v4921
        %v4927 = vmul.f32 %v4863, %v4921
        %v4928 = vmul.f32 %v4868, %v4921
        %v4929 = vmul.f32 %v4873, %v4921
        %v4930 = vmul.f32 %v4878, %v4921
        %v4931 = vmul.f32 %v4883, %v4921
        %v4932 = vmul.f32 %v4888, %v4921
        %v4933 = vmul.f32 %v4893, %v4921
        %v4934 = vmul.f32 %v4898, %v4921
        %v4935 = vmul.f32 %v4903, %v4921
        %v4936 = vmul.f32 %v4908, %v4921
        %v4937 = vmul.f32 %v4913, %v4921
        %v4938 = vmul.f32 %v4918, %v4921
        %v4939 = vand.u32 %v4822, 4294901760
        %4940 = vmatpush.msra.mxu0 %v4939
        %v4941 = vand.u32 %v4821, 4294901760
        %4942 = vmatpush.msra.mxu0 %v4941
        %v4943 = vand.u32 %v4820, 4294901760
        %4944 = vmatpush.msra.mxu0 %v4943
        %v4945 = vand.u32 %v4819, 4294901760
        %4946 = vmatpush.msra.mxu0 %v4945
        %v4947 = vand.u32 %v4818, 4294901760
        %4948 = vmatpush.msra.mxu0 %v4947
        %v4949 = vand.u32 %v4817, 4294901760
        %4950 = vmatpush.msra.mxu0 %v4949
        %v4951 = vand.u32 %v4816, 4294901760
        %4952 = vmatpush.msra.mxu0 %v4951
        %v4953 = vand.u32 %v4815, 4294901760
        %4954 = vmatpush.msra.mxu0 %v4953
        %v4955 = vand.u32 %v4814, 4294901760
        %4956 = vmatpush.msra.mxu0 %v4955
        %v4957 = vand.u32 %v4813, 4294901760
        %4958 = vmatpush.msra.mxu0 %v4957
        %v4959 = vand.u32 %v4812, 4294901760
        %4960 = vmatpush.msra.mxu0 %v4959
        %v4961 = vand.u32 %v4811, 4294901760
        %4962 = vmatpush.msra.mxu0 %v4961
        %v4963 = vand.u32 %v4810, 4294901760
        %4964 = vmatpush.msra.mxu0 %v4963
        %v4965 = vand.u32 %v4809, 4294901760
        %4966 = vmatpush.msra.mxu0 %v4965
        %v4967 = vand.u32 %v4808, 4294901760
        %4968 = vmatpush.msra.mxu0 %v4967
        %v4969 = vand.u32 %v4807, 4294901760
        %4970 = vmatpush.msra.mxu0 %v4969
        %v4971 = vand.u32 %v4626, 4294901760
        %v4972 = vsub.f32 %v4626, %v4971
        %v4973 = vand.u32 %v4972, 4294901760
        %v4974 = vsub.f32 %v4972, %v4973
        %v4975 = vand.u32 %v4974, 4294901760
        %4976 = vmatmul.f32.gmra.mxu0 %v4975
        %v4977 = vpop.f32.mrf.mxu0
        %v4978 = vadd.f32 %v4923, %v4977
        %v4979 = vand.u32 %v4638, 4294901760
        %v4980 = vsub.f32 %v4638, %v4979
        %v4981 = vand.u32 %v4980, 4294901760
        %v4982 = vsub.f32 %v4980, %v4981
        %v4983 = vand.u32 %v4982, 4294901760
        %4984 = vmatmul.f32.gmra.mxu0 %v4983
        %v4985 = vpop.f32.mrf.mxu0
        %v4986 = vadd.f32 %v4924, %v4985
        %v4987 = vand.u32 %v4650, 4294901760
        %v4988 = vsub.f32 %v4650, %v4987
        %v4989 = vand.u32 %v4988, 4294901760
        %v4990 = vsub.f32 %v4988, %v4989
        %v4991 = vand.u32 %v4990, 4294901760
        %4992 = vmatmul.f32.gmra.mxu0 %v4991
        %v4993 = vpop.f32.mrf.mxu0
        %v4994 = vadd.f32 %v4925, %v4993
        %v4995 = vand.u32 %v4662, 4294901760
        %v4996 = vsub.f32 %v4662, %v4995
        %v4997 = vand.u32 %v4996, 4294901760
        %v4998 = vsub.f32 %v4996, %v4997
        %v4999 = vand.u32 %v4998, 4294901760
        %5000 = vmatmul.f32.gmra.mxu0 %v4999
        %v5001 = vpop.f32.mrf.mxu0
        %v5002 = vadd.f32 %v4926, %v5001
        %v5003 = vand.u32 %v4674, 4294901760
        %v5004 = vsub.f32 %v4674, %v5003
        %v5005 = vand.u32 %v5004, 4294901760
        %v5006 = vsub.f32 %v5004, %v5005
        %v5007 = vand.u32 %v5006, 4294901760
        %5008 = vmatmul.f32.gmra.mxu0 %v5007
        %v5009 = vpop.f32.mrf.mxu0
        %v5010 = vadd.f32 %v4927, %v5009
        %v5011 = vand.u32 %v4686, 4294901760
        %v5012 = vsub.f32 %v4686, %v5011
        %v5013 = vand.u32 %v5012, 4294901760
        %v5014 = vsub.f32 %v5012, %v5013
        %v5015 = vand.u32 %v5014, 4294901760
        %5016 = vmatmul.f32.gmra.mxu0 %v5015
        %v5017 = vpop.f32.mrf.mxu0
        %v5018 = vadd.f32 %v4928, %v5017
        %v5019 = vand.u32 %v4698, 4294901760
        %v5020 = vsub.f32 %v4698, %v5019
        %v5021 = vand.u32 %v5020, 4294901760
        %v5022 = vsub.f32 %v5020, %v5021
        %v5023 = vand.u32 %v5022, 4294901760
        %5024 = vmatmul.f32.gmra.mxu0 %v5023
        %v5025 = vpop.f32.mrf.mxu0
        %v5026 = vadd.f32 %v4929, %v5025
        %v5027 = vand.u32 %v4710, 4294901760
        %v5028 = vsub.f32 %v4710, %v5027
        %v5029 = vand.u32 %v5028, 4294901760
        %v5030 = vsub.f32 %v5028, %v5029
        %v5031 = vand.u32 %v5030, 4294901760
        %5032 = vmatmul.f32.gmra.mxu0 %v5031
        %v5033 = vpop.f32.mrf.mxu0
        %v5034 = vadd.f32 %v4930, %v5033
        %v5035 = vand.u32 %v4722, 4294901760
        %v5036 = vsub.f32 %v4722, %v5035
        %v5037 = vand.u32 %v5036, 4294901760
        %v5038 = vsub.f32 %v5036, %v5037
        %v5039 = vand.u32 %v5038, 4294901760
        %5040 = vmatmul.f32.gmra.mxu0 %v5039
        %v5041 = vpop.f32.mrf.mxu0
        %v5042 = vadd.f32 %v4931, %v5041
        %v5043 = vand.u32 %v4734, 4294901760
        %v5044 = vsub.f32 %v4734, %v5043
        %v5045 = vand.u32 %v5044, 4294901760
        %v5046 = vsub.f32 %v5044, %v5045
        %v5047 = vand.u32 %v5046, 4294901760
        %5048 = vmatmul.f32.gmra.mxu0 %v5047
        %v5049 = vpop.f32.mrf.mxu0
        %v5050 = vadd.f32 %v4932, %v5049
        %v5051 = vand.u32 %v4746, 4294901760
        %v5052 = vsub.f32 %v4746, %v5051
        %v5053 = vand.u32 %v5052, 4294901760
        %v5054 = vsub.f32 %v5052, %v5053
        %v5055 = vand.u32 %v5054, 4294901760
        %5056 = vmatmul.f32.gmra.mxu0 %v5055
        %v5057 = vpop.f32.mrf.mxu0
        %v5058 = vadd.f32 %v4933, %v5057
        %v5059 = vand.u32 %v4758, 4294901760
        %v5060 = vsub.f32 %v4758, %v5059
        %v5061 = vand.u32 %v5060, 4294901760
        %v5062 = vsub.f32 %v5060, %v5061
        %v5063 = vand.u32 %v5062, 4294901760
        %5064 = vmatmul.f32.gmra.mxu0 %v5063
        %v5065 = vpop.f32.mrf.mxu0
        %v5066 = vadd.f32 %v4934, %v5065
        %v5067 = vand.u32 %v4770, 4294901760
        %v5068 = vsub.f32 %v4770, %v5067
        %v5069 = vand.u32 %v5068, 4294901760
        %v5070 = vsub.f32 %v5068, %v5069
        %v5071 = vand.u32 %v5070, 4294901760
        %5072 = vmatmul.f32.gmra.mxu0 %v5071
        %v5073 = vpop.f32.mrf.mxu0
        %v5074 = vadd.f32 %v4935, %v5073
        %v5075 = vand.u32 %v4782, 4294901760
        %v5076 = vsub.f32 %v4782, %v5075
        %v5077 = vand.u32 %v5076, 4294901760
        %v5078 = vsub.f32 %v5076, %v5077
        %v5079 = vand.u32 %v5078, 4294901760
        %5080 = vmatmul.f32.gmra.mxu0 %v5079
        %v5081 = vpop.f32.mrf.mxu0
        %v5082 = vadd.f32 %v4936, %v5081
        %v5083 = vand.u32 %v4794, 4294901760
        %v5084 = vsub.f32 %v4794, %v5083
        %v5085 = vand.u32 %v5084, 4294901760
        %v5086 = vsub.f32 %v5084, %v5085
        %v5087 = vand.u32 %v5086, 4294901760
        %5088 = vmatmul.f32.gmra.mxu0 %v5087
        %v5089 = vpop.f32.mrf.mxu0
        %v5090 = vadd.f32 %v4937, %v5089
        %v5091 = vand.u32 %v4806, 4294901760
        %v5092 = vsub.f32 %v4806, %v5091
        %v5093 = vand.u32 %v5092, 4294901760
        %v5094 = vsub.f32 %v5092, %v5093
        %v5095 = vand.u32 %v5094, 4294901760
        %5096 = vmatmul.f32.gmra.mxu0 %v5095
        %v5097 = vpop.f32.mrf.mxu0
        %v5098 = vadd.f32 %v4938, %v5097
        %5099 = vdwg.mxu0
        %v5100 = vand.u32 %v4822, 4294901760
        %v5101 = vsub.f32 %v4822, %v5100
        %v5102 = vand.u32 %v5101, 4294901760
        %v5103 = vsub.f32 %v5101, %v5102
        %v5104 = vand.u32 %v5103, 4294901760
        %5105 = vmatpush.msra.mxu0 %v5104
        %v5106 = vand.u32 %v4821, 4294901760
        %v5107 = vsub.f32 %v4821, %v5106
        %v5108 = vand.u32 %v5107, 4294901760
        %v5109 = vsub.f32 %v5107, %v5108
        %v5110 = vand.u32 %v5109, 4294901760
        %5111 = vmatpush.msra.mxu0 %v5110
        %v5112 = vand.u32 %v4820, 4294901760
        %v5113 = vsub.f32 %v4820, %v5112
        %v5114 = vand.u32 %v5113, 4294901760
        %v5115 = vsub.f32 %v5113, %v5114
        %v5116 = vand.u32 %v5115, 4294901760
        %5117 = vmatpush.msra.mxu0 %v5116
        %v5118 = vand.u32 %v4819, 4294901760
        %v5119 = vsub.f32 %v4819, %v5118
        %v5120 = vand.u32 %v5119, 4294901760
        %v5121 = vsub.f32 %v5119, %v5120
        %v5122 = vand.u32 %v5121, 4294901760
        %5123 = vmatpush.msra.mxu0 %v5122
        %v5124 = vand.u32 %v4818, 4294901760
        %v5125 = vsub.f32 %v4818, %v5124
        %v5126 = vand.u32 %v5125, 4294901760
        %v5127 = vsub.f32 %v5125, %v5126
        %v5128 = vand.u32 %v5127, 4294901760
        %5129 = vmatpush.msra.mxu0 %v5128
        %v5130 = vand.u32 %v4817, 4294901760
        %v5131 = vsub.f32 %v4817, %v5130
        %v5132 = vand.u32 %v5131, 4294901760
        %v5133 = vsub.f32 %v5131, %v5132
        %v5134 = vand.u32 %v5133, 4294901760
        %5135 = vmatpush.msra.mxu0 %v5134
        %v5136 = vand.u32 %v4816, 4294901760
        %v5137 = vsub.f32 %v4816, %v5136
        %v5138 = vand.u32 %v5137, 4294901760
        %v5139 = vsub.f32 %v5137, %v5138
        %v5140 = vand.u32 %v5139, 4294901760
        %5141 = vmatpush.msra.mxu0 %v5140
        %v5142 = vand.u32 %v4815, 4294901760
        %v5143 = vsub.f32 %v4815, %v5142
        %v5144 = vand.u32 %v5143, 4294901760
        %v5145 = vsub.f32 %v5143, %v5144
        %v5146 = vand.u32 %v5145, 4294901760
        %5147 = vmatpush.msra.mxu0 %v5146
        %v5148 = vand.u32 %v4814, 4294901760
        %v5149 = vsub.f32 %v4814, %v5148
        %v5150 = vand.u32 %v5149, 4294901760
        %v5151 = vsub.f32 %v5149, %v5150
        %v5152 = vand.u32 %v5151, 4294901760
        %5153 = vmatpush.msra.mxu0 %v5152
        %v5154 = vand.u32 %v4813, 4294901760
        %v5155 = vsub.f32 %v4813, %v5154
        %v5156 = vand.u32 %v5155, 4294901760
        %v5157 = vsub.f32 %v5155, %v5156
        %v5158 = vand.u32 %v5157, 4294901760
        %5159 = vmatpush.msra.mxu0 %v5158
        %v5160 = vand.u32 %v4812, 4294901760
        %v5161 = vsub.f32 %v4812, %v5160
        %v5162 = vand.u32 %v5161, 4294901760
        %v5163 = vsub.f32 %v5161, %v5162
        %v5164 = vand.u32 %v5163, 4294901760
        %5165 = vmatpush.msra.mxu0 %v5164
        %v5166 = vand.u32 %v4811, 4294901760
        %v5167 = vsub.f32 %v4811, %v5166
        %v5168 = vand.u32 %v5167, 4294901760
        %v5169 = vsub.f32 %v5167, %v5168
        %v5170 = vand.u32 %v5169, 4294901760
        %5171 = vmatpush.msra.mxu0 %v5170
        %v5172 = vand.u32 %v4810, 4294901760
        %v5173 = vsub.f32 %v4810, %v5172
        %v5174 = vand.u32 %v5173, 4294901760
        %v5175 = vsub.f32 %v5173, %v5174
        %v5176 = vand.u32 %v5175, 4294901760
        %5177 = vmatpush.msra.mxu0 %v5176
        %v5178 = vand.u32 %v4809, 4294901760
        %v5179 = vsub.f32 %v4809, %v5178
        %v5180 = vand.u32 %v5179, 4294901760
        %v5181 = vsub.f32 %v5179, %v5180
        %v5182 = vand.u32 %v5181, 4294901760
        %5183 = vmatpush.msra.mxu0 %v5182
        %v5184 = vand.u32 %v4808, 4294901760
        %v5185 = vsub.f32 %v4808, %v5184
        %v5186 = vand.u32 %v5185, 4294901760
        %v5187 = vsub.f32 %v5185, %v5186
        %v5188 = vand.u32 %v5187, 4294901760
        %5189 = vmatpush.msra.mxu0 %v5188
        %v5190 = vand.u32 %v4807, 4294901760
        %v5191 = vsub.f32 %v4807, %v5190
        %v5192 = vand.u32 %v5191, 4294901760
        %v5193 = vsub.f32 %v5191, %v5192
        %v5194 = vand.u32 %v5193, 4294901760
        %5195 = vmatpush.msra.mxu0 %v5194
        %v5196 = vand.u32 %v4626, 4294901760
        %5197 = vmatmul.f32.gmra.mxu0 %v5196
        %v5198 = vpop.f32.mrf.mxu0
        %v5199 = vadd.f32 %v4978, %v5198
        %v5200 = vand.u32 %v4638, 4294901760
        %5201 = vmatmul.f32.gmra.mxu0 %v5200
        %v5202 = vpop.f32.mrf.mxu0
        %v5203 = vadd.f32 %v4986, %v5202
        %v5204 = vand.u32 %v4650, 4294901760
        %5205 = vmatmul.f32.gmra.mxu0 %v5204
        %v5206 = vpop.f32.mrf.mxu0
        %v5207 = vadd.f32 %v4994, %v5206
        %v5208 = vand.u32 %v4662, 4294901760
        %5209 = vmatmul.f32.gmra.mxu0 %v5208
        %v5210 = vpop.f32.mrf.mxu0
        %v5211 = vadd.f32 %v5002, %v5210
        %v5212 = vand.u32 %v4674, 4294901760
        %5213 = vmatmul.f32.gmra.mxu0 %v5212
        %v5214 = vpop.f32.mrf.mxu0
        %v5215 = vadd.f32 %v5010, %v5214
        %v5216 = vand.u32 %v4686, 4294901760
        %5217 = vmatmul.f32.gmra.mxu0 %v5216
        %v5218 = vpop.f32.mrf.mxu0
        %v5219 = vadd.f32 %v5018, %v5218
        %v5220 = vand.u32 %v4698, 4294901760
        %5221 = vmatmul.f32.gmra.mxu0 %v5220
        %v5222 = vpop.f32.mrf.mxu0
        %v5223 = vadd.f32 %v5026, %v5222
        %v5224 = vand.u32 %v4710, 4294901760
        %5225 = vmatmul.f32.gmra.mxu0 %v5224
        %v5226 = vpop.f32.mrf.mxu0
        %v5227 = vadd.f32 %v5034, %v5226
        %v5228 = vand.u32 %v4722, 4294901760
        %5229 = vmatmul.f32.gmra.mxu0 %v5228
        %v5230 = vpop.f32.mrf.mxu0
        %v5231 = vadd.f32 %v5042, %v5230
        %v5232 = vand.u32 %v4734, 4294901760
        %5233 = vmatmul.f32.gmra.mxu0 %v5232
        %v5234 = vpop.f32.mrf.mxu0
        %v5235 = vadd.f32 %v5050, %v5234
        %v5236 = vand.u32 %v4746, 4294901760
        %5237 = vmatmul.f32.gmra.mxu0 %v5236
        %v5238 = vpop.f32.mrf.mxu0
        %v5239 = vadd.f32 %v5058, %v5238
        %v5240 = vand.u32 %v4758, 4294901760
        %5241 = vmatmul.f32.gmra.mxu0 %v5240
        %v5242 = vpop.f32.mrf.mxu0
        %v5243 = vadd.f32 %v5066, %v5242
        %v5244 = vand.u32 %v4770, 4294901760
        %5245 = vmatmul.f32.gmra.mxu0 %v5244
        %v5246 = vpop.f32.mrf.mxu0
        %v5247 = vadd.f32 %v5074, %v5246
        %v5248 = vand.u32 %v4782, 4294901760
        %5249 = vmatmul.f32.gmra.mxu0 %v5248
        %v5250 = vpop.f32.mrf.mxu0
        %v5251 = vadd.f32 %v5082, %v5250
        %v5252 = vand.u32 %v4794, 4294901760
        %5253 = vmatmul.f32.gmra.mxu0 %v5252
        %v5254 = vpop.f32.mrf.mxu0
        %v5255 = vadd.f32 %v5090, %v5254
        %v5256 = vand.u32 %v4806, 4294901760
        %5257 = vmatmul.f32.gmra.mxu0 %v5256
        %v5258 = vpop.f32.mrf.mxu0
        %v5259 = vadd.f32 %v5098, %v5258
        %5260 = vdwg.mxu0
        %v5261 = vand.u32 %v4822, 4294901760
        %v5262 = vsub.f32 %v4822, %v5261
        %5263 = vmatpush.msra.mxu0 %v5262
        %v5264 = vand.u32 %v4821, 4294901760
        %v5265 = vsub.f32 %v4821, %v5264
        %5266 = vmatpush.msra.mxu0 %v5265
        %v5267 = vand.u32 %v4820, 4294901760
        %v5268 = vsub.f32 %v4820, %v5267
        %5269 = vmatpush.msra.mxu0 %v5268
        %v5270 = vand.u32 %v4819, 4294901760
        %v5271 = vsub.f32 %v4819, %v5270
        %5272 = vmatpush.msra.mxu0 %v5271
        %v5273 = vand.u32 %v4818, 4294901760
        %v5274 = vsub.f32 %v4818, %v5273
        %5275 = vmatpush.msra.mxu0 %v5274
        %v5276 = vand.u32 %v4817, 4294901760
        %v5277 = vsub.f32 %v4817, %v5276
        %5278 = vmatpush.msra.mxu0 %v5277
        %v5279 = vand.u32 %v4816, 4294901760
        %v5280 = vsub.f32 %v4816, %v5279
        %5281 = vmatpush.msra.mxu0 %v5280
        %v5282 = vand.u32 %v4815, 4294901760
        %v5283 = vsub.f32 %v4815, %v5282
        %5284 = vmatpush.msra.mxu0 %v5283
        %v5285 = vand.u32 %v4814, 4294901760
        %v5286 = vsub.f32 %v4814, %v5285
        %5287 = vmatpush.msra.mxu0 %v5286
        %v5288 = vand.u32 %v4813, 4294901760
        %v5289 = vsub.f32 %v4813, %v5288
        %5290 = vmatpush.msra.mxu0 %v5289
        %v5291 = vand.u32 %v4812, 4294901760
        %v5292 = vsub.f32 %v4812, %v5291
        %5293 = vmatpush.msra.mxu0 %v5292
        %v5294 = vand.u32 %v4811, 4294901760
        %v5295 = vsub.f32 %v4811, %v5294
        %5296 = vmatpush.msra.mxu0 %v5295
        %v5297 = vand.u32 %v4810, 4294901760
        %v5298 = vsub.f32 %v4810, %v5297
        %5299 = vmatpush.msra.mxu0 %v5298
        %v5300 = vand.u32 %v4809, 4294901760
        %v5301 = vsub.f32 %v4809, %v5300
        %5302 = vmatpush.msra.mxu0 %v5301
        %v5303 = vand.u32 %v4808, 4294901760
        %v5304 = vsub.f32 %v4808, %v5303
        %5305 = vmatpush.msra.mxu0 %v5304
        %v5306 = vand.u32 %v4807, 4294901760
        %v5307 = vsub.f32 %v4807, %v5306
        %5308 = vmatpush.msra.mxu0 %v5307
        %v5309 = vand.u32 %v4626, 4294901760
        %v5310 = vsub.f32 %v4626, %v5309
        %5311 = vmatmul.f32.gmra.mxu0 %v5310
        %v5312 = vpop.f32.mrf.mxu0
        %v5313 = vadd.f32 %v5199, %v5312
        %v5314 = vand.u32 %v4638, 4294901760
        %v5315 = vsub.f32 %v4638, %v5314
        %5316 = vmatmul.f32.gmra.mxu0 %v5315
        %v5317 = vpop.f32.mrf.mxu0
        %v5318 = vadd.f32 %v5203, %v5317
        %v5319 = vand.u32 %v4650, 4294901760
        %v5320 = vsub.f32 %v4650, %v5319
        %5321 = vmatmul.f32.gmra.mxu0 %v5320
        %v5322 = vpop.f32.mrf.mxu0
        %v5323 = vadd.f32 %v5207, %v5322
        %v5324 = vand.u32 %v4662, 4294901760
        %v5325 = vsub.f32 %v4662, %v5324
        %5326 = vmatmul.f32.gmra.mxu0 %v5325
        %v5327 = vpop.f32.mrf.mxu0
        %v5328 = vadd.f32 %v5211, %v5327
        %v5329 = vand.u32 %v4674, 4294901760
        %v5330 = vsub.f32 %v4674, %v5329
        %5331 = vmatmul.f32.gmra.mxu0 %v5330
        %v5332 = vpop.f32.mrf.mxu0
        %v5333 = vadd.f32 %v5215, %v5332
        %v5334 = vand.u32 %v4686, 4294901760
        %v5335 = vsub.f32 %v4686, %v5334
        %5336 = vmatmul.f32.gmra.mxu0 %v5335
        %v5337 = vpop.f32.mrf.mxu0
        %v5338 = vadd.f32 %v5219, %v5337
        %v5339 = vand.u32 %v4698, 4294901760
        %v5340 = vsub.f32 %v4698, %v5339
        %5341 = vmatmul.f32.gmra.mxu0 %v5340
        %v5342 = vpop.f32.mrf.mxu0
        %v5343 = vadd.f32 %v5223, %v5342
        %v5344 = vand.u32 %v4710, 4294901760
        %v5345 = vsub.f32 %v4710, %v5344
        %5346 = vmatmul.f32.gmra.mxu0 %v5345
        %v5347 = vpop.f32.mrf.mxu0
        %v5348 = vadd.f32 %v5227, %v5347
        %v5349 = vand.u32 %v4722, 4294901760
        %v5350 = vsub.f32 %v4722, %v5349
        %5351 = vmatmul.f32.gmra.mxu0 %v5350
        %v5352 = vpop.f32.mrf.mxu0
        %v5353 = vadd.f32 %v5231, %v5352
        %v5354 = vand.u32 %v4734, 4294901760
        %v5355 = vsub.f32 %v4734, %v5354
        %5356 = vmatmul.f32.gmra.mxu0 %v5355
        %v5357 = vpop.f32.mrf.mxu0
        %v5358 = vadd.f32 %v5235, %v5357
        %v5359 = vand.u32 %v4746, 4294901760
        %v5360 = vsub.f32 %v4746, %v5359
        %5361 = vmatmul.f32.gmra.mxu0 %v5360
        %v5362 = vpop.f32.mrf.mxu0
        %v5363 = vadd.f32 %v5239, %v5362
        %v5364 = vand.u32 %v4758, 4294901760
        %v5365 = vsub.f32 %v4758, %v5364
        %5366 = vmatmul.f32.gmra.mxu0 %v5365
        %v5367 = vpop.f32.mrf.mxu0
        %v5368 = vadd.f32 %v5243, %v5367
        %v5369 = vand.u32 %v4770, 4294901760
        %v5370 = vsub.f32 %v4770, %v5369
        %5371 = vmatmul.f32.gmra.mxu0 %v5370
        %v5372 = vpop.f32.mrf.mxu0
        %v5373 = vadd.f32 %v5247, %v5372
        %v5374 = vand.u32 %v4782, 4294901760
        %v5375 = vsub.f32 %v4782, %v5374
        %5376 = vmatmul.f32.gmra.mxu0 %v5375
        %v5377 = vpop.f32.mrf.mxu0
        %v5378 = vadd.f32 %v5251, %v5377
        %v5379 = vand.u32 %v4794, 4294901760
        %v5380 = vsub.f32 %v4794, %v5379
        %5381 = vmatmul.f32.gmra.mxu0 %v5380
        %v5382 = vpop.f32.mrf.mxu0
        %v5383 = vadd.f32 %v5255, %v5382
        %v5384 = vand.u32 %v4806, 4294901760
        %v5385 = vsub.f32 %v4806, %v5384
        %5386 = vmatmul.f32.gmra.mxu0 %v5385
        %v5387 = vpop.f32.mrf.mxu0
        %v5388 = vadd.f32 %v5259, %v5387
        %5389 = vdwg.mxu0
        %v5390 = vand.u32 %v4822, 4294901760
        %5391 = vmatpush.msra.mxu0 %v5390
        %v5392 = vand.u32 %v4821, 4294901760
        %5393 = vmatpush.msra.mxu0 %v5392
        %v5394 = vand.u32 %v4820, 4294901760
        %5395 = vmatpush.msra.mxu0 %v5394
        %v5396 = vand.u32 %v4819, 4294901760
        %5397 = vmatpush.msra.mxu0 %v5396
        %v5398 = vand.u32 %v4818, 4294901760
        %5399 = vmatpush.msra.mxu0 %v5398
        %v5400 = vand.u32 %v4817, 4294901760
        %5401 = vmatpush.msra.mxu0 %v5400
        %v5402 = vand.u32 %v4816, 4294901760
        %5403 = vmatpush.msra.mxu0 %v5402
        %v5404 = vand.u32 %v4815, 4294901760
        %5405 = vmatpush.msra.mxu0 %v5404
        %v5406 = vand.u32 %v4814, 4294901760
        %5407 = vmatpush.msra.mxu0 %v5406
        %v5408 = vand.u32 %v4813, 4294901760
        %5409 = vmatpush.msra.mxu0 %v5408
        %v5410 = vand.u32 %v4812, 4294901760
        %5411 = vmatpush.msra.mxu0 %v5410
        %v5412 = vand.u32 %v4811, 4294901760
        %5413 = vmatpush.msra.mxu0 %v5412
        %v5414 = vand.u32 %v4810, 4294901760
        %5415 = vmatpush.msra.mxu0 %v5414
        %v5416 = vand.u32 %v4809, 4294901760
        %5417 = vmatpush.msra.mxu0 %v5416
        %v5418 = vand.u32 %v4808, 4294901760
        %5419 = vmatpush.msra.mxu0 %v5418
        %v5420 = vand.u32 %v4807, 4294901760
        %5421 = vmatpush.msra.mxu0 %v5420
        %v5422 = vand.u32 %v4626, 4294901760
        %v5423 = vsub.f32 %v4626, %v5422
        %v5424 = vand.u32 %v5423, 4294901760
        %5425 = vmatmul.f32.gmra.mxu0 %v5424
        %v5426 = vpop.f32.mrf.mxu0
        %v5427 = vadd.f32 %v5313, %v5426
        %v5428 = vand.u32 %v4638, 4294901760
        %v5429 = vsub.f32 %v4638, %v5428
        %v5430 = vand.u32 %v5429, 4294901760
        %5431 = vmatmul.f32.gmra.mxu0 %v5430
        %v5432 = vpop.f32.mrf.mxu0
        %v5433 = vadd.f32 %v5318, %v5432
        %v5434 = vand.u32 %v4650, 4294901760
        %v5435 = vsub.f32 %v4650, %v5434
        %v5436 = vand.u32 %v5435, 4294901760
        %5437 = vmatmul.f32.gmra.mxu0 %v5436
        %v5438 = vpop.f32.mrf.mxu0
        %v5439 = vadd.f32 %v5323, %v5438
        %v5440 = vand.u32 %v4662, 4294901760
        %v5441 = vsub.f32 %v4662, %v5440
        %v5442 = vand.u32 %v5441, 4294901760
        %5443 = vmatmul.f32.gmra.mxu0 %v5442
        %v5444 = vpop.f32.mrf.mxu0
        %v5445 = vadd.f32 %v5328, %v5444
        %v5446 = vand.u32 %v4674, 4294901760
        %v5447 = vsub.f32 %v4674, %v5446
        %v5448 = vand.u32 %v5447, 4294901760
        %5449 = vmatmul.f32.gmra.mxu0 %v5448
        %v5450 = vpop.f32.mrf.mxu0
        %v5451 = vadd.f32 %v5333, %v5450
        %v5452 = vand.u32 %v4686, 4294901760
        %v5453 = vsub.f32 %v4686, %v5452
        %v5454 = vand.u32 %v5453, 4294901760
        %5455 = vmatmul.f32.gmra.mxu0 %v5454
        %v5456 = vpop.f32.mrf.mxu0
        %v5457 = vadd.f32 %v5338, %v5456
        %v5458 = vand.u32 %v4698, 4294901760
        %v5459 = vsub.f32 %v4698, %v5458
        %v5460 = vand.u32 %v5459, 4294901760
        %5461 = vmatmul.f32.gmra.mxu0 %v5460
        %v5462 = vpop.f32.mrf.mxu0
        %v5463 = vadd.f32 %v5343, %v5462
        %v5464 = vand.u32 %v4710, 4294901760
        %v5465 = vsub.f32 %v4710, %v5464
        %v5466 = vand.u32 %v5465, 4294901760
        %5467 = vmatmul.f32.gmra.mxu0 %v5466
        %v5468 = vpop.f32.mrf.mxu0
        %v5469 = vadd.f32 %v5348, %v5468
        %v5470 = vand.u32 %v4722, 4294901760
        %v5471 = vsub.f32 %v4722, %v5470
        %v5472 = vand.u32 %v5471, 4294901760
        %5473 = vmatmul.f32.gmra.mxu0 %v5472
        %v5474 = vpop.f32.mrf.mxu0
        %v5475 = vadd.f32 %v5353, %v5474
        %v5476 = vand.u32 %v4734, 4294901760
        %v5477 = vsub.f32 %v4734, %v5476
        %v5478 = vand.u32 %v5477, 4294901760
        %5479 = vmatmul.f32.gmra.mxu0 %v5478
        %v5480 = vpop.f32.mrf.mxu0
        %v5481 = vadd.f32 %v5358, %v5480
        %v5482 = vand.u32 %v4746, 4294901760
        %v5483 = vsub.f32 %v4746, %v5482
        %v5484 = vand.u32 %v5483, 4294901760
        %5485 = vmatmul.f32.gmra.mxu0 %v5484
        %v5486 = vpop.f32.mrf.mxu0
        %v5487 = vadd.f32 %v5363, %v5486
        %v5488 = vand.u32 %v4758, 4294901760
        %v5489 = vsub.f32 %v4758, %v5488
        %v5490 = vand.u32 %v5489, 4294901760
        %5491 = vmatmul.f32.gmra.mxu0 %v5490
        %v5492 = vpop.f32.mrf.mxu0
        %v5493 = vadd.f32 %v5368, %v5492
        %v5494 = vand.u32 %v4770, 4294901760
        %v5495 = vsub.f32 %v4770, %v5494
        %v5496 = vand.u32 %v5495, 4294901760
        %5497 = vmatmul.f32.gmra.mxu0 %v5496
        %v5498 = vpop.f32.mrf.mxu0
        %v5499 = vadd.f32 %v5373, %v5498
        %v5500 = vand.u32 %v4782, 4294901760
        %v5501 = vsub.f32 %v4782, %v5500
        %v5502 = vand.u32 %v5501, 4294901760
        %5503 = vmatmul.f32.gmra.mxu0 %v5502
        %v5504 = vpop.f32.mrf.mxu0
        %v5505 = vadd.f32 %v5378, %v5504
        %v5506 = vand.u32 %v4794, 4294901760
        %v5507 = vsub.f32 %v4794, %v5506
        %v5508 = vand.u32 %v5507, 4294901760
        %5509 = vmatmul.f32.gmra.mxu0 %v5508
        %v5510 = vpop.f32.mrf.mxu0
        %v5511 = vadd.f32 %v5383, %v5510
        %v5512 = vand.u32 %v4806, 4294901760
        %v5513 = vsub.f32 %v4806, %v5512
        %v5514 = vand.u32 %v5513, 4294901760
        %5515 = vmatmul.f32.gmra.mxu0 %v5514
        %v5516 = vpop.f32.mrf.mxu0
        %v5517 = vadd.f32 %v5388, %v5516
        %5518 = vdwg.mxu0
        %v5519 = vand.u32 %v4822, 4294901760
        %v5520 = vsub.f32 %v4822, %v5519
        %v5521 = vand.u32 %v5520, 4294901760
        %5522 = vmatpush.msra.mxu0 %v5521
        %v5523 = vand.u32 %v4821, 4294901760
        %v5524 = vsub.f32 %v4821, %v5523
        %v5525 = vand.u32 %v5524, 4294901760
        %5526 = vmatpush.msra.mxu0 %v5525
        %v5527 = vand.u32 %v4820, 4294901760
        %v5528 = vsub.f32 %v4820, %v5527
        %v5529 = vand.u32 %v5528, 4294901760
        %5530 = vmatpush.msra.mxu0 %v5529
        %v5531 = vand.u32 %v4819, 4294901760
        %v5532 = vsub.f32 %v4819, %v5531
        %v5533 = vand.u32 %v5532, 4294901760
        %5534 = vmatpush.msra.mxu0 %v5533
        %v5535 = vand.u32 %v4818, 4294901760
        %v5536 = vsub.f32 %v4818, %v5535
        %v5537 = vand.u32 %v5536, 4294901760
        %5538 = vmatpush.msra.mxu0 %v5537
        %v5539 = vand.u32 %v4817, 4294901760
        %v5540 = vsub.f32 %v4817, %v5539
        %v5541 = vand.u32 %v5540, 4294901760
        %5542 = vmatpush.msra.mxu0 %v5541
        %v5543 = vand.u32 %v4816, 4294901760
        %v5544 = vsub.f32 %v4816, %v5543
        %v5545 = vand.u32 %v5544, 4294901760
        %5546 = vmatpush.msra.mxu0 %v5545
        %v5547 = vand.u32 %v4815, 4294901760
        %v5548 = vsub.f32 %v4815, %v5547
        %v5549 = vand.u32 %v5548, 4294901760
        %5550 = vmatpush.msra.mxu0 %v5549
        %v5551 = vand.u32 %v4814, 4294901760
        %v5552 = vsub.f32 %v4814, %v5551
        %v5553 = vand.u32 %v5552, 4294901760
        %5554 = vmatpush.msra.mxu0 %v5553
        %v5555 = vand.u32 %v4813, 4294901760
        %v5556 = vsub.f32 %v4813, %v5555
        %v5557 = vand.u32 %v5556, 4294901760
        %5558 = vmatpush.msra.mxu0 %v5557
        %v5559 = vand.u32 %v4812, 4294901760
        %v5560 = vsub.f32 %v4812, %v5559
        %v5561 = vand.u32 %v5560, 4294901760
        %5562 = vmatpush.msra.mxu0 %v5561
        %v5563 = vand.u32 %v4811, 4294901760
        %v5564 = vsub.f32 %v4811, %v5563
        %v5565 = vand.u32 %v5564, 4294901760
        %5566 = vmatpush.msra.mxu0 %v5565
        %v5567 = vand.u32 %v4810, 4294901760
        %v5568 = vsub.f32 %v4810, %v5567
        %v5569 = vand.u32 %v5568, 4294901760
        %5570 = vmatpush.msra.mxu0 %v5569
        %v5571 = vand.u32 %v4809, 4294901760
        %v5572 = vsub.f32 %v4809, %v5571
        %v5573 = vand.u32 %v5572, 4294901760
        %5574 = vmatpush.msra.mxu0 %v5573
        %v5575 = vand.u32 %v4808, 4294901760
        %v5576 = vsub.f32 %v4808, %v5575
        %v5577 = vand.u32 %v5576, 4294901760
        %5578 = vmatpush.msra.mxu0 %v5577
        %v5579 = vand.u32 %v4807, 4294901760
        %v5580 = vsub.f32 %v4807, %v5579
        %v5581 = vand.u32 %v5580, 4294901760
        %5582 = vmatpush.msra.mxu0 %v5581
        %v5583 = vand.u32 %v4626, 4294901760
        %5584 = vmatmul.f32.gmra.mxu0 %v5583
        %v5585 = vpop.f32.mrf.mxu0
        %v5586 = vadd.f32 %v5427, %v5585
        %v5587 = vand.u32 %v4638, 4294901760
        %5588 = vmatmul.f32.gmra.mxu0 %v5587
        %v5589 = vpop.f32.mrf.mxu0
        %v5590 = vadd.f32 %v5433, %v5589
        %v5591 = vand.u32 %v4650, 4294901760
        %5592 = vmatmul.f32.gmra.mxu0 %v5591
        %v5593 = vpop.f32.mrf.mxu0
        %v5594 = vadd.f32 %v5439, %v5593
        %v5595 = vand.u32 %v4662, 4294901760
        %5596 = vmatmul.f32.gmra.mxu0 %v5595
        %v5597 = vpop.f32.mrf.mxu0
        %v5598 = vadd.f32 %v5445, %v5597
        %v5599 = vand.u32 %v4674, 4294901760
        %5600 = vmatmul.f32.gmra.mxu0 %v5599
        %v5601 = vpop.f32.mrf.mxu0
        %v5602 = vadd.f32 %v5451, %v5601
        %v5603 = vand.u32 %v4686, 4294901760
        %5604 = vmatmul.f32.gmra.mxu0 %v5603
        %v5605 = vpop.f32.mrf.mxu0
        %v5606 = vadd.f32 %v5457, %v5605
        %v5607 = vand.u32 %v4698, 4294901760
        %5608 = vmatmul.f32.gmra.mxu0 %v5607
        %v5609 = vpop.f32.mrf.mxu0
        %v5610 = vadd.f32 %v5463, %v5609
        %v5611 = vand.u32 %v4710, 4294901760
        %5612 = vmatmul.f32.gmra.mxu0 %v5611
        %v5613 = vpop.f32.mrf.mxu0
        %v5614 = vadd.f32 %v5469, %v5613
        %v5615 = vand.u32 %v4722, 4294901760
        %5616 = vmatmul.f32.gmra.mxu0 %v5615
        %v5617 = vpop.f32.mrf.mxu0
        %v5618 = vadd.f32 %v5475, %v5617
        %v5619 = vand.u32 %v4734, 4294901760
        %5620 = vmatmul.f32.gmra.mxu0 %v5619
        %v5621 = vpop.f32.mrf.mxu0
        %v5622 = vadd.f32 %v5481, %v5621
        %v5623 = vand.u32 %v4746, 4294901760
        %5624 = vmatmul.f32.gmra.mxu0 %v5623
        %v5625 = vpop.f32.mrf.mxu0
        %v5626 = vadd.f32 %v5487, %v5625
        %v5627 = vand.u32 %v4758, 4294901760
        %5628 = vmatmul.f32.gmra.mxu0 %v5627
        %v5629 = vpop.f32.mrf.mxu0
        %v5630 = vadd.f32 %v5493, %v5629
        %v5631 = vand.u32 %v4770, 4294901760
        %5632 = vmatmul.f32.gmra.mxu0 %v5631
        %v5633 = vpop.f32.mrf.mxu0
        %v5634 = vadd.f32 %v5499, %v5633
        %v5635 = vand.u32 %v4782, 4294901760
        %5636 = vmatmul.f32.gmra.mxu0 %v5635
        %v5637 = vpop.f32.mrf.mxu0
        %v5638 = vadd.f32 %v5505, %v5637
        %v5639 = vand.u32 %v4794, 4294901760
        %5640 = vmatmul.f32.gmra.mxu0 %v5639
        %v5641 = vpop.f32.mrf.mxu0
        %v5642 = vadd.f32 %v5511, %v5641
        %v5643 = vand.u32 %v4806, 4294901760
        %5644 = vmatmul.f32.gmra.mxu0 %v5643
        %v5645 = vpop.f32.mrf.mxu0
        %v5646 = vadd.f32 %v5517, %v5645
        %5647 = vdwg.mxu0
        %v5648 = vand.u32 %v4822, 4294901760
        %5649 = vmatpush.msra.mxu0 %v5648
        %v5650 = vand.u32 %v4821, 4294901760
        %5651 = vmatpush.msra.mxu0 %v5650
        %v5652 = vand.u32 %v4820, 4294901760
        %5653 = vmatpush.msra.mxu0 %v5652
        %v5654 = vand.u32 %v4819, 4294901760
        %5655 = vmatpush.msra.mxu0 %v5654
        %v5656 = vand.u32 %v4818, 4294901760
        %5657 = vmatpush.msra.mxu0 %v5656
        %v5658 = vand.u32 %v4817, 4294901760
        %5659 = vmatpush.msra.mxu0 %v5658
        %v5660 = vand.u32 %v4816, 4294901760
        %5661 = vmatpush.msra.mxu0 %v5660
        %v5662 = vand.u32 %v4815, 4294901760
        %5663 = vmatpush.msra.mxu0 %v5662
        %v5664 = vand.u32 %v4814, 4294901760
        %5665 = vmatpush.msra.mxu0 %v5664
        %v5666 = vand.u32 %v4813, 4294901760
        %5667 = vmatpush.msra.mxu0 %v5666
        %v5668 = vand.u32 %v4812, 4294901760
        %5669 = vmatpush.msra.mxu0 %v5668
        %v5670 = vand.u32 %v4811, 4294901760
        %5671 = vmatpush.msra.mxu0 %v5670
        %v5672 = vand.u32 %v4810, 4294901760
        %5673 = vmatpush.msra.mxu0 %v5672
        %v5674 = vand.u32 %v4809, 4294901760
        %5675 = vmatpush.msra.mxu0 %v5674
        %v5676 = vand.u32 %v4808, 4294901760
        %5677 = vmatpush.msra.mxu0 %v5676
        %v5678 = vand.u32 %v4807, 4294901760
        %5679 = vmatpush.msra.mxu0 %v5678
        %v5680 = vand.u32 %v4626, 4294901760
        %5681 = vmatmul.f32.gmra.mxu0 %v5680
        %v5682 = vpop.f32.mrf.mxu0
        %v5683 = vadd.f32 %v5586, %v5682
        %v5684 = vand.u32 %v4638, 4294901760
        %5685 = vmatmul.f32.gmra.mxu0 %v5684
        %v5686 = vpop.f32.mrf.mxu0
        %v5687 = vadd.f32 %v5590, %v5686
        %v5688 = vand.u32 %v4650, 4294901760
        %5689 = vmatmul.f32.gmra.mxu0 %v5688
        %v5690 = vpop.f32.mrf.mxu0
        %v5691 = vadd.f32 %v5594, %v5690
        %v5692 = vand.u32 %v4662, 4294901760
        %5693 = vmatmul.f32.gmra.mxu0 %v5692
        %v5694 = vpop.f32.mrf.mxu0
        %v5695 = vadd.f32 %v5598, %v5694
        %v5696 = vand.u32 %v4674, 4294901760
        %5697 = vmatmul.f32.gmra.mxu0 %v5696
        %v5698 = vpop.f32.mrf.mxu0
        %v5699 = vadd.f32 %v5602, %v5698
        %v5700 = vand.u32 %v4686, 4294901760
        %5701 = vmatmul.f32.gmra.mxu0 %v5700
        %v5702 = vpop.f32.mrf.mxu0
        %v5703 = vadd.f32 %v5606, %v5702
        %v5704 = vand.u32 %v4698, 4294901760
        %5705 = vmatmul.f32.gmra.mxu0 %v5704
        %v5706 = vpop.f32.mrf.mxu0
        %v5707 = vadd.f32 %v5610, %v5706
        %v5708 = vand.u32 %v4710, 4294901760
        %5709 = vmatmul.f32.gmra.mxu0 %v5708
        %v5710 = vpop.f32.mrf.mxu0
        %v5711 = vadd.f32 %v5614, %v5710
        %v5712 = vand.u32 %v4722, 4294901760
        %5713 = vmatmul.f32.gmra.mxu0 %v5712
        %v5714 = vpop.f32.mrf.mxu0
        %v5715 = vadd.f32 %v5618, %v5714
        %v5716 = vand.u32 %v4734, 4294901760
        %5717 = vmatmul.f32.gmra.mxu0 %v5716
        %v5718 = vpop.f32.mrf.mxu0
        %v5719 = vadd.f32 %v5622, %v5718
        %v5720 = vand.u32 %v4746, 4294901760
        %5721 = vmatmul.f32.gmra.mxu0 %v5720
        %v5722 = vpop.f32.mrf.mxu0
        %v5723 = vadd.f32 %v5626, %v5722
        %v5724 = vand.u32 %v4758, 4294901760
        %5725 = vmatmul.f32.gmra.mxu0 %v5724
        %v5726 = vpop.f32.mrf.mxu0
        %v5727 = vadd.f32 %v5630, %v5726
        %v5728 = vand.u32 %v4770, 4294901760
        %5729 = vmatmul.f32.gmra.mxu0 %v5728
        %v5730 = vpop.f32.mrf.mxu0
        %v5731 = vadd.f32 %v5634, %v5730
        %v5732 = vand.u32 %v4782, 4294901760
        %5733 = vmatmul.f32.gmra.mxu0 %v5732
        %v5734 = vpop.f32.mrf.mxu0
        %v5735 = vadd.f32 %v5638, %v5734
        %v5736 = vand.u32 %v4794, 4294901760
        %5737 = vmatmul.f32.gmra.mxu0 %v5736
        %v5738 = vpop.f32.mrf.mxu0
        %v5739 = vadd.f32 %v5642, %v5738
        %v5740 = vand.u32 %v4806, 4294901760
        %5741 = vmatmul.f32.gmra.mxu0 %v5740
        %v5742 = vpop.f32.mrf.mxu0
        %v5743 = vadd.f32 %v5646, %v5742
        %5744 = vdwg.mxu0
        %5761 = vrot.lane.b32.xlu0 %v5683, 1
        %v5762 = vpop.permute.xlu0 %5761
        %5763 = vrot.lane.b32.xlu0 %v5687, 1
        %v5764 = vpop.permute.xlu0 %5763
        %5765 = vrot.lane.b32.xlu0 %v5691, 1
        %v5766 = vpop.permute.xlu0 %5765
        %5767 = vrot.lane.b32.xlu0 %v5695, 1
        %v5768 = vpop.permute.xlu0 %5767
        %5769 = vrot.lane.b32.xlu0 %v5699, 1
        %v5770 = vpop.permute.xlu0 %5769
        %5771 = vrot.lane.b32.xlu0 %v5703, 1
        %v5772 = vpop.permute.xlu0 %5771
        %5773 = vrot.lane.b32.xlu0 %v5707, 1
        %v5774 = vpop.permute.xlu0 %5773
        %5775 = vrot.lane.b32.xlu0 %v5711, 1
        %v5776 = vpop.permute.xlu0 %5775
        %5777 = vrot.lane.b32.xlu0 %v5715, 1
        %v5778 = vpop.permute.xlu0 %5777
        %5779 = vrot.lane.b32.xlu0 %v5719, 1
        %v5780 = vpop.permute.xlu0 %5779
        %5781 = vrot.lane.b32.xlu0 %v5723, 1
        %v5782 = vpop.permute.xlu0 %5781
        %5783 = vrot.lane.b32.xlu0 %v5727, 1
        %v5784 = vpop.permute.xlu0 %5783
        %5785 = vrot.lane.b32.xlu0 %v5731, 1
        %v5786 = vpop.permute.xlu0 %5785
        %5787 = vrot.lane.b32.xlu0 %v5735, 1
        %v5788 = vpop.permute.xlu0 %5787
        %5789 = vrot.lane.b32.xlu0 %v5739, 1
        %v5790 = vpop.permute.xlu0 %5789
        %5791 = vrot.lane.b32.xlu0 %v5743, 1
        %v5792 = vpop.permute.xlu0 %5791
        %5809 = vst.msk [vmem:[#allocation2] sm:$0xff] %vm1501, %v5762
        %5810 = vst.msk [vmem:[#allocation2 + $0x8] sm:$0xff] %vm1501, %v5764
        %5811 = vst.msk [vmem:[#allocation2 + $0x10] sm:$0xff] %vm1501, %v5766
        %5812 = vst.msk [vmem:[#allocation2 + $0x18] sm:$0xff] %vm1501, %v5768
        %5813 = vst.msk [vmem:[#allocation2 + $0x20] sm:$0xff] %vm1501, %v5770
        %5814 = vst.msk [vmem:[#allocation2 + $0x28] sm:$0xff] %vm1501, %v5772
        %5815 = vst.msk [vmem:[#allocation2 + $0x30] sm:$0xff] %vm1501, %v5774
        %5816 = vst.msk [vmem:[#allocation2 + $0x38] sm:$0xff] %vm1501, %v5776
        %5817 = vst.msk [vmem:[#allocation2 + $0x40] sm:$0xff] %vm1501, %v5778
        %5818 = vst.msk [vmem:[#allocation2 + $0x48] sm:$0xff] %vm1501, %v5780
        %5819 = vst.msk [vmem:[#allocation2 + $0x50] sm:$0xff] %vm1501, %v5782
        %5820 = vst.msk [vmem:[#allocation2 + $0x58] sm:$0xff] %vm1501, %v5784
        %5821 = vst.msk [vmem:[#allocation2 + $0x60] sm:$0xff] %vm1501, %v5786
        %5822 = vst.msk [vmem:[#allocation2 + $0x68] sm:$0xff] %vm1501, %v5788
        %5823 = vst.msk [vmem:[#allocation2 + $0x70] sm:$0xff] %vm1501, %v5790
        %5824 = vst.msk [vmem:[#allocation2 + $0x78] sm:$0xff] %vm1501, %v5792
        %v5825 = vrsqrt.pop %v5683
        %v5826 = vmul.f32 %v5825, %v5683
        %v5827 = vmul.f32 %v5826, %v5825
        %v5828 = vmul.f32 0.5, %v5827
        %v5829 = vsub.f32 1.5, %v5828
        %v5830 = vmul.f32 %v5825, %v5829
        %vm5831 = vweird.f32 %v5683
        %vm5832 = vweird.f32 %v5825
        %vm5833 = vmor %vm5831, %vm5832
        %v5834 = vsel %vm5833, %v5825, %v5830
        %v5835 = vrsqrt.pop %v5687
        %v5836 = vmul.f32 %v5835, %v5687
        %v5837 = vmul.f32 %v5836, %v5835
        %v5838 = vmul.f32 0.5, %v5837
        %v5839 = vsub.f32 1.5, %v5838
        %v5840 = vmul.f32 %v5835, %v5839
        %vm5841 = vweird.f32 %v5687
        %vm5842 = vweird.f32 %v5835
        %vm5843 = vmor %vm5841, %vm5842
        %v5844 = vsel %vm5843, %v5835, %v5840
        %v5845 = vrsqrt.pop %v5691
        %v5846 = vmul.f32 %v5845, %v5691
        %v5847 = vmul.f32 %v5846, %v5845
        %v5848 = vmul.f32 0.5, %v5847
        %v5849 = vsub.f32 1.5, %v5848
        %v5850 = vmul.f32 %v5845, %v5849
        %vm5851 = vweird.f32 %v5691
        %vm5852 = vweird.f32 %v5845
        %vm5853 = vmor %vm5851, %vm5852
        %v5854 = vsel %vm5853, %v5845, %v5850
        %v5855 = vrsqrt.pop %v5695
        %v5856 = vmul.f32 %v5855, %v5695
        %v5857 = vmul.f32 %v5856, %v5855
        %v5858 = vmul.f32 0.5, %v5857
        %v5859 = vsub.f32 1.5, %v5858
        %v5860 = vmul.f32 %v5855, %v5859
        %vm5861 = vweird.f32 %v5695
        %vm5862 = vweird.f32 %v5855
        %vm5863 = vmor %vm5861, %vm5862
        %v5864 = vsel %vm5863, %v5855, %v5860
        %v5865 = vrsqrt.pop %v5699
        %v5866 = vmul.f32 %v5865, %v5699
        %v5867 = vmul.f32 %v5866, %v5865
        %v5868 = vmul.f32 0.5, %v5867
        %v5869 = vsub.f32 1.5, %v5868
        %v5870 = vmul.f32 %v5865, %v5869
        %vm5871 = vweird.f32 %v5699
        %vm5872 = vweird.f32 %v5865
        %vm5873 = vmor %vm5871, %vm5872
        %v5874 = vsel %vm5873, %v5865, %v5870
        %v5875 = vrsqrt.pop %v5703
        %v5876 = vmul.f32 %v5875, %v5703
        %v5877 = vmul.f32 %v5876, %v5875
        %v5878 = vmul.f32 0.5, %v5877
        %v5879 = vsub.f32 1.5, %v5878
        %v5880 = vmul.f32 %v5875, %v5879
        %vm5881 = vweird.f32 %v5703
        %vm5882 = vweird.f32 %v5875
        %vm5883 = vmor %vm5881, %vm5882
        %v5884 = vsel %vm5883, %v5875, %v5880
        %v5885 = vrsqrt.pop %v5707
        %v5886 = vmul.f32 %v5885, %v5707
        %v5887 = vmul.f32 %v5886, %v5885
        %v5888 = vmul.f32 0.5, %v5887
        %v5889 = vsub.f32 1.5, %v5888
        %v5890 = vmul.f32 %v5885, %v5889
        %vm5891 = vweird.f32 %v5707
        %vm5892 = vweird.f32 %v5885
        %vm5893 = vmor %vm5891, %vm5892
        %v5894 = vsel %vm5893, %v5885, %v5890
        %v5895 = vrsqrt.pop %v5711
        %v5896 = vmul.f32 %v5895, %v5711
        %v5897 = vmul.f32 %v5896, %v5895
        %v5898 = vmul.f32 0.5, %v5897
        %v5899 = vsub.f32 1.5, %v5898
        %v5900 = vmul.f32 %v5895, %v5899
        %vm5901 = vweird.f32 %v5711
        %vm5902 = vweird.f32 %v5895
        %vm5903 = vmor %vm5901, %vm5902
        %v5904 = vsel %vm5903, %v5895, %v5900
        %v5905 = vrsqrt.pop %v5715
        %v5906 = vmul.f32 %v5905, %v5715
        %v5907 = vmul.f32 %v5906, %v5905
        %v5908 = vmul.f32 0.5, %v5907
        %v5909 = vsub.f32 1.5, %v5908
        %v5910 = vmul.f32 %v5905, %v5909
        %vm5911 = vweird.f32 %v5715
        %vm5912 = vweird.f32 %v5905
        %vm5913 = vmor %vm5911, %vm5912
        %v5914 = vsel %vm5913, %v5905, %v5910
        %v5915 = vrsqrt.pop %v5719
        %v5916 = vmul.f32 %v5915, %v5719
        %v5917 = vmul.f32 %v5916, %v5915
        %v5918 = vmul.f32 0.5, %v5917
        %v5919 = vsub.f32 1.5, %v5918
        %v5920 = vmul.f32 %v5915, %v5919
        %vm5921 = vweird.f32 %v5719
        %vm5922 = vweird.f32 %v5915
        %vm5923 = vmor %vm5921, %vm5922
        %v5924 = vsel %vm5923, %v5915, %v5920
        %v5925 = vrsqrt.pop %v5723
        %v5926 = vmul.f32 %v5925, %v5723
        %v5927 = vmul.f32 %v5926, %v5925
        %v5928 = vmul.f32 0.5, %v5927
        %v5929 = vsub.f32 1.5, %v5928
        %v5930 = vmul.f32 %v5925, %v5929
        %vm5931 = vweird.f32 %v5723
        %vm5932 = vweird.f32 %v5925
        %vm5933 = vmor %vm5931, %vm5932
        %v5934 = vsel %vm5933, %v5925, %v5930
        %v5935 = vrsqrt.pop %v5727
        %v5936 = vmul.f32 %v5935, %v5727
        %v5937 = vmul.f32 %v5936, %v5935
        %v5938 = vmul.f32 0.5, %v5937
        %v5939 = vsub.f32 1.5, %v5938
        %v5940 = vmul.f32 %v5935, %v5939
        %vm5941 = vweird.f32 %v5727
        %vm5942 = vweird.f32 %v5935
        %vm5943 = vmor %vm5941, %vm5942
        %v5944 = vsel %vm5943, %v5935, %v5940
        %v5945 = vrsqrt.pop %v5731
        %v5946 = vmul.f32 %v5945, %v5731
        %v5947 = vmul.f32 %v5946, %v5945
        %v5948 = vmul.f32 0.5, %v5947
        %v5949 = vsub.f32 1.5, %v5948
        %v5950 = vmul.f32 %v5945, %v5949
        %vm5951 = vweird.f32 %v5731
        %vm5952 = vweird.f32 %v5945
        %vm5953 = vmor %vm5951, %vm5952
        %v5954 = vsel %vm5953, %v5945, %v5950
        %v5955 = vrsqrt.pop %v5735
        %v5956 = vmul.f32 %v5955, %v5735
        %v5957 = vmul.f32 %v5956, %v5955
        %v5958 = vmul.f32 0.5, %v5957
        %v5959 = vsub.f32 1.5, %v5958
        %v5960 = vmul.f32 %v5955, %v5959
        %vm5961 = vweird.f32 %v5735
        %vm5962 = vweird.f32 %v5955
        %vm5963 = vmor %vm5961, %vm5962
        %v5964 = vsel %vm5963, %v5955, %v5960
        %v5965 = vrsqrt.pop %v5739
        %v5966 = vmul.f32 %v5965, %v5739
        %v5967 = vmul.f32 %v5966, %v5965
        %v5968 = vmul.f32 0.5, %v5967
        %v5969 = vsub.f32 1.5, %v5968
        %v5970 = vmul.f32 %v5965, %v5969
        %vm5971 = vweird.f32 %v5739
        %vm5972 = vweird.f32 %v5965
        %vm5973 = vmor %vm5971, %vm5972
        %v5974 = vsel %vm5973, %v5965, %v5970
        %v5975 = vrsqrt.pop %v5743
        %v5976 = vmul.f32 %v5975, %v5743
        %v5977 = vmul.f32 %v5976, %v5975
        %v5978 = vmul.f32 0.5, %v5977
        %v5979 = vsub.f32 1.5, %v5978
        %v5980 = vmul.f32 %v5975, %v5979
        %vm5981 = vweird.f32 %v5743
        %vm5982 = vweird.f32 %v5975
        %vm5983 = vmor %vm5981, %vm5982
        %v5984 = vsel %vm5983, %v5975, %v5980
        %v5985 = vmul.f32 %v4583, %v5834
        %v5986 = vmul.f32 %v4584, %v5844
        %v5987 = vmul.f32 %v4585, %v5854
        %v5988 = vmul.f32 %v4586, %v5864
        %v5989 = vmul.f32 %v4587, %v5874
        %v5990 = vmul.f32 %v4588, %v5884
        %v5991 = vmul.f32 %v4589, %v5894
        %v5992 = vmul.f32 %v4590, %v5904
        %v5993 = vmul.f32 %v4591, %v5914
        %v5994 = vmul.f32 %v4592, %v5924
        %v5995 = vmul.f32 %v4593, %v5934
        %v5996 = vmul.f32 %v4594, %v5944
        %v5997 = vmul.f32 %v4595, %v5954
        %v5998 = vmul.f32 %v4596, %v5964
        %v5999 = vmul.f32 %v4597, %v5974
        %v6000 = vmul.f32 %v4598, %v5984
        %s6001 = scalar_lea.vmem %s235, 24 [#allocation6]
        %6002 = vst [vmem:[%s6001] sm:$0xff] %v5985
        %6003 = vst [vmem:[%s6001 + $0x20] sm:$0xff] %v5986
        %6004 = vst [vmem:[%s6001 + $0x40] sm:$0xff] %v5987
        %6005 = vst [vmem:[%s6001 + $0x60] sm:$0xff] %v5988
        %6006 = vst [vmem:[%s6001 + $0x80] sm:$0xff] %v5989
        %6007 = vst [vmem:[%s6001 + $0xa0] sm:$0xff] %v5990
        %6008 = vst [vmem:[%s6001 + $0xc0] sm:$0xff] %v5991
        %6009 = vst [vmem:[%s6001 + $0xe0] sm:$0xff] %v5992
        %6010 = vst [vmem:[%s6001 + $0x100] sm:$0xff] %v5993
        %6011 = vst [vmem:[%s6001 + $0x120] sm:$0xff] %v5994
        %6012 = vst [vmem:[%s6001 + $0x140] sm:$0xff] %v5995
        %6013 = vst [vmem:[%s6001 + $0x160] sm:$0xff] %v5996
        %6014 = vst [vmem:[%s6001 + $0x180] sm:$0xff] %v5997
        %6015 = vst [vmem:[%s6001 + $0x1a0] sm:$0xff] %v5998
        %6016 = vst [vmem:[%s6001 + $0x1c0] sm:$0xff] %v5999
        %6017 = vst [vmem:[%s6001 + $0x1e0] sm:$0xff] %v6000
        %s6018 = sand.u32 %s134, 1
        %s6019 = scalar_lea.sflag [#allocation5], %s6018
        %s6020 = sand.u32 %s134, 1
        %s6021 = smul.addr %s6020, 512
        %s6022 = scalar_lea.vmem [#allocation6], %s6021
        // Predicated region
        $region45: #{tpu_custom_call.1} parent=35 // pred_check
          %p6023 = pneg %p144
        $region46: #{tpu_custom_call.1} parent=35 // pred_check_branch
          %6025 = sbr.rel (%p6023) target = $region48
        $region47: #{tpu_custom_call.1} parent=35 // pred_region
          %s6026 = smul.u32 4, %s26
          %6028 = vsyncadd %s6019, 0
          %s6029 = smul.addr %s25, 128
          %s6030 = sadd.s32 %s6026, %s6029
          %s6031 = smul.addr %s6030, 8
          %s6032 = scalar_lea.hbm %s4, %s6031
          %s6033 = sshll.u32 %s6022, 4
          %s6034 = int_to_ptr.vmem [resolvable:$true] %s6033
          %s6035 = sshll.u32 %s6032, 4
          %s6036 = int_to_ptr.hbm [resolvable:$true] %s6035
          %6041 = dma.vmem_to_hbm [thread:$0]  %s6034, 8192, %s6036, %s6019, 512, 1024, 32
        $region48: #{tpu_custom_call.1} parent=35 // pred_fallthru
          _
      $region36: #{tpu_custom_call.1} parent=5 // pred_fallthru
        _
      %p6042 = scmp.le.s32.totalorder 2, %s16
      // Predicated region
      $region49: #{tpu_custom_call.1} parent=5 // pred_check
        %p6043 = pneg %p6042
      $region50: #{tpu_custom_call.1} parent=5 // pred_check_branch
        %6045 = sbr.rel (%p6043) target = $region52
      $region51: #{tpu_custom_call.1} parent=5 // pred_region
        %s6046 = ssub.s32 %s16, 2
        // Predicated region
        $region53: #{tpu_custom_call.1} parent=51 // pred_check
          %p6047 = pneg %p150
        $region54: #{tpu_custom_call.1} parent=51 // pred_check_branch
          %6049 = sbr.rel (%p6047) target = $region56
        $region55: #{tpu_custom_call.1} parent=51 // pred_region
          %s6050 = sand.u32 %s135, 1
          %s6051 = scalar_lea.sflag [#allocation5], %s6050
          %s6052 = sand.u32 %s135, 1
          %s6053 = smul.addr %s6052, 512
          %s6054 = scalar_lea.vmem [#allocation6], %s6053
          %6056 = dma.done %s6051, 8192
        $region56: #{tpu_custom_call.1} parent=51 // pred_fallthru
          _
      $region52: #{tpu_custom_call.1} parent=5 // pred_fallthru
        _
    $region6: #{tpu_custom_call.1} parent=1 // loop_footer
      %s20 = sadd.s32 1, %s16
    $region7: #{tpu_custom_call.1} parent=1 // loop_footer_branch
      %15 = sbr.rel target = $region3
    $region8: #{tpu_custom_call.1} parent=1 // loop_exit
      _
    %6057 = vsyncpa [#allocation4], 1
    %s6058 = scalar_lea.sflag [#allocation4], 1
    %6059 = vsyncpa %s6058, 1
    %6060 = vsyncpa [#allocation5], 1
    %s6061 = scalar_lea.sflag [#allocation5], 1
    %6062 = vsyncpa %s6061, 1

</llo_original>
